<compile_context>
chip_gen: v6e
topology: v6e:2x2x1
jax: 0.10.0
libtpu: 0.0.40
codegen_flags: <defaults>
</compile_context>

<pallas_src>
import functools

import jax
import jax.numpy as jnp
from jax.experimental import pallas as pl
from jax.experimental.pallas import tpu as pltpu

LANES = 128  # padded width of every output-channel dimension


# ----------------------------- Pallas kernels ------------------------------

def _conv_relu_pool_kernel(p_ref, w_ref, b_ref, pool_ref, o_ref):
    """One image: im2col patches -> conv matmul -> bias -> ReLU -> 2x2 avgpool.

    p:    (1, OH*OW, K)      im2col patches for this image
    w:    (K, 128)           conv weight, output channels zero-padded to 128
    b:    (1, 128)           bias, zero-padded
    pool: (OHp*OWp, OH*OW)   constant 0 / 0.25 average-pool matrix
    o:    (1, OHp*OWp, 128)  pooled, lane-dense activations
    """
    x = p_ref[0]                                                   # (M, K)
    y = jnp.dot(x, w_ref[...], preferred_element_type=jnp.float32)
    y = jnp.maximum(y + b_ref[...], 0.0)                           # (M, 128)
    # 2x2 / stride-2 average pool as a second (tiny) MXU matmul: keeps stores
    # lane-dense and avoids strided sublane slicing entirely.
    o_ref[0] = jnp.dot(pool_ref[...], y, preferred_element_type=jnp.float32)


def _tail_kernel(x_ref, w3_ref, b3_ref, w4_ref, b4_ref, w5_ref, b5_ref, o_ref):
    """conv3(as matmul) -> ReLU -> fc1 -> ReLU -> fc2, fully fused.

    Weights are zero-padded to 128 output lanes (and 128 input rows for the FC
    layers), so every intermediate stays lane-dense and vreg/VMEM resident.
    """
    h = jnp.dot(x_ref[...], w3_ref[...], preferred_element_type=jnp.float32)
    h = jnp.maximum(h + b3_ref[...], 0.0)                          # (TB, 128)
    h = jnp.dot(h, w4_ref[...], preferred_element_type=jnp.float32)
    h = jnp.maximum(h + b4_ref[...], 0.0)                          # (TB, 128)
    o = jnp.dot(h, w5_ref[...], preferred_element_type=jnp.float32)
    o_ref[...] = o + b5_ref[...]                                   # (TB, 128)


# --------------------------- pallas_call wrappers ---------------------------

def conv_relu_pool(patches, w_pad, b_pad, pool_mat):
    """patches (N, OH*OW, K) -> pooled activations (N, OHp*OWp, 128)."""
    N, M, K = patches.shape
    Mp = pool_mat.shape[0]
    return pl.pallas_call(
        _conv_relu_pool_kernel,
        out_shape=jax.ShapeDtypeStruct((N, Mp, LANES), jnp.float32),
        grid=(N,),
        in_specs=[
            pl.BlockSpec((1, M, K), lambda n: (n, 0, 0)),
            pl.BlockSpec((K, LANES), lambda n: (0, 0)),
            pl.BlockSpec((1, LANES), lambda n: (0, 0)),
            pl.BlockSpec((Mp, M), lambda n: (0, 0)),
        ],
        out_specs=pl.BlockSpec((1, Mp, LANES), lambda n: (n, 0, 0)),
        compiler_params=pltpu.CompilerParams(
            dimension_semantics=("parallel",)),
    )(patches, w_pad, b_pad, pool_mat)


def tail_fused(xflat, w3, b3, w4, b4, w5, b5):
    """(N, 400) flattened features -> (N, 128) lane-padded logits."""
    N, K = xflat.shape
    TB = N if N <= 512 else 512   # batch tile: small VMEM, pipelined grid
    return pl.pallas_call(
        _tail_kernel,
        out_shape=jax.ShapeDtypeStruct((N, LANES), jnp.float32),
        grid=(pl.cdiv(N, TB),),
        in_specs=[
            pl.BlockSpec((TB, K), lambda i: (i, 0)),
            pl.BlockSpec((K, LANES), lambda i: (0, 0)),
            pl.BlockSpec((1, LANES), lambda i: (0, 0)),
            pl.BlockSpec((LANES, LANES), lambda i: (0, 0)),
            pl.BlockSpec((1, LANES), lambda i: (0, 0)),
            pl.BlockSpec((LANES, LANES), lambda i: (0, 0)),
            pl.BlockSpec((1, LANES), lambda i: (0, 0)),
        ],
        out_specs=pl.BlockSpec((TB, LANES), lambda i: (i, 0)),
        compiler_params=pltpu.CompilerParams(
            dimension_semantics=("parallel",)),
    )(xflat, w3, b3, w4, b4, w5, b5)


# ------------------------------ JAX glue ops --------------------------------

def im2col_nhwc(x, kh, kw):
    """x: (N, S0, S1, C) -> (N, OH*OW, kh*kw*C); K ordering is (kh, kw, c)."""
    N, S0, S1, C = x.shape
    OH, OW = S0 - kh + 1, S1 - kw + 1
    taps = [x[:, i:i + OH, j:j + OW, :] for i in range(kh) for j in range(kw)]
    p = jnp.concatenate(taps, axis=-1)               # (N, OH, OW, kh*kw*C)
    return p.reshape(N, OH * OW, kh * kw * C), (OH, OW)


def make_pool_matrix(OH, OW):
    """(OHp*OWp, OH*OW) matrix: 0.25 where a conv pixel feeds that pool cell."""
    OHp, OWp = OH // 2, OW // 2
    q = jnp.arange(OH * OW)
    r = jnp.arange(OHp * OWp)
    oh, ow = q // OW, q % OW
    ph, pw = r // OWp, r % OWp
    hit = (oh[None, :] // 2 == ph[:, None]) & (ow[None, :] // 2 == pw[:, None])
    return hit.astype(jnp.float32) * 0.25


# ------------------------------ LeNet5 model --------------------------------

def init_lenet5_params(key, channels, classes):
    """Deterministic PyTorch-style (uniform +-1/sqrt(fan_in)) init."""
    ks = jax.random.split(key, 10)

    def conv_init(kw_, kb_, oc, ic, k):
        bound = 1.0 / (ic * k * k) ** 0.5
        w = jax.random.uniform(kw_, (oc, ic, k, k), jnp.float32, -bound, bound)
        b = jax.random.uniform(kb_, (oc,), jnp.float32, -bound, bound)
        return w, b

    def fc_init(kw_, kb_, fin, fout):
        bound = 1.0 / fin ** 0.5
        w = jax.random.uniform(kw_, (fin, fout), jnp.float32, -bound, bound)
        b = jax.random.uniform(kb_, (fout,), jnp.float32, -bound, bound)
        return w, b

    p = {}
    p["w1"], p["b1"] = conv_init(ks[0], ks[1], 6, channels, 5)
    p["w2"], p["b2"] = conv_init(ks[2], ks[3], 16, 6, 5)
    p["w3"], p["b3"] = conv_init(ks[4], ks[5], 120, 16, 5)
    p["wf1"], p["bf1"] = fc_init(ks[6], ks[7], 120, 84)
    p["wf2"], p["bf2"] = fc_init(ks[8], ks[9], 84, classes)
    return p


def _pad_lanes(a, lanes=LANES):
    return jnp.pad(a, ((0, 0), (0, lanes - a.shape[1])))


def prepare_kernel_params(p):
    """Rearrange / zero-pad PyTorch-layout params into kernel-ready form.

    Conv weights (OC, C, KH, KW) -> (KH*KW*C, 128): row ordering (kh, kw, c)
    matches im2col; output channels zero-padded to 128 lanes (done once).
    """
    def conv_w(w):
        oc = w.shape[0]
        return _pad_lanes(jnp.transpose(w, (2, 3, 1, 0)).reshape(-1, oc))

    return {
        "w1": conv_w(p["w1"]), "b1": _pad_lanes(p["b1"].reshape(1, -1)),
        "w2": conv_w(p["w2"]), "b2": _pad_lanes(p["b2"].reshape(1, -1)),
        "w3": conv_w(p["w3"]), "b3": _pad_lanes(p["b3"].reshape(1, -1)),
        # FC weights: pad input rows to 128 (activations arrive lane-padded
        # with zeros) and output columns to 128.
        "wf1": _pad_lanes(jnp.pad(p["wf1"], ((0, LANES - 120), (0, 0)))),
        "bf1": _pad_lanes(p["bf1"].reshape(1, -1)),
        "wf2": _pad_lanes(jnp.pad(p["wf2"], ((0, LANES - 84), (0, 0)))),
        "bf2": _pad_lanes(p["bf2"].reshape(1, -1)),
    }


def lenet5_forward(kp, pools, x, classes):
    # x: (N, H, W, C).  PyTorch does x.permute(0, 3, 2, 1) -> (N, C, W, H);
    # the channel-last equivalent feeds the spatial axes in (W, H) order.
    N = x.shape[0]
    x = jnp.transpose(x, (0, 2, 1, 3))                      # (N, W, H, C)

    # conv1 + ReLU + avgpool (one fused Pallas kernel)
    p1, _ = im2col_nhwc(x, 5, 5)                            # (N, 784, 25*C)
    a1 = conv_relu_pool(p1, kp["w1"], kp["b1"], pools[0])   # (N, 196, 128)
    a1 = a1[:, :, :6].reshape(N, 14, 14, 6)

    # conv2 + ReLU + avgpool (one fused Pallas kernel)
    p2, _ = im2col_nhwc(a1, 5, 5)                           # (N, 100, 150)
    a2 = conv_relu_pool(p2, kp["w2"], kp["b2"], pools[1])   # (N, 25, 128)

    # conv3 (1x1 output == matmul over the 5x5x16 window) + fc1 + fc2, fused.
    xflat = a2[:, :, :16].reshape(N, 400)                   # (kh, kw, c) order
    out = tail_fused(xflat, kp["w3"], kp["b3"],
                     kp["wf1"], kp["bf1"], kp["wf2"], kp["bf2"])  # (N, 128)
    return out[:, :classes]


if __name__ == "__main__":
    key = jax.random.PRNGKey(0)
    kx, kparam = jax.random.split(key)

    channels, classes, batch = 3, 10, 2
    # LeNet5 geometry needs 32x32 spatial so conv3's 5x5 window sees a 5x5 map.
    x = jax.random.normal(kx, (batch, 32, 32, channels), dtype=jnp.float32)

    params = init_lenet5_params(kparam, channels, classes)
    kparams = prepare_kernel_params(params)
    pools = (make_pool_matrix(28, 28), make_pool_matrix(10, 10))

    fwd = jax.jit(functools.partial(lenet5_forward, classes=classes))
    out = jax.block_until_ready(fwd(kparams, pools, x))
    assert out.shape == (batch, classes) and out.dtype == jnp.float32
    print("KERNEL_OK")
</pallas_src>

<mosaic_0001>
module attributes {stable_mosaic.version = 11 : i64} {
  func.func @_conv_relu_pool_kernel(%arg0: i32, %arg1: memref<1x784x75xf32, #tpu.memory_space<vmem>>, %arg2: memref<75x128xf32, #tpu.memory_space<vmem>>, %arg3: memref<1x128xf32, #tpu.memory_space<vmem>>, %arg4: memref<196x784xf32, #tpu.memory_space<vmem>>, %arg5: memref<1x196x128xf32, #tpu.memory_space<vmem>>) attributes {dimension_semantics = [#tpu.dimension_semantics<parallel>], iteration_bounds = array<i64: 2>, scalar_prefetch = 0 : i64, scratch_operands = 0 : i64, tpu.core_type = #tpu.core_type<tc>, window_params = [{transform_indices = @transform_0, window_bounds = array<i64: 1, 784, 75>}, {pipeline_mode = #tpu.pipeline_mode<synchronous>, transform_indices = @transform_1, window_bounds = array<i64: 75, 128>}, {pipeline_mode = #tpu.pipeline_mode<synchronous>, transform_indices = @transform_2, window_bounds = array<i64: 1, 128>}, {pipeline_mode = #tpu.pipeline_mode<synchronous>, transform_indices = @transform_3, window_bounds = array<i64: 196, 784>}, {transform_indices = @transform_4, window_bounds = array<i64: 1, 196, 128>}]} {
    %c0 = arith.constant 0 : index
    %c0_0 = arith.constant 0 : index
    %c0_1 = arith.constant 0 : index
    %0 = vector.load %arg1[%c0, %c0_0, %c0_1] : memref<1x784x75xf32, #tpu.memory_space<vmem>>, vector<1x784x75xf32>
    %1 = vector.shape_cast %0 : vector<1x784x75xf32> to vector<784x75xf32>
    %c0_2 = arith.constant 0 : index
    %c0_3 = arith.constant 0 : index
    %2 = vector.load %arg2[%c0_2, %c0_3] : memref<75x128xf32, #tpu.memory_space<vmem>>, vector<75x128xf32>
    %cst = arith.constant dense<0.000000e+00> : vector<784x128xf32>
    %3 = tpu.matmul %1, %2, %cst {dimension_numbers = #tpu.dot_dimension_numbers<[1], [0], [0], [1], [0, 0, 1, 1], [], []>} : vector<784x75xf32>, vector<75x128xf32>, vector<784x128xf32> -> vector<784x128xf32>
    %c0_4 = arith.constant 0 : index
    %c0_5 = arith.constant 0 : index
    %4 = vector.load %arg3[%c0_4, %c0_5] : memref<1x128xf32, #tpu.memory_space<vmem>>, vector<1x128xf32>
    %5 = vector.broadcast %4 : vector<1x128xf32> to vector<784x128xf32>
    %6 = arith.addf %3, %5 : vector<784x128xf32>
    %cst_6 = arith.constant 0.000000e+00 : f32
    %7 = vector.broadcast %cst_6 : f32 to vector<784x128xf32>
    %8 = arith.maximumf %6, %7 : vector<784x128xf32>
    %c0_7 = arith.constant 0 : index
    %c0_8 = arith.constant 0 : index
    %9 = vector.load %arg4[%c0_7, %c0_8] : memref<196x784xf32, #tpu.memory_space<vmem>>, vector<196x784xf32>
    %cst_9 = arith.constant dense<0.000000e+00> : vector<196x128xf32>
    %10 = tpu.matmul %9, %8, %cst_9 {dimension_numbers = #tpu.dot_dimension_numbers<[1], [0], [0], [1], [0, 0, 1, 1], [], []>} : vector<196x784xf32>, vector<784x128xf32>, vector<196x128xf32> -> vector<196x128xf32>
    %c0_10 = arith.constant 0 : index
    %c0_11 = arith.constant 0 : index
    %c0_12 = arith.constant 0 : index
    %11 = vector.load %arg5[%c0_10, %c0_11, %c0_12] : memref<1x196x128xf32, #tpu.memory_space<vmem>>, vector<1x196x128xf32>
    %12 = vector.shape_cast %11 : vector<1x196x128xf32> to vector<196x128xf32>
    %13 = vector.shape_cast %10 : vector<196x128xf32> to vector<1x196x128xf32>
    tpu.vector_store %arg5[%c0_10, %c0_11, %c0_12], %13 {strides = array<i32>} : memref<1x196x128xf32, #tpu.memory_space<vmem>>, vector<1x196x128xf32>,
    return
  }
  func.func @transform_0(%arg0: i32) -> (i32, i32, i32) {
    %c0_i32 = arith.constant 0 : i32
    %c0_i32_0 = arith.constant 0 : i32
    %c0_i32_1 = arith.constant 0 : i32
    return %arg0, %c0_i32, %c0_i32_0 : i32, i32, i32
  }
  func.func @transform_1(%arg0: i32) -> (i32, i32) {
    %c0_i32 = arith.constant 0 : i32
    %c0_i32_0 = arith.constant 0 : i32
    %c0_i32_1 = arith.constant 0 : i32
    return %c0_i32, %c0_i32_0 : i32, i32
  }
  func.func @transform_2(%arg0: i32) -> (i32, i32) {
    %c0_i32 = arith.constant 0 : i32
    %c0_i32_0 = arith.constant 0 : i32
    %c0_i32_1 = arith.constant 0 : i32
    return %c0_i32, %c0_i32_0 : i32, i32
  }
  func.func @transform_3(%arg0: i32) -> (i32, i32) {
    %c0_i32 = arith.constant 0 : i32
    %c0_i32_0 = arith.constant 0 : i32
    %c0_i32_1 = arith.constant 0 : i32
    return %c0_i32, %c0_i32_0 : i32, i32
  }
  func.func @transform_4(%arg0: i32) -> (i32, i32, i32) {
    %c0_i32 = arith.constant 0 : i32
    %c0_i32_0 = arith.constant 0 : i32
    %c0_i32_1 = arith.constant 0 : i32
    return %arg0, %c0_i32, %c0_i32_0 : i32, i32, i32
  }
}

module attributes {stable_mosaic.version = 11 : i64} {
  func.func @_conv_relu_pool_kernel(%arg0: i32, %arg1: memref<1x100x150xf32, #tpu.memory_space<vmem>>, %arg2: memref<150x128xf32, #tpu.memory_space<vmem>>, %arg3: memref<1x128xf32, #tpu.memory_space<vmem>>, %arg4: memref<25x100xf32, #tpu.memory_space<vmem>>, %arg5: memref<1x25x128xf32, #tpu.memory_space<vmem>>) attributes {dimension_semantics = [#tpu.dimension_semantics<parallel>], iteration_bounds = array<i64: 2>, scalar_prefetch = 0 : i64, scratch_operands = 0 : i64, tpu.core_type = #tpu.core_type<tc>, window_params = [{transform_indices = @transform_0, window_bounds = array<i64: 1, 100, 150>}, {pipeline_mode = #tpu.pipeline_mode<synchronous>, transform_indices = @transform_1, window_bounds = array<i64: 150, 128>}, {pipeline_mode = #tpu.pipeline_mode<synchronous>, transform_indices = @transform_2, window_bounds = array<i64: 1, 128>}, {pipeline_mode = #tpu.pipeline_mode<synchronous>, transform_indices = @transform_3, window_bounds = array<i64: 25, 100>}, {transform_indices = @transform_4, window_bounds = array<i64: 1, 25, 128>}]} {
    %c0 = arith.constant 0 : index
    %c0_0 = arith.constant 0 : index
    %c0_1 = arith.constant 0 : index
    %0 = vector.load %arg1[%c0, %c0_0, %c0_1] : memref<1x100x150xf32, #tpu.memory_space<vmem>>, vector<1x100x150xf32>
    %1 = vector.shape_cast %0 : vector<1x100x150xf32> to vector<100x150xf32>
    %c0_2 = arith.constant 0 : index
    %c0_3 = arith.constant 0 : index
    %2 = vector.load %arg2[%c0_2, %c0_3] : memref<150x128xf32, #tpu.memory_space<vmem>>, vector<150x128xf32>
    %cst = arith.constant dense<0.000000e+00> : vector<100x128xf32>
    %3 = tpu.matmul %1, %2, %cst {dimension_numbers = #tpu.dot_dimension_numbers<[1], [0], [0], [1], [0, 0, 1, 1], [], []>} : vector<100x150xf32>, vector<150x128xf32>, vector<100x128xf32> -> vector<100x128xf32>
    %c0_4 = arith.constant 0 : index
    %c0_5 = arith.constant 0 : index
    %4 = vector.load %arg3[%c0_4, %c0_5] : memref<1x128xf32, #tpu.memory_space<vmem>>, vector<1x128xf32>
    %5 = vector.broadcast %4 : vector<1x128xf32> to vector<100x128xf32>
    %6 = arith.addf %3, %5 : vector<100x128xf32>
    %cst_6 = arith.constant 0.000000e+00 : f32
    %7 = vector.broadcast %cst_6 : f32 to vector<100x128xf32>
    %8 = arith.maximumf %6, %7 : vector<100x128xf32>
    %c0_7 = arith.constant 0 : index
    %c0_8 = arith.constant 0 : index
    %9 = vector.load %arg4[%c0_7, %c0_8] : memref<25x100xf32, #tpu.memory_space<vmem>>, vector<25x100xf32>
    %cst_9 = arith.constant dense<0.000000e+00> : vector<25x128xf32>
    %10 = tpu.matmul %9, %8, %cst_9 {dimension_numbers = #tpu.dot_dimension_numbers<[1], [0], [0], [1], [0, 0, 1, 1], [], []>} : vector<25x100xf32>, vector<100x128xf32>, vector<25x128xf32> -> vector<25x128xf32>
    %c0_10 = arith.constant 0 : index
    %c0_11 = arith.constant 0 : index
    %c0_12 = arith.constant 0 : index
    %11 = vector.load %arg5[%c0_10, %c0_11, %c0_12] : memref<1x25x128xf32, #tpu.memory_space<vmem>>, vector<1x25x128xf32>
    %12 = vector.shape_cast %11 : vector<1x25x128xf32> to vector<25x128xf32>
    %13 = vector.shape_cast %10 : vector<25x128xf32> to vector<1x25x128xf32>
    tpu.vector_store %arg5[%c0_10, %c0_11, %c0_12], %13 {strides = array<i32>} : memref<1x25x128xf32, #tpu.memory_space<vmem>>, vector<1x25x128xf32>,
    return
  }
  func.func @transform_0(%arg0: i32) -> (i32, i32, i32) {
    %c0_i32 = arith.constant 0 : i32
    %c0_i32_0 = arith.constant 0 : i32
    %c0_i32_1 = arith.constant 0 : i32
    return %arg0, %c0_i32, %c0_i32_0 : i32, i32, i32
  }
  func.func @transform_1(%arg0: i32) -> (i32, i32) {
    %c0_i32 = arith.constant 0 : i32
    %c0_i32_0 = arith.constant 0 : i32
    %c0_i32_1 = arith.constant 0 : i32
    return %c0_i32, %c0_i32_0 : i32, i32
  }
  func.func @transform_2(%arg0: i32) -> (i32, i32) {
    %c0_i32 = arith.constant 0 : i32
    %c0_i32_0 = arith.constant 0 : i32
    %c0_i32_1 = arith.constant 0 : i32
    return %c0_i32, %c0_i32_0 : i32, i32
  }
  func.func @transform_3(%arg0: i32) -> (i32, i32) {
    %c0_i32 = arith.constant 0 : i32
    %c0_i32_0 = arith.constant 0 : i32
    %c0_i32_1 = arith.constant 0 : i32
    return %c0_i32, %c0_i32_0 : i32, i32
  }
  func.func @transform_4(%arg0: i32) -> (i32, i32, i32) {
    %c0_i32 = arith.constant 0 : i32
    %c0_i32_0 = arith.constant 0 : i32
    %c0_i32_1 = arith.constant 0 : i32
    return %arg0, %c0_i32, %c0_i32_0 : i32, i32, i32
  }
}

module attributes {stable_mosaic.version = 11 : i64} {
  func.func @_tail_kernel(%arg0: i32, %arg1: memref<2x400xf32, #tpu.memory_space<vmem>>, %arg2: memref<400x128xf32, #tpu.memory_space<vmem>>, %arg3: memref<1x128xf32, #tpu.memory_space<vmem>>, %arg4: memref<128x128xf32, #tpu.memory_space<vmem>>, %arg5: memref<1x128xf32, #tpu.memory_space<vmem>>, %arg6: memref<128x128xf32, #tpu.memory_space<vmem>>, %arg7: memref<1x128xf32, #tpu.memory_space<vmem>>, %arg8: memref<2x128xf32, #tpu.memory_space<vmem>>) attributes {dimension_semantics = [#tpu.dimension_semantics<parallel>], iteration_bounds = array<i64: 1>, scalar_prefetch = 0 : i64, scratch_operands = 0 : i64, tpu.core_type = #tpu.core_type<tc>, window_params = [{transform_indices = @transform_0, window_bounds = array<i64: 2, 400>}, {pipeline_mode = #tpu.pipeline_mode<synchronous>, transform_indices = @transform_1, window_bounds = array<i64: 400, 128>}, {pipeline_mode = #tpu.pipeline_mode<synchronous>, transform_indices = @transform_2, window_bounds = array<i64: 1, 128>}, {pipeline_mode = #tpu.pipeline_mode<synchronous>, transform_indices = @transform_3, window_bounds = array<i64: 128, 128>}, {pipeline_mode = #tpu.pipeline_mode<synchronous>, transform_indices = @transform_4, window_bounds = array<i64: 1, 128>}, {pipeline_mode = #tpu.pipeline_mode<synchronous>, transform_indices = @transform_5, window_bounds = array<i64: 128, 128>}, {pipeline_mode = #tpu.pipeline_mode<synchronous>, transform_indices = @transform_6, window_bounds = array<i64: 1, 128>}, {transform_indices = @transform_7, window_bounds = array<i64: 2, 128>}]} {
    %c0 = arith.constant 0 : index
    %c0_0 = arith.constant 0 : index
    %0 = vector.load %arg1[%c0, %c0_0] : memref<2x400xf32, #tpu.memory_space<vmem>>, vector<2x400xf32>
    %c0_1 = arith.constant 0 : index
    %c0_2 = arith.constant 0 : index
    %1 = vector.load %arg2[%c0_1, %c0_2] : memref<400x128xf32, #tpu.memory_space<vmem>>, vector<400x128xf32>
    %cst = arith.constant dense<0.000000e+00> : vector<2x128xf32>
    %2 = tpu.matmul %0, %1, %cst {dimension_numbers = #tpu.dot_dimension_numbers<[1], [0], [0], [1], [0, 0, 1, 1], [], []>} : vector<2x400xf32>, vector<400x128xf32>, vector<2x128xf32> -> vector<2x128xf32>
    %c0_3 = arith.constant 0 : index
    %c0_4 = arith.constant 0 : index
    %3 = vector.load %arg3[%c0_3, %c0_4] : memref<1x128xf32, #tpu.memory_space<vmem>>, vector<1x128xf32>
    %4 = vector.broadcast %3 : vector<1x128xf32> to vector<2x128xf32>
    %5 = arith.addf %2, %4 : vector<2x128xf32>
    %cst_5 = arith.constant 0.000000e+00 : f32
    %6 = vector.broadcast %cst_5 : f32 to vector<2x128xf32>
    %7 = arith.maximumf %5, %6 : vector<2x128xf32>
    %c0_6 = arith.constant 0 : index
    %c0_7 = arith.constant 0 : index
    %8 = vector.load %arg4[%c0_6, %c0_7] : memref<128x128xf32, #tpu.memory_space<vmem>>, vector<128x128xf32>
    %cst_8 = arith.constant dense<0.000000e+00> : vector<2x128xf32>
    %9 = tpu.matmul %7, %8, %cst_8 {dimension_numbers = #tpu.dot_dimension_numbers<[1], [0], [0], [1], [0, 0, 1, 1], [], []>} : vector<2x128xf32>, vector<128x128xf32>, vector<2x128xf32> -> vector<2x128xf32>
    %c0_9 = arith.constant 0 : index
    %c0_10 = arith.constant 0 : index
    %10 = vector.load %arg5[%c0_9, %c0_10] : memref<1x128xf32, #tpu.memory_space<vmem>>, vector<1x128xf32>
    %11 = vector.broadcast %10 : vector<1x128xf32> to vector<2x128xf32>
    %12 = arith.addf %9, %11 : vector<2x128xf32>
    %cst_11 = arith.constant 0.000000e+00 : f32
    %13 = vector.broadcast %cst_11 : f32 to vector<2x128xf32>
    %14 = arith.maximumf %12, %13 : vector<2x128xf32>
    %c0_12 = arith.constant 0 : index
    %c0_13 = arith.constant 0 : index
    %15 = vector.load %arg6[%c0_12, %c0_13] : memref<128x128xf32, #tpu.memory_space<vmem>>, vector<128x128xf32>
    %cst_14 = arith.constant dense<0.000000e+00> : vector<2x128xf32>
    %16 = tpu.matmul %14, %15, %cst_14 {dimension_numbers = #tpu.dot_dimension_numbers<[1], [0], [0], [1], [0, 0, 1, 1], [], []>} : vector<2x128xf32>, vector<128x128xf32>, vector<2x128xf32> -> vector<2x128xf32>
    %c0_15 = arith.constant 0 : index
    %c0_16 = arith.constant 0 : index
    %17 = vector.load %arg7[%c0_15, %c0_16] : memref<1x128xf32, #tpu.memory_space<vmem>>, vector<1x128xf32>
    %18 = vector.broadcast %17 : vector<1x128xf32> to vector<2x128xf32>
    %19 = arith.addf %16, %18 : vector<2x128xf32>
    %c0_17 = arith.constant 0 : index
    %c0_18 = arith.constant 0 : index
    %20 = vector.load %arg8[%c0_17, %c0_18] : memref<2x128xf32, #tpu.memory_space<vmem>>, vector<2x128xf32>
    tpu.vector_store %arg8[%c0_17, %c0_18], %19 {strides = array<i32>} : memref<2x128xf32, #tpu.memory_space<vmem>>, vector<2x128xf32>,
    return
  }
  func.func @transform_0(%arg0: i32) -> (i32, i32) {
    %c0_i32 = arith.constant 0 : i32
    %c0_i32_0 = arith.constant 0 : i32
    return %arg0, %c0_i32 : i32, i32
  }
  func.func @transform_1(%arg0: i32) -> (i32, i32) {
    %c0_i32 = arith.constant 0 : i32
    %c0_i32_0 = arith.constant 0 : i32
    %c0_i32_1 = arith.constant 0 : i32
    return %c0_i32, %c0_i32_0 : i32, i32
  }
  func.func @transform_2(%arg0: i32) -> (i32, i32) {
    %c0_i32 = arith.constant 0 : i32
    %c0_i32_0 = arith.constant 0 : i32
    %c0_i32_1 = arith.constant 0 : i32
    return %c0_i32, %c0_i32_0 : i32, i32
  }
  func.func @transform_3(%arg0: i32) -> (i32, i32) {
    %c0_i32 = arith.constant 0 : i32
    %c0_i32_0 = arith.constant 0 : i32
    %c0_i32_1 = arith.constant 0 : i32
    return %c0_i32, %c0_i32_0 : i32, i32
  }
  func.func @transform_4(%arg0: i32) -> (i32, i32) {
    %c0_i32 = arith.constant 0 : i32
    %c0_i32_0 = arith.constant 0 : i32
    %c0_i32_1 = arith.constant 0 : i32
    return %c0_i32, %c0_i32_0 : i32, i32
  }
  func.func @transform_5(%arg0: i32) -> (i32, i32) {
    %c0_i32 = arith.constant 0 : i32
    %c0_i32_0 = arith.constant 0 : i32
    %c0_i32_1 = arith.constant 0 : i32
    return %c0_i32, %c0_i32_0 : i32, i32
  }
  func.func @transform_6(%arg0: i32) -> (i32, i32) {
    %c0_i32 = arith.constant 0 : i32
    %c0_i32_0 = arith.constant 0 : i32
    %c0_i32_1 = arith.constant 0 : i32
    return %c0_i32, %c0_i32_0 : i32, i32
  }
  func.func @transform_7(%arg0: i32) -> (i32, i32) {
    %c0_i32 = arith.constant 0 : i32
    %c0_i32_0 = arith.constant 0 : i32
    return %arg0, %c0_i32 : i32, i32
  }
}

</mosaic_0001>

<llo_original>
// kernel: lenet5_forward.3
$region0: #{lenet5_forward.3}
  #allocation0 [shape = 'u32[]', space=smem, size = 0x4, offset = 0x4, fixed_abs, tag = 'smem constant byte address 0x4 - core index']
  #allocation1 [shape = 'u32[144,128]{1,0:T(1,128)}', space=vmem, size = 0x12000, scoped, tag = 'internal scratch']
  %s0 = inlined_call_operand.vmem [shape: f32[2,784,75], index: 0, kind: input, shape index: {}]
  %s1 = inlined_call_operand.vmem [shape: f32[75,128], index: 1, kind: input, shape index: {}]
  %s2 = inlined_call_operand.vmem [shape: f32[1,128], index: 2, kind: input, shape index: {}]
  %s3 = inlined_call_operand.vmem [shape: f32[196,784], index: 3, kind: input, shape index: {}]
  %s4 = inlined_call_operand.vmem [shape: f32[2,196,128], index: 4, kind: output, shape index: {}]
  %s5 = sld [smem:[#allocation0]]
  $region49: #{lenet5_forward.3} parent=0
    _
  %s7 = ssub.s32 1, %s5
  %s8 = scalar_select 0, %s7, %s5
  loop: start=0, step=1, limit=4
  $region2: #{lenet5_forward.3} parent=0 // loop_pre_header
    _
  $region3: #{lenet5_forward.3} parent=0 // loop_header
    %s10 = sphi 0, %s14
    %p11 = scmp.ge.s32.totalorder %s10, 4
    %s20 = sphi 0, %s22
    %s23 = sphi 0, %s20
    %s24 = sphi 0, %s23
    %s40 = sphi 0, %s24
    %s44 = sphi 0, %s44
    %s46 = sphi 0, %s44
    %s47 = sphi 0, %s46
    %s61 = sphi 0, %s47
    %s65 = sphi 0, %s65
    %s67 = sphi 0, %s65
    %s68 = sphi 0, %s67
    %s82 = sphi 0, %s68
    %s86 = sphi 0, %s86
    %s88 = sphi 0, %s86
    %s89 = sphi 0, %s88
    %s103 = sphi 0, %s89
    %s109 = sphi 0, %s111
    %s112 = sphi 0, %s109
    %s113 = sphi 0, %s112
    %s129 = sphi 0, %s113
  $region4: #{lenet5_forward.3} parent=0 // loop_header_branch
    %13 = sbr.rel (%p11) target = $region8
  $region5: #{lenet5_forward.3} parent=0 // loop_body
    %s15 = ssub.s32 %s10, 1
    %s16 = ssub.s32 %s10, 2
    %s17 = sadd.s32 %s10, 1
    %s18 = ssub.s32 %s10, %s17
    %p19 = scmp.eq.s32.totalorder %s18, 0
    %s21 = sadd.s32 %s20, 1
    %s22 = scalar_select %p19, %s20, %s21
    %p25 = pneg %p19
    %p26 = scmp.eq.s32.totalorder %s10, 1
    %p27 = por %p25, %p26
    %p28 = scmp.ne.s32.totalorder %s20, %s23
    %p29 = scmp.eq.s32.totalorder %s10, 0
    %p30 = por %p28, %p29
    %p31 = scmp.ne.s32.totalorder %s20, %s23
    %p32 = scmp.eq.s32.totalorder %s15, 1
    %p33 = por %p31, %p32
    %p34 = scmp.ne.s32.totalorder %s23, %s24
    %p35 = scmp.eq.s32.totalorder %s15, 0
    %p36 = por %p34, %p35
    %p37 = scmp.ne.s32.totalorder %s23, %s24
    %p38 = scmp.eq.s32.totalorder %s16, 1
    %p39 = por %p37, %p38
    %p41 = scmp.ne.s32.totalorder %s24, %s40
    %p42 = scmp.eq.s32.totalorder %s16, 0
    %p43 = por %p41, %p42
    %s45 = sadd.s32 %s44, 1
    %p48 = scmp.eq.s32.totalorder %s10, 1
    %p49 = scmp.ne.s32.totalorder %s44, %s46
    %p50 = scmp.eq.s32.totalorder %s10, 0
    %p51 = por %p49, %p50
    %p52 = scmp.ne.s32.totalorder %s44, %s46
    %p53 = scmp.eq.s32.totalorder %s15, 1
    %p54 = por %p52, %p53
    %p55 = scmp.ne.s32.totalorder %s46, %s47
    %p56 = scmp.eq.s32.totalorder %s15, 0
    %p57 = por %p55, %p56
    %p58 = scmp.ne.s32.totalorder %s46, %s47
    %p59 = scmp.eq.s32.totalorder %s16, 1
    %p60 = por %p58, %p59
    %p62 = scmp.ne.s32.totalorder %s47, %s61
    %p63 = scmp.eq.s32.totalorder %s16, 0
    %p64 = por %p62, %p63
    %s66 = sadd.s32 %s65, 1
    %p69 = scmp.eq.s32.totalorder %s10, 1
    %p70 = scmp.ne.s32.totalorder %s65, %s67
    %p71 = scmp.eq.s32.totalorder %s10, 0
    %p72 = por %p70, %p71
    %p73 = scmp.ne.s32.totalorder %s65, %s67
    %p74 = scmp.eq.s32.totalorder %s15, 1
    %p75 = por %p73, %p74
    %p76 = scmp.ne.s32.totalorder %s67, %s68
    %p77 = scmp.eq.s32.totalorder %s15, 0
    %p78 = por %p76, %p77
    %p79 = scmp.ne.s32.totalorder %s67, %s68
    %p80 = scmp.eq.s32.totalorder %s16, 1
    %p81 = por %p79, %p80
    %p83 = scmp.ne.s32.totalorder %s68, %s82
    %p84 = scmp.eq.s32.totalorder %s16, 0
    %p85 = por %p83, %p84
    %s87 = sadd.s32 %s86, 1
    %p90 = scmp.eq.s32.totalorder %s10, 1
    %p91 = scmp.ne.s32.totalorder %s86, %s88
    %p92 = scmp.eq.s32.totalorder %s10, 0
    %p93 = por %p91, %p92
    %p94 = scmp.ne.s32.totalorder %s86, %s88
    %p95 = scmp.eq.s32.totalorder %s15, 1
    %p96 = por %p94, %p95
    %p97 = scmp.ne.s32.totalorder %s88, %s89
    %p98 = scmp.eq.s32.totalorder %s15, 0
    %p99 = por %p97, %p98
    %p100 = scmp.ne.s32.totalorder %s88, %s89
    %p101 = scmp.eq.s32.totalorder %s16, 1
    %p102 = por %p100, %p101
    %p104 = scmp.ne.s32.totalorder %s89, %s103
    %p105 = scmp.eq.s32.totalorder %s16, 0
    %p106 = por %p104, %p105
    %s107 = ssub.s32 %s10, %s17
    %p108 = scmp.eq.s32.totalorder %s107, 0
    %s110 = sadd.s32 %s109, 1
    %s111 = scalar_select %p108, %s109, %s110
    %p114 = pneg %p108
    %p115 = scmp.eq.s32.totalorder %s10, 1
    %p116 = por %p114, %p115
    %p117 = scmp.ne.s32.totalorder %s109, %s112
    %p118 = scmp.eq.s32.totalorder %s10, 0
    %p119 = por %p117, %p118
    %p120 = scmp.ne.s32.totalorder %s109, %s112
    %p121 = scmp.eq.s32.totalorder %s15, 1
    %p122 = por %p120, %p121
    %p123 = scmp.ne.s32.totalorder %s112, %s113
    %p124 = scmp.eq.s32.totalorder %s15, 0
    %p125 = por %p123, %p124
    %p126 = scmp.ne.s32.totalorder %s112, %s113
    %p127 = scmp.eq.s32.totalorder %s16, 1
    %p128 = por %p126, %p127
    %p130 = scmp.ne.s32.totalorder %s113, %s129
    %p131 = scmp.eq.s32.totalorder %s16, 0
    %p132 = por %p130, %p131
    %p133 = scmp.le.s32.totalorder 1, %s10
    %p134 = scmp.lt.s32.totalorder %s10, 3
    %p135 = pnand %p133, %p134
    %p136 = pneg %p135
    // Predicated region
    $region9: #{lenet5_forward.3} parent=5 // pred_check
      _
    $region10: #{lenet5_forward.3} parent=5 // pred_check_branch
      %138 = sbr.rel (%p135) target = $region12
    $region11: #{lenet5_forward.3} parent=5 // pred_region
      %s139 = ssub.s32 %s10, 1
      // Predicated region
      $region13: #{lenet5_forward.3} parent=11 // pred_check
        %p140 = pneg %p57
      $region14: #{lenet5_forward.3} parent=11 // pred_check_branch
        %142 = sbr.rel (%p140) target = $region16
      $region15: #{lenet5_forward.3} parent=11 // pred_region
        _
      $region16: #{lenet5_forward.3} parent=11 // pred_fallthru
        _
      // Predicated region
      $region17: #{lenet5_forward.3} parent=11 // pred_check
        %p143 = pneg %p78
      $region18: #{lenet5_forward.3} parent=11 // pred_check_branch
        %145 = sbr.rel (%p143) target = $region20
      $region19: #{lenet5_forward.3} parent=11 // pred_region
        _
      $region20: #{lenet5_forward.3} parent=11 // pred_fallthru
        _
      // Predicated region
      $region21: #{lenet5_forward.3} parent=11 // pred_check
        %p146 = pneg %p99
      $region22: #{lenet5_forward.3} parent=11 // pred_check_branch
        %148 = sbr.rel (%p146) target = $region24
      $region23: #{lenet5_forward.3} parent=11 // pred_region
        _
      $region24: #{lenet5_forward.3} parent=11 // pred_fallthru
        _
    $region12: #{lenet5_forward.3} parent=5 // pred_fallthru
      _
    %p149 = scmp.lt.s32.totalorder %s10, 2
    // Predicated region
    $region25: #{lenet5_forward.3} parent=5 // pred_check
      %p150 = pneg %p149
    $region26: #{lenet5_forward.3} parent=5 // pred_check_branch
      %152 = sbr.rel (%p150) target = $region28
    $region27: #{lenet5_forward.3} parent=5 // pred_region
      // Predicated region
      $region29: #{lenet5_forward.3} parent=27 // pred_check
        %p153 = pneg %p30
      $region30: #{lenet5_forward.3} parent=27 // pred_check_branch
        %155 = sbr.rel (%p153) target = $region32
      $region31: #{lenet5_forward.3} parent=27 // pred_region
        %p156 = scmp.lt.s32.totalorder %s10, 1
        %s157 = scalar_select %p156, %s10, 1
        %s158 = smul.addr %s157, 98
        %s159 = smul.addr %s158, 8
        %s160 = scalar_lea.vmem %s0, %s159
      $region32: #{lenet5_forward.3} parent=27 // pred_fallthru
        _
    $region28: #{lenet5_forward.3} parent=5 // pred_fallthru
      _
    %p161 = scmp.le.s32.totalorder 1, %s10
    %p162 = scmp.lt.s32.totalorder %s10, 3
    %p163 = pnand %p161, %p162
    %p164 = pneg %p163
    // Predicated region
    $region33: #{lenet5_forward.3} parent=5 // pred_check
      _
    $region34: #{lenet5_forward.3} parent=5 // pred_check_branch
      %166 = sbr.rel (%p163) target = $region36
    $region35: #{lenet5_forward.3} parent=5 // pred_region
      %s167 = ssub.s32 %s10, 1
      %p168 = scmp.lt.s32.totalorder %s15, 1
      %s169 = scalar_select %p168, %s15, 1
      %s170 = smul.addr %s169, 98
      %s171 = smul.addr %s170, 8
      %s172 = scalar_lea.vmem %s0, %s171
      %p173 = pneg %p36
      %p174 = pneg %p33
      %p175 = pneg %p57
      %p176 = pneg %p54
      %p177 = pneg %p78
      %p178 = pneg %p75
      %p179 = pneg %p99
      %p180 = pneg %p96
      %p181 = pneg %p125
      %p182 = pneg %p122
      %p183 = scmp.lt.s32.totalorder %s15, 1
      %s184 = scalar_select %p183, %s15, 1
      %s185 = smul.addr %s184, 25
      %s186 = smul.addr %s185, 8
      %s187 = scalar_lea.vmem %s4, %s186
      %p188 = scmp.lt.s32.totalorder %s15, 1
      %s189 = scalar_select %p188, %s15, 1
      %s190 = smul.addr %s189, 98
      %s191 = smul.addr %s190, 8
      %s192 = scalar_lea.vmem %s0, %s191
      %p193 = scmp.lt.s32.totalorder %s15, 1
      %s194 = scalar_select %p193, %s15, 1
      %s195 = smul.addr %s194, 25
      %s196 = smul.addr %s195, 8
      %s197 = scalar_lea.vmem %s4, %s196
      %v198 = vld [vmem:[%s192] sm:$0xff]
      %v199 = vld [vmem:[%s192 + $0x8] sm:$0xff]
      %v200 = vld [vmem:[%s192 + $0x10] sm:$0xff]
      %v201 = vld [vmem:[%s192 + $0x18] sm:$0xff]
      %v202 = vld [vmem:[%s192 + $0x20] sm:$0xff]
      %v203 = vld [vmem:[%s192 + $0x28] sm:$0xff]
      %v204 = vld [vmem:[%s192 + $0x30] sm:$0xff]
      %v205 = vld [vmem:[%s192 + $0x38] sm:$0xff]
      %v206 = vld [vmem:[%s192 + $0x40] sm:$0xff]
      %v207 = vld [vmem:[%s192 + $0x48] sm:$0xff]
      %v208 = vld [vmem:[%s192 + $0x50] sm:$0xff]
      %v209 = vld [vmem:[%s192 + $0x58] sm:$0xff]
      %v210 = vld [vmem:[%s192 + $0x60] sm:$0xff]
      %v211 = vld [vmem:[%s192 + $0x68] sm:$0xff]
      %v212 = vld [vmem:[%s192 + $0x70] sm:$0xff]
      %v213 = vld [vmem:[%s192 + $0x78] sm:$0xff]
      %v214 = vld [vmem:[%s192 + $0x80] sm:$0xff]
      %v215 = vld [vmem:[%s192 + $0x88] sm:$0xff]
      %v216 = vld [vmem:[%s192 + $0x90] sm:$0xff]
      %v217 = vld [vmem:[%s192 + $0x98] sm:$0xff]
      %v218 = vld [vmem:[%s192 + $0xa0] sm:$0xff]
      %v219 = vld [vmem:[%s192 + $0xa8] sm:$0xff]
      %v220 = vld [vmem:[%s192 + $0xb0] sm:$0xff]
      %v221 = vld [vmem:[%s192 + $0xb8] sm:$0xff]
      %v222 = vld [vmem:[%s192 + $0xc0] sm:$0xff]
      %v223 = vld [vmem:[%s192 + $0xc8] sm:$0xff]
      %v224 = vld [vmem:[%s192 + $0xd0] sm:$0xff]
      %v225 = vld [vmem:[%s192 + $0xd8] sm:$0xff]
      %v226 = vld [vmem:[%s192 + $0xe0] sm:$0xff]
      %v227 = vld [vmem:[%s192 + $0xe8] sm:$0xff]
      %v228 = vld [vmem:[%s192 + $0xf0] sm:$0xff]
      %v229 = vld [vmem:[%s192 + $0xf8] sm:$0xff]
      %v230 = vld [vmem:[%s192 + $0x100] sm:$0xff]
      %v231 = vld [vmem:[%s192 + $0x108] sm:$0xff]
      %v232 = vld [vmem:[%s192 + $0x110] sm:$0xff]
      %v233 = vld [vmem:[%s192 + $0x118] sm:$0xff]
      %v234 = vld [vmem:[%s192 + $0x120] sm:$0xff]
      %v235 = vld [vmem:[%s192 + $0x128] sm:$0xff]
      %v236 = vld [vmem:[%s192 + $0x130] sm:$0xff]
      %v237 = vld [vmem:[%s192 + $0x138] sm:$0xff]
      %v238 = vld [vmem:[%s192 + $0x140] sm:$0xff]
      %v239 = vld [vmem:[%s192 + $0x148] sm:$0xff]
      %v240 = vld [vmem:[%s192 + $0x150] sm:$0xff]
      %v241 = vld [vmem:[%s192 + $0x158] sm:$0xff]
      %v242 = vld [vmem:[%s192 + $0x160] sm:$0xff]
      %v243 = vld [vmem:[%s192 + $0x168] sm:$0xff]
      %v244 = vld [vmem:[%s192 + $0x170] sm:$0xff]
      %v245 = vld [vmem:[%s192 + $0x178] sm:$0xff]
      %v246 = vld [vmem:[%s192 + $0x180] sm:$0xff]
      %v247 = vld [vmem:[%s192 + $0x188] sm:$0xff]
      %v248 = vld [vmem:[%s192 + $0x190] sm:$0xff]
      %v249 = vld [vmem:[%s192 + $0x198] sm:$0xff]
      %v250 = vld [vmem:[%s192 + $0x1a0] sm:$0xff]
      %v251 = vld [vmem:[%s192 + $0x1a8] sm:$0xff]
      %v252 = vld [vmem:[%s192 + $0x1b0] sm:$0xff]
      %v253 = vld [vmem:[%s192 + $0x1b8] sm:$0xff]
      %v254 = vld [vmem:[%s192 + $0x1c0] sm:$0xff]
      %v255 = vld [vmem:[%s192 + $0x1c8] sm:$0xff]
      %v256 = vld [vmem:[%s192 + $0x1d0] sm:$0xff]
      %v257 = vld [vmem:[%s192 + $0x1d8] sm:$0xff]
      %v258 = vld [vmem:[%s192 + $0x1e0] sm:$0xff]
      %v259 = vld [vmem:[%s192 + $0x1e8] sm:$0xff]
      %v260 = vld [vmem:[%s192 + $0x1f0] sm:$0xff]
      %v261 = vld [vmem:[%s192 + $0x1f8] sm:$0xff]
      %v262 = vld [vmem:[%s192 + $0x200] sm:$0xff]
      %v263 = vld [vmem:[%s192 + $0x208] sm:$0xff]
      %v264 = vld [vmem:[%s192 + $0x210] sm:$0xff]
      %v265 = vld [vmem:[%s192 + $0x218] sm:$0xff]
      %v266 = vld [vmem:[%s192 + $0x220] sm:$0xff]
      %v267 = vld [vmem:[%s192 + $0x228] sm:$0xff]
      %v268 = vld [vmem:[%s192 + $0x230] sm:$0xff]
      %v269 = vld [vmem:[%s192 + $0x238] sm:$0xff]
      %v270 = vld [vmem:[%s192 + $0x240] sm:$0xff]
      %v271 = vld [vmem:[%s192 + $0x248] sm:$0xff]
      %v272 = vld [vmem:[%s192 + $0x250] sm:$0xff]
      %v273 = vld [vmem:[%s192 + $0x258] sm:$0xff]
      %v274 = vld [vmem:[%s192 + $0x260] sm:$0xff]
      %v275 = vld [vmem:[%s192 + $0x268] sm:$0xff]
      %v276 = vld [vmem:[%s192 + $0x270] sm:$0xff]
      %v277 = vld [vmem:[%s192 + $0x278] sm:$0xff]
      %v278 = vld [vmem:[%s192 + $0x280] sm:$0xff]
      %v279 = vld [vmem:[%s192 + $0x288] sm:$0xff]
      %v280 = vld [vmem:[%s192 + $0x290] sm:$0xff]
      %v281 = vld [vmem:[%s192 + $0x298] sm:$0xff]
      %v282 = vld [vmem:[%s192 + $0x2a0] sm:$0xff]
      %v283 = vld [vmem:[%s192 + $0x2a8] sm:$0xff]
      %v284 = vld [vmem:[%s192 + $0x2b0] sm:$0xff]
      %v285 = vld [vmem:[%s192 + $0x2b8] sm:$0xff]
      %v286 = vld [vmem:[%s192 + $0x2c0] sm:$0xff]
      %v287 = vld [vmem:[%s192 + $0x2c8] sm:$0xff]
      %v288 = vld [vmem:[%s192 + $0x2d0] sm:$0xff]
      %v289 = vld [vmem:[%s192 + $0x2d8] sm:$0xff]
      %v290 = vld [vmem:[%s192 + $0x2e0] sm:$0xff]
      %v291 = vld [vmem:[%s192 + $0x2e8] sm:$0xff]
      %v292 = vld [vmem:[%s192 + $0x2f0] sm:$0xff]
      %v293 = vld [vmem:[%s192 + $0x2f8] sm:$0xff]
      %v294 = vld [vmem:[%s192 + $0x300] sm:$0xff]
      %v295 = vld [vmem:[%s192 + $0x308] sm:$0xff]
      %v296 = vld [vmem:[%s1] sm:$0xff]
      %v297 = vld [vmem:[%s1 + $0x8] sm:$0xff]
      %v298 = vld [vmem:[%s1 + $0x10] sm:$0xff]
      %v299 = vld [vmem:[%s1 + $0x18] sm:$0xff]
      %v300 = vld [vmem:[%s1 + $0x20] sm:$0xff]
      %v301 = vld [vmem:[%s1 + $0x28] sm:$0xff]
      %v302 = vld [vmem:[%s1 + $0x30] sm:$0xff]
      %v303 = vld [vmem:[%s1 + $0x38] sm:$0xff]
      %v304 = vld [vmem:[%s1 + $0x40] sm:$0xff]
      %v305 = vld [vmem:[%s1 + $0x48] sm:$0x7]
      %v306 = vld [vmem:[%s2] sm:$0x1]
      %v308 = vlaneseq
      %v309 = vshrl.u32 %v308, 7
      %v310 = vsub.s32 0, %v309
      %v311 = vrot.slane %v306, %v310
      %vm313 = vcmask 613376
      %v315 = vsel %vm313, %v198, 0
      %v318 = vsel %vm313, %v199, 0
      %v321 = vsel %vm313, %v200, 0
      %v324 = vsel %vm313, %v201, 0
      %v327 = vsel %vm313, %v202, 0
      %v330 = vsel %vm313, %v203, 0
      %v333 = vsel %vm313, %v204, 0
      %v336 = vsel %vm313, %v205, 0
      %v339 = vsel %vm313, %v206, 0
      %v342 = vsel %vm313, %v207, 0
      %v345 = vsel %vm313, %v208, 0
      %v348 = vsel %vm313, %v209, 0
      %v351 = vsel %vm313, %v210, 0
      %v354 = vsel %vm313, %v211, 0
      %v357 = vsel %vm313, %v212, 0
      %v360 = vsel %vm313, %v213, 0
      %v363 = vsel %vm313, %v214, 0
      %v366 = vsel %vm313, %v215, 0
      %v369 = vsel %vm313, %v216, 0
      %v372 = vsel %vm313, %v217, 0
      %v375 = vsel %vm313, %v218, 0
      %v378 = vsel %vm313, %v219, 0
      %v381 = vsel %vm313, %v220, 0
      %v384 = vsel %vm313, %v221, 0
      %v387 = vsel %vm313, %v222, 0
      %v390 = vsel %vm313, %v223, 0
      %v393 = vsel %vm313, %v224, 0
      %v396 = vsel %vm313, %v225, 0
      %v399 = vsel %vm313, %v226, 0
      %v402 = vsel %vm313, %v227, 0
      %v405 = vsel %vm313, %v228, 0
      %v408 = vsel %vm313, %v229, 0
      %v411 = vsel %vm313, %v230, 0
      %v414 = vsel %vm313, %v231, 0
      %v417 = vsel %vm313, %v232, 0
      %v420 = vsel %vm313, %v233, 0
      %v423 = vsel %vm313, %v234, 0
      %v426 = vsel %vm313, %v235, 0
      %v429 = vsel %vm313, %v236, 0
      %v432 = vsel %vm313, %v237, 0
      %v435 = vsel %vm313, %v238, 0
      %v438 = vsel %vm313, %v239, 0
      %v441 = vsel %vm313, %v240, 0
      %v444 = vsel %vm313, %v241, 0
      %v447 = vsel %vm313, %v242, 0
      %v450 = vsel %vm313, %v243, 0
      %v453 = vsel %vm313, %v244, 0
      %v456 = vsel %vm313, %v245, 0
      %v459 = vsel %vm313, %v246, 0
      %v462 = vsel %vm313, %v247, 0
      %v465 = vsel %vm313, %v248, 0
      %v468 = vsel %vm313, %v249, 0
      %v471 = vsel %vm313, %v250, 0
      %v474 = vsel %vm313, %v251, 0
      %v477 = vsel %vm313, %v252, 0
      %v480 = vsel %vm313, %v253, 0
      %v483 = vsel %vm313, %v254, 0
      %v486 = vsel %vm313, %v255, 0
      %v489 = vsel %vm313, %v256, 0
      %v492 = vsel %vm313, %v257, 0
      %v495 = vsel %vm313, %v258, 0
      %v498 = vsel %vm313, %v259, 0
      %v501 = vsel %vm313, %v260, 0
      %v504 = vsel %vm313, %v261, 0
      %v507 = vsel %vm313, %v262, 0
      %v510 = vsel %vm313, %v263, 0
      %v513 = vsel %vm313, %v264, 0
      %v516 = vsel %vm313, %v265, 0
      %v519 = vsel %vm313, %v266, 0
      %v522 = vsel %vm313, %v267, 0
      %v525 = vsel %vm313, %v268, 0
      %v528 = vsel %vm313, %v269, 0
      %v531 = vsel %vm313, %v270, 0
      %v534 = vsel %vm313, %v271, 0
      %v537 = vsel %vm313, %v272, 0
      %v540 = vsel %vm313, %v273, 0
      %v543 = vsel %vm313, %v274, 0
      %v546 = vsel %vm313, %v275, 0
      %v549 = vsel %vm313, %v276, 0
      %v552 = vsel %vm313, %v277, 0
      %v555 = vsel %vm313, %v278, 0
      %v558 = vsel %vm313, %v279, 0
      %v561 = vsel %vm313, %v280, 0
      %v564 = vsel %vm313, %v281, 0
      %v567 = vsel %vm313, %v282, 0
      %v570 = vsel %vm313, %v283, 0
      %v573 = vsel %vm313, %v284, 0
      %v576 = vsel %vm313, %v285, 0
      %v579 = vsel %vm313, %v286, 0
      %v582 = vsel %vm313, %v287, 0
      %v585 = vsel %vm313, %v288, 0
      %v588 = vsel %vm313, %v289, 0
      %v591 = vsel %vm313, %v290, 0
      %v594 = vsel %vm313, %v291, 0
      %v597 = vsel %vm313, %v292, 0
      %v600 = vsel %vm313, %v293, 0
      %v603 = vsel %vm313, %v294, 0
      %v606 = vsel %vm313, %v295, 0
      %vm608 = vcmask 1042432
      %v610 = vsel %vm608, %v305, 0
      %612 = vmatprep.subr.mxu0 0.0
      %613 = vmatpush1.msra.mxu0 0.0
      %614 = vmatprep.subr.mxu0 0.0
      %615 = vmatpush1.msra.mxu0 0.0
      %616 = vmatprep.subr.mxu0 0.0
      %617 = vmatpush1.msra.mxu0 0.0
      %618 = vmatprep.subr.mxu0 0.0
      %619 = vmatpush1.msra.mxu0 0.0
      %620 = vmatprep.subr.mxu0 0.0
      %621 = vmatpush1.msra.mxu0 0.0
      %622 = vmatprep.subr.mxu0 0.0
      %623 = vmatpush1.msra.mxu0 0.0
      %624 = vmatprep.subr.mxu0 0.0
      %625 = vmatpush1.msra.mxu0 %v610
      %626 = vmatprep.subr.mxu0 0.0
      %627 = vmatpush1.msra.mxu0 %v304
      %628 = vmatprep.subr.mxu0 0.0
      %629 = vmatpush1.msra.mxu0 %v303
      %630 = vmatprep.subr.mxu0 0.0
      %631 = vmatpush1.msra.mxu0 %v302
      %632 = vmatprep.subr.mxu0 0.0
      %633 = vmatpush1.msra.mxu0 %v301
      %634 = vmatprep.subr.mxu0 0.0
      %635 = vmatpush1.msra.mxu0 %v300
      %636 = vmatprep.subr.mxu0 0.0
      %637 = vmatpush1.msra.mxu0 %v299
      %638 = vmatprep.subr.mxu0 0.0
      %639 = vmatpush1.msra.mxu0 %v298
      %640 = vmatprep.subr.mxu0 0.0
      %641 = vmatpush1.msra.mxu0 %v297
      %642 = vmatprep.subr.mxu0 0.0
      %643 = vmatpush1.msra.mxu0 %v296
      %644 = vmatprep.subr.mxu0 0.0
      %645 = vmatpush2.msra.mxu0 0.0
      %646 = vmatprep.subr.mxu0 0.0
      %647 = vmatpush2.msra.mxu0 0.0
      %648 = vmatprep.subr.mxu0 0.0
      %649 = vmatpush2.msra.mxu0 0.0
      %650 = vmatprep.subr.mxu0 0.0
      %651 = vmatpush2.msra.mxu0 0.0
      %652 = vmatprep.subr.mxu0 0.0
      %653 = vmatpush2.msra.mxu0 0.0
      %654 = vmatprep.subr.mxu0 0.0
      %655 = vmatpush2.msra.mxu0 0.0
      %656 = vmatprep.subr.mxu0 0.0
      %657 = vmatpush2.msra.mxu0 0.0
      %658 = vmatprep.subr.mxu0 0.0
      %659 = vmatpush2.msra.mxu0 0.0
      %660 = vmatprep.subr.mxu0 0.0
      %661 = vmatpush2.msra.mxu0 0.0
      %662 = vmatprep.subr.mxu0 0.0
      %663 = vmatpush2.msra.mxu0 0.0
      %664 = vmatprep.subr.mxu0 0.0
      %665 = vmatpush2.msra.mxu0 0.0
      %666 = vmatprep.subr.mxu0 0.0
      %667 = vmatpush2.msra.mxu0 0.0
      %668 = vmatprep.subr.mxu0 0.0
      %669 = vmatpush2.msra.mxu0 0.0
      %670 = vmatprep.subr.mxu0 0.0
      %671 = vmatpush2.msra.mxu0 0.0
      %672 = vmatprep.subr.mxu0 0.0
      %673 = vmatpush2.msra.mxu0 0.0
      %674 = vmatprep.subr.mxu0 0.0
      %675 = vmatpush2.msra.mxu0 0.0
      %676 = vmatprep.mubr.f32.mxu0 0.0
      %677 = vmatmul.mubr.f32.gmra.mxu0 %v315
      %v678 = vpop.f32.mrf.mxu0
      %v679 = vadd.f32 %v311, %v678
      %v680 = vpop.f32.mrf.mxu0
      %681 = vmatprep.mubr.f32.mxu0 0.0
      %682 = vmatmul.mubr.f32.gmra.mxu0 %v318
      %v683 = vpop.f32.mrf.mxu0
      %v684 = vadd.f32 %v311, %v683
      %v685 = vpop.f32.mrf.mxu0
      %686 = vmatprep.mubr.f32.mxu0 0.0
      %687 = vmatmul.mubr.f32.gmra.mxu0 %v321
      %v688 = vpop.f32.mrf.mxu0
      %v689 = vadd.f32 %v311, %v688
      %v690 = vpop.f32.mrf.mxu0
      %691 = vmatprep.mubr.f32.mxu0 0.0
      %692 = vmatmul.mubr.f32.gmra.mxu0 %v324
      %v693 = vpop.f32.mrf.mxu0
      %v694 = vadd.f32 %v311, %v693
      %v695 = vpop.f32.mrf.mxu0
      %696 = vmatprep.mubr.f32.mxu0 0.0
      %697 = vmatmul.mubr.f32.gmra.mxu0 %v327
      %v698 = vpop.f32.mrf.mxu0
      %v699 = vadd.f32 %v311, %v698
      %v700 = vpop.f32.mrf.mxu0
      %701 = vmatprep.mubr.f32.mxu0 0.0
      %702 = vmatmul.mubr.f32.gmra.mxu0 %v330
      %v703 = vpop.f32.mrf.mxu0
      %v704 = vadd.f32 %v311, %v703
      %v705 = vpop.f32.mrf.mxu0
      %706 = vmatprep.mubr.f32.mxu0 0.0
      %707 = vmatmul.mubr.f32.gmra.mxu0 %v333
      %v708 = vpop.f32.mrf.mxu0
      %v709 = vadd.f32 %v311, %v708
      %v710 = vpop.f32.mrf.mxu0
      %711 = vmatprep.mubr.f32.mxu0 0.0
      %712 = vmatmul.mubr.f32.gmra.mxu0 %v336
      %v713 = vpop.f32.mrf.mxu0
      %v714 = vadd.f32 %v311, %v713
      %v715 = vpop.f32.mrf.mxu0
      %716 = vmatprep.mubr.f32.mxu0 0.0
      %717 = vmatmul.mubr.f32.gmra.mxu0 %v339
      %v718 = vpop.f32.mrf.mxu0
      %v719 = vadd.f32 %v311, %v718
      %v720 = vpop.f32.mrf.mxu0
      %721 = vmatprep.mubr.f32.mxu0 0.0
      %722 = vmatmul.mubr.f32.gmra.mxu0 %v342
      %v723 = vpop.f32.mrf.mxu0
      %v724 = vadd.f32 %v311, %v723
      %v725 = vpop.f32.mrf.mxu0
      %726 = vmatprep.mubr.f32.mxu0 0.0
      %727 = vmatmul.mubr.f32.gmra.mxu0 %v345
      %v728 = vpop.f32.mrf.mxu0
      %v729 = vadd.f32 %v311, %v728
      %v730 = vpop.f32.mrf.mxu0
      %731 = vmatprep.mubr.f32.mxu0 0.0
      %732 = vmatmul.mubr.f32.gmra.mxu0 %v348
      %v733 = vpop.f32.mrf.mxu0
      %v734 = vadd.f32 %v311, %v733
      %v735 = vpop.f32.mrf.mxu0
      %736 = vmatprep.mubr.f32.mxu0 0.0
      %737 = vmatmul.mubr.f32.gmra.mxu0 %v351
      %v738 = vpop.f32.mrf.mxu0
      %v739 = vadd.f32 %v311, %v738
      %v740 = vpop.f32.mrf.mxu0
      %741 = vmatprep.mubr.f32.mxu0 0.0
      %742 = vmatmul.mubr.f32.gmra.mxu0 %v354
      %v743 = vpop.f32.mrf.mxu0
      %v744 = vadd.f32 %v311, %v743
      %v745 = vpop.f32.mrf.mxu0
      %746 = vmatprep.mubr.f32.mxu0 0.0
      %747 = vmatmul.mubr.f32.gmra.mxu0 %v357
      %v748 = vpop.f32.mrf.mxu0
      %v749 = vadd.f32 %v311, %v748
      %v750 = vpop.f32.mrf.mxu0
      %751 = vmatprep.mubr.f32.mxu0 0.0
      %752 = vmatmul.mubr.f32.gmra.mxu0 %v360
      %v753 = vpop.f32.mrf.mxu0
      %v754 = vadd.f32 %v311, %v753
      %v755 = vpop.f32.mrf.mxu0
      %756 = vmatprep.mubr.f32.mxu0 0.0
      %757 = vmatmul.mubr.f32.gmra.mxu0 %v363
      %v758 = vpop.f32.mrf.mxu0
      %v759 = vadd.f32 %v311, %v758
      %v760 = vpop.f32.mrf.mxu0
      %761 = vmatprep.mubr.f32.mxu0 0.0
      %762 = vmatmul.mubr.f32.gmra.mxu0 %v366
      %v763 = vpop.f32.mrf.mxu0
      %v764 = vadd.f32 %v311, %v763
      %v765 = vpop.f32.mrf.mxu0
      %766 = vmatprep.mubr.f32.mxu0 0.0
      %767 = vmatmul.mubr.f32.gmra.mxu0 %v369
      %v768 = vpop.f32.mrf.mxu0
      %v769 = vadd.f32 %v311, %v768
      %v770 = vpop.f32.mrf.mxu0
      %771 = vmatprep.mubr.f32.mxu0 0.0
      %772 = vmatmul.mubr.f32.gmra.mxu0 %v372
      %v773 = vpop.f32.mrf.mxu0
      %v774 = vadd.f32 %v311, %v773
      %v775 = vpop.f32.mrf.mxu0
      %776 = vmatprep.mubr.f32.mxu0 0.0
      %777 = vmatmul.mubr.f32.gmra.mxu0 %v375
      %v778 = vpop.f32.mrf.mxu0
      %v779 = vadd.f32 %v311, %v778
      %v780 = vpop.f32.mrf.mxu0
      %781 = vmatprep.mubr.f32.mxu0 0.0
      %782 = vmatmul.mubr.f32.gmra.mxu0 %v378
      %v783 = vpop.f32.mrf.mxu0
      %v784 = vadd.f32 %v311, %v783
      %v785 = vpop.f32.mrf.mxu0
      %786 = vmatprep.mubr.f32.mxu0 0.0
      %787 = vmatmul.mubr.f32.gmra.mxu0 %v381
      %v788 = vpop.f32.mrf.mxu0
      %v789 = vadd.f32 %v311, %v788
      %v790 = vpop.f32.mrf.mxu0
      %791 = vmatprep.mubr.f32.mxu0 0.0
      %792 = vmatmul.mubr.f32.gmra.mxu0 %v384
      %v793 = vpop.f32.mrf.mxu0
      %v794 = vadd.f32 %v311, %v793
      %v795 = vpop.f32.mrf.mxu0
      %796 = vmatprep.mubr.f32.mxu0 0.0
      %797 = vmatmul.mubr.f32.gmra.mxu0 %v387
      %v798 = vpop.f32.mrf.mxu0
      %v799 = vadd.f32 %v311, %v798
      %v800 = vpop.f32.mrf.mxu0
      %801 = vmatprep.mubr.f32.mxu0 0.0
      %802 = vmatmul.mubr.f32.gmra.mxu0 %v390
      %v803 = vpop.f32.mrf.mxu0
      %v804 = vadd.f32 %v311, %v803
      %v805 = vpop.f32.mrf.mxu0
      %806 = vmatprep.mubr.f32.mxu0 0.0
      %807 = vmatmul.mubr.f32.gmra.mxu0 %v393
      %v808 = vpop.f32.mrf.mxu0
      %v809 = vadd.f32 %v311, %v808
      %v810 = vpop.f32.mrf.mxu0
      %811 = vmatprep.mubr.f32.mxu0 0.0
      %812 = vmatmul.mubr.f32.gmra.mxu0 %v396
      %v813 = vpop.f32.mrf.mxu0
      %v814 = vadd.f32 %v311, %v813
      %v815 = vpop.f32.mrf.mxu0
      %816 = vmatprep.mubr.f32.mxu0 0.0
      %817 = vmatmul.mubr.f32.gmra.mxu0 %v399
      %v818 = vpop.f32.mrf.mxu0
      %v819 = vadd.f32 %v311, %v818
      %v820 = vpop.f32.mrf.mxu0
      %821 = vmatprep.mubr.f32.mxu0 0.0
      %822 = vmatmul.mubr.f32.gmra.mxu0 %v402
      %v823 = vpop.f32.mrf.mxu0
      %v824 = vadd.f32 %v311, %v823
      %v825 = vpop.f32.mrf.mxu0
      %826 = vmatprep.mubr.f32.mxu0 0.0
      %827 = vmatmul.mubr.f32.gmra.mxu0 %v405
      %v828 = vpop.f32.mrf.mxu0
      %v829 = vadd.f32 %v311, %v828
      %v830 = vpop.f32.mrf.mxu0
      %831 = vmatprep.mubr.f32.mxu0 0.0
      %832 = vmatmul.mubr.f32.gmra.mxu0 %v408
      %v833 = vpop.f32.mrf.mxu0
      %v834 = vadd.f32 %v311, %v833
      %v835 = vpop.f32.mrf.mxu0
      %836 = vmatprep.mubr.f32.mxu0 0.0
      %837 = vmatmul.mubr.f32.gmra.mxu0 %v411
      %v838 = vpop.f32.mrf.mxu0
      %v839 = vadd.f32 %v311, %v838
      %v840 = vpop.f32.mrf.mxu0
      %841 = vmatprep.mubr.f32.mxu0 0.0
      %842 = vmatmul.mubr.f32.gmra.mxu0 %v414
      %v843 = vpop.f32.mrf.mxu0
      %v844 = vadd.f32 %v311, %v843
      %v845 = vpop.f32.mrf.mxu0
      %846 = vmatprep.mubr.f32.mxu0 0.0
      %847 = vmatmul.mubr.f32.gmra.mxu0 %v417
      %v848 = vpop.f32.mrf.mxu0
      %v849 = vadd.f32 %v311, %v848
      %v850 = vpop.f32.mrf.mxu0
      %851 = vmatprep.mubr.f32.mxu0 0.0
      %852 = vmatmul.mubr.f32.gmra.mxu0 %v420
      %v853 = vpop.f32.mrf.mxu0
      %v854 = vadd.f32 %v311, %v853
      %v855 = vpop.f32.mrf.mxu0
      %856 = vmatprep.mubr.f32.mxu0 0.0
      %857 = vmatmul.mubr.f32.gmra.mxu0 %v423
      %v858 = vpop.f32.mrf.mxu0
      %v859 = vadd.f32 %v311, %v858
      %v860 = vpop.f32.mrf.mxu0
      %861 = vmatprep.mubr.f32.mxu0 0.0
      %862 = vmatmul.mubr.f32.gmra.mxu0 %v426
      %v863 = vpop.f32.mrf.mxu0
      %v864 = vadd.f32 %v311, %v863
      %v865 = vpop.f32.mrf.mxu0
      %866 = vmatprep.mubr.f32.mxu0 0.0
      %867 = vmatmul.mubr.f32.gmra.mxu0 %v429
      %v868 = vpop.f32.mrf.mxu0
      %v869 = vadd.f32 %v311, %v868
      %v870 = vpop.f32.mrf.mxu0
      %871 = vmatprep.mubr.f32.mxu0 0.0
      %872 = vmatmul.mubr.f32.gmra.mxu0 %v432
      %v873 = vpop.f32.mrf.mxu0
      %v874 = vadd.f32 %v311, %v873
      %v875 = vpop.f32.mrf.mxu0
      %876 = vmatprep.mubr.f32.mxu0 0.0
      %877 = vmatmul.mubr.f32.gmra.mxu0 %v435
      %v878 = vpop.f32.mrf.mxu0
      %v879 = vadd.f32 %v311, %v878
      %v880 = vpop.f32.mrf.mxu0
      %881 = vmatprep.mubr.f32.mxu0 0.0
      %882 = vmatmul.mubr.f32.gmra.mxu0 %v438
      %v883 = vpop.f32.mrf.mxu0
      %v884 = vadd.f32 %v311, %v883
      %v885 = vpop.f32.mrf.mxu0
      %886 = vmatprep.mubr.f32.mxu0 0.0
      %887 = vmatmul.mubr.f32.gmra.mxu0 %v441
      %v888 = vpop.f32.mrf.mxu0
      %v889 = vadd.f32 %v311, %v888
      %v890 = vpop.f32.mrf.mxu0
      %891 = vmatprep.mubr.f32.mxu0 0.0
      %892 = vmatmul.mubr.f32.gmra.mxu0 %v444
      %v893 = vpop.f32.mrf.mxu0
      %v894 = vadd.f32 %v311, %v893
      %v895 = vpop.f32.mrf.mxu0
      %896 = vmatprep.mubr.f32.mxu0 0.0
      %897 = vmatmul.mubr.f32.gmra.mxu0 %v447
      %v898 = vpop.f32.mrf.mxu0
      %v899 = vadd.f32 %v311, %v898
      %v900 = vpop.f32.mrf.mxu0
      %901 = vmatprep.mubr.f32.mxu0 0.0
      %902 = vmatmul.mubr.f32.gmra.mxu0 %v450
      %v903 = vpop.f32.mrf.mxu0
      %v904 = vadd.f32 %v311, %v903
      %v905 = vpop.f32.mrf.mxu0
      %906 = vmatprep.mubr.f32.mxu0 0.0
      %907 = vmatmul.mubr.f32.gmra.mxu0 %v453
      %v908 = vpop.f32.mrf.mxu0
      %v909 = vadd.f32 %v311, %v908
      %v910 = vpop.f32.mrf.mxu0
      %911 = vmatprep.mubr.f32.mxu0 0.0
      %912 = vmatmul.mubr.f32.gmra.mxu0 %v456
      %v913 = vpop.f32.mrf.mxu0
      %v914 = vadd.f32 %v311, %v913
      %v915 = vpop.f32.mrf.mxu0
      %916 = vmatprep.mubr.f32.mxu0 0.0
      %917 = vmatmul.mubr.f32.gmra.mxu0 %v459
      %v918 = vpop.f32.mrf.mxu0
      %v919 = vadd.f32 %v311, %v918
      %v920 = vpop.f32.mrf.mxu0
      %921 = vmatprep.mubr.f32.mxu0 0.0
      %922 = vmatmul.mubr.f32.gmra.mxu0 %v462
      %v923 = vpop.f32.mrf.mxu0
      %v924 = vadd.f32 %v311, %v923
      %v925 = vpop.f32.mrf.mxu0
      %926 = vmatprep.mubr.f32.mxu0 0.0
      %927 = vmatmul.mubr.f32.gmra.mxu0 %v465
      %v928 = vpop.f32.mrf.mxu0
      %v929 = vadd.f32 %v311, %v928
      %v930 = vpop.f32.mrf.mxu0
      %931 = vmatprep.mubr.f32.mxu0 0.0
      %932 = vmatmul.mubr.f32.gmra.mxu0 %v468
      %v933 = vpop.f32.mrf.mxu0
      %v934 = vadd.f32 %v311, %v933
      %v935 = vpop.f32.mrf.mxu0
      %936 = vmatprep.mubr.f32.mxu0 0.0
      %937 = vmatmul.mubr.f32.gmra.mxu0 %v471
      %v938 = vpop.f32.mrf.mxu0
      %v939 = vadd.f32 %v311, %v938
      %v940 = vpop.f32.mrf.mxu0
      %941 = vmatprep.mubr.f32.mxu0 0.0
      %942 = vmatmul.mubr.f32.gmra.mxu0 %v474
      %v943 = vpop.f32.mrf.mxu0
      %v944 = vadd.f32 %v311, %v943
      %v945 = vpop.f32.mrf.mxu0
      %946 = vmatprep.mubr.f32.mxu0 0.0
      %947 = vmatmul.mubr.f32.gmra.mxu0 %v477
      %v948 = vpop.f32.mrf.mxu0
      %v949 = vadd.f32 %v311, %v948
      %v950 = vpop.f32.mrf.mxu0
      %951 = vmatprep.mubr.f32.mxu0 0.0
      %952 = vmatmul.mubr.f32.gmra.mxu0 %v480
      %v953 = vpop.f32.mrf.mxu0
      %v954 = vadd.f32 %v311, %v953
      %v955 = vpop.f32.mrf.mxu0
      %956 = vmatprep.mubr.f32.mxu0 0.0
      %957 = vmatmul.mubr.f32.gmra.mxu0 %v483
      %v958 = vpop.f32.mrf.mxu0
      %v959 = vadd.f32 %v311, %v958
      %v960 = vpop.f32.mrf.mxu0
      %961 = vmatprep.mubr.f32.mxu0 0.0
      %962 = vmatmul.mubr.f32.gmra.mxu0 %v486
      %v963 = vpop.f32.mrf.mxu0
      %v964 = vadd.f32 %v311, %v963
      %v965 = vpop.f32.mrf.mxu0
      %966 = vmatprep.mubr.f32.mxu0 0.0
      %967 = vmatmul.mubr.f32.gmra.mxu0 %v489
      %v968 = vpop.f32.mrf.mxu0
      %v969 = vadd.f32 %v311, %v968
      %v970 = vpop.f32.mrf.mxu0
      %971 = vmatprep.mubr.f32.mxu0 0.0
      %972 = vmatmul.mubr.f32.gmra.mxu0 %v492
      %v973 = vpop.f32.mrf.mxu0
      %v974 = vadd.f32 %v311, %v973
      %v975 = vpop.f32.mrf.mxu0
      %976 = vmatprep.mubr.f32.mxu0 0.0
      %977 = vmatmul.mubr.f32.gmra.mxu0 %v495
      %v978 = vpop.f32.mrf.mxu0
      %v979 = vadd.f32 %v311, %v978
      %v980 = vpop.f32.mrf.mxu0
      %981 = vmatprep.mubr.f32.mxu0 0.0
      %982 = vmatmul.mubr.f32.gmra.mxu0 %v498
      %v983 = vpop.f32.mrf.mxu0
      %v984 = vadd.f32 %v311, %v983
      %v985 = vpop.f32.mrf.mxu0
      %986 = vmatprep.mubr.f32.mxu0 0.0
      %987 = vmatmul.mubr.f32.gmra.mxu0 %v501
      %v988 = vpop.f32.mrf.mxu0
      %v989 = vadd.f32 %v311, %v988
      %v990 = vpop.f32.mrf.mxu0
      %991 = vmatprep.mubr.f32.mxu0 0.0
      %992 = vmatmul.mubr.f32.gmra.mxu0 %v504
      %v993 = vpop.f32.mrf.mxu0
      %v994 = vadd.f32 %v311, %v993
      %v995 = vpop.f32.mrf.mxu0
      %996 = vmatprep.mubr.f32.mxu0 0.0
      %997 = vmatmul.mubr.f32.gmra.mxu0 %v507
      %v998 = vpop.f32.mrf.mxu0
      %v999 = vadd.f32 %v311, %v998
      %v1000 = vpop.f32.mrf.mxu0
      %1001 = vmatprep.mubr.f32.mxu0 0.0
      %1002 = vmatmul.mubr.f32.gmra.mxu0 %v510
      %v1003 = vpop.f32.mrf.mxu0
      %v1004 = vadd.f32 %v311, %v1003
      %v1005 = vpop.f32.mrf.mxu0
      %1006 = vmatprep.mubr.f32.mxu0 0.0
      %1007 = vmatmul.mubr.f32.gmra.mxu0 %v513
      %v1008 = vpop.f32.mrf.mxu0
      %v1009 = vadd.f32 %v311, %v1008
      %v1010 = vpop.f32.mrf.mxu0
      %1011 = vmatprep.mubr.f32.mxu0 0.0
      %1012 = vmatmul.mubr.f32.gmra.mxu0 %v516
      %v1013 = vpop.f32.mrf.mxu0
      %v1014 = vadd.f32 %v311, %v1013
      %v1015 = vpop.f32.mrf.mxu0
      %1016 = vmatprep.mubr.f32.mxu0 0.0
      %1017 = vmatmul.mubr.f32.gmra.mxu0 %v519
      %v1018 = vpop.f32.mrf.mxu0
      %v1019 = vadd.f32 %v311, %v1018
      %v1020 = vpop.f32.mrf.mxu0
      %1021 = vmatprep.mubr.f32.mxu0 0.0
      %1022 = vmatmul.mubr.f32.gmra.mxu0 %v522
      %v1023 = vpop.f32.mrf.mxu0
      %v1024 = vadd.f32 %v311, %v1023
      %v1025 = vpop.f32.mrf.mxu0
      %1026 = vmatprep.mubr.f32.mxu0 0.0
      %1027 = vmatmul.mubr.f32.gmra.mxu0 %v525
      %v1028 = vpop.f32.mrf.mxu0
      %v1029 = vadd.f32 %v311, %v1028
      %v1030 = vpop.f32.mrf.mxu0
      %1031 = vmatprep.mubr.f32.mxu0 0.0
      %1032 = vmatmul.mubr.f32.gmra.mxu0 %v528
      %v1033 = vpop.f32.mrf.mxu0
      %v1034 = vadd.f32 %v311, %v1033
      %v1035 = vpop.f32.mrf.mxu0
      %1036 = vmatprep.mubr.f32.mxu0 0.0
      %1037 = vmatmul.mubr.f32.gmra.mxu0 %v531
      %v1038 = vpop.f32.mrf.mxu0
      %v1039 = vadd.f32 %v311, %v1038
      %v1040 = vpop.f32.mrf.mxu0
      %1041 = vmatprep.mubr.f32.mxu0 0.0
      %1042 = vmatmul.mubr.f32.gmra.mxu0 %v534
      %v1043 = vpop.f32.mrf.mxu0
      %v1044 = vadd.f32 %v311, %v1043
      %v1045 = vpop.f32.mrf.mxu0
      %1046 = vmatprep.mubr.f32.mxu0 0.0
      %1047 = vmatmul.mubr.f32.gmra.mxu0 %v537
      %v1048 = vpop.f32.mrf.mxu0
      %v1049 = vadd.f32 %v311, %v1048
      %v1050 = vpop.f32.mrf.mxu0
      %1051 = vmatprep.mubr.f32.mxu0 0.0
      %1052 = vmatmul.mubr.f32.gmra.mxu0 %v540
      %v1053 = vpop.f32.mrf.mxu0
      %v1054 = vadd.f32 %v311, %v1053
      %v1055 = vpop.f32.mrf.mxu0
      %1056 = vmatprep.mubr.f32.mxu0 0.0
      %1057 = vmatmul.mubr.f32.gmra.mxu0 %v543
      %v1058 = vpop.f32.mrf.mxu0
      %v1059 = vadd.f32 %v311, %v1058
      %v1060 = vpop.f32.mrf.mxu0
      %1061 = vmatprep.mubr.f32.mxu0 0.0
      %1062 = vmatmul.mubr.f32.gmra.mxu0 %v546
      %v1063 = vpop.f32.mrf.mxu0
      %v1064 = vadd.f32 %v311, %v1063
      %v1065 = vpop.f32.mrf.mxu0
      %1066 = vmatprep.mubr.f32.mxu0 0.0
      %1067 = vmatmul.mubr.f32.gmra.mxu0 %v549
      %v1068 = vpop.f32.mrf.mxu0
      %v1069 = vadd.f32 %v311, %v1068
      %v1070 = vpop.f32.mrf.mxu0
      %1071 = vmatprep.mubr.f32.mxu0 0.0
      %1072 = vmatmul.mubr.f32.gmra.mxu0 %v552
      %v1073 = vpop.f32.mrf.mxu0
      %v1074 = vadd.f32 %v311, %v1073
      %v1075 = vpop.f32.mrf.mxu0
      %1076 = vmatprep.mubr.f32.mxu0 0.0
      %1077 = vmatmul.mubr.f32.gmra.mxu0 %v555
      %v1078 = vpop.f32.mrf.mxu0
      %v1079 = vadd.f32 %v311, %v1078
      %v1080 = vpop.f32.mrf.mxu0
      %1081 = vmatprep.mubr.f32.mxu0 0.0
      %1082 = vmatmul.mubr.f32.gmra.mxu0 %v558
      %v1083 = vpop.f32.mrf.mxu0
      %v1084 = vadd.f32 %v311, %v1083
      %v1085 = vpop.f32.mrf.mxu0
      %1086 = vmatprep.mubr.f32.mxu0 0.0
      %1087 = vmatmul.mubr.f32.gmra.mxu0 %v561
      %v1088 = vpop.f32.mrf.mxu0
      %v1089 = vadd.f32 %v311, %v1088
      %v1090 = vpop.f32.mrf.mxu0
      %1091 = vmatprep.mubr.f32.mxu0 0.0
      %1092 = vmatmul.mubr.f32.gmra.mxu0 %v564
      %v1093 = vpop.f32.mrf.mxu0
      %v1094 = vadd.f32 %v311, %v1093
      %v1095 = vpop.f32.mrf.mxu0
      %1096 = vmatprep.mubr.f32.mxu0 0.0
      %1097 = vmatmul.mubr.f32.gmra.mxu0 %v567
      %v1098 = vpop.f32.mrf.mxu0
      %v1099 = vadd.f32 %v311, %v1098
      %v1100 = vpop.f32.mrf.mxu0
      %1101 = vmatprep.mubr.f32.mxu0 0.0
      %1102 = vmatmul.mubr.f32.gmra.mxu0 %v570
      %v1103 = vpop.f32.mrf.mxu0
      %v1104 = vadd.f32 %v311, %v1103
      %v1105 = vpop.f32.mrf.mxu0
      %1106 = vmatprep.mubr.f32.mxu0 0.0
      %1107 = vmatmul.mubr.f32.gmra.mxu0 %v573
      %v1108 = vpop.f32.mrf.mxu0
      %v1109 = vadd.f32 %v311, %v1108
      %v1110 = vpop.f32.mrf.mxu0
      %1111 = vmatprep.mubr.f32.mxu0 0.0
      %1112 = vmatmul.mubr.f32.gmra.mxu0 %v576
      %v1113 = vpop.f32.mrf.mxu0
      %v1114 = vadd.f32 %v311, %v1113
      %v1115 = vpop.f32.mrf.mxu0
      %1116 = vmatprep.mubr.f32.mxu0 0.0
      %1117 = vmatmul.mubr.f32.gmra.mxu0 %v579
      %v1118 = vpop.f32.mrf.mxu0
      %v1119 = vadd.f32 %v311, %v1118
      %v1120 = vpop.f32.mrf.mxu0
      %1121 = vmatprep.mubr.f32.mxu0 0.0
      %1122 = vmatmul.mubr.f32.gmra.mxu0 %v582
      %v1123 = vpop.f32.mrf.mxu0
      %v1124 = vadd.f32 %v311, %v1123
      %v1125 = vpop.f32.mrf.mxu0
      %1126 = vmatprep.mubr.f32.mxu0 0.0
      %1127 = vmatmul.mubr.f32.gmra.mxu0 %v585
      %v1128 = vpop.f32.mrf.mxu0
      %v1129 = vadd.f32 %v311, %v1128
      %v1130 = vpop.f32.mrf.mxu0
      %1131 = vmatprep.mubr.f32.mxu0 0.0
      %1132 = vmatmul.mubr.f32.gmra.mxu0 %v588
      %v1133 = vpop.f32.mrf.mxu0
      %v1134 = vadd.f32 %v311, %v1133
      %v1135 = vpop.f32.mrf.mxu0
      %1136 = vmatprep.mubr.f32.mxu0 0.0
      %1137 = vmatmul.mubr.f32.gmra.mxu0 %v591
      %v1138 = vpop.f32.mrf.mxu0
      %v1139 = vadd.f32 %v311, %v1138
      %v1140 = vpop.f32.mrf.mxu0
      %1141 = vmatprep.mubr.f32.mxu0 0.0
      %1142 = vmatmul.mubr.f32.gmra.mxu0 %v594
      %v1143 = vpop.f32.mrf.mxu0
      %v1144 = vadd.f32 %v311, %v1143
      %v1145 = vpop.f32.mrf.mxu0
      %1146 = vmatprep.mubr.f32.mxu0 0.0
      %1147 = vmatmul.mubr.f32.gmra.mxu0 %v597
      %v1148 = vpop.f32.mrf.mxu0
      %v1149 = vadd.f32 %v311, %v1148
      %v1150 = vpop.f32.mrf.mxu0
      %1151 = vmatprep.mubr.f32.mxu0 0.0
      %1152 = vmatmul.mubr.f32.gmra.mxu0 %v600
      %v1153 = vpop.f32.mrf.mxu0
      %v1154 = vadd.f32 %v311, %v1153
      %v1155 = vpop.f32.mrf.mxu0
      %1156 = vmatprep.mubr.f32.mxu0 0.0
      %1157 = vmatmul.mubr.f32.gmra.mxu0 %v603
      %v1158 = vpop.f32.mrf.mxu0
      %v1159 = vadd.f32 %v311, %v1158
      %v1160 = vpop.f32.mrf.mxu0
      %1161 = vmatprep.mubr.f32.mxu0 0.0
      %1162 = vmatmul.mubr.f32.gmra.mxu0 %v606
      %v1163 = vpop.f32.mrf.mxu0
      %v1164 = vadd.f32 %v311, %v1163
      %v1165 = vpop.f32.mrf.mxu0
      %1166 = vdwg.mxu0
      %v1167 = vmax.f32 %v679, 0.0
      %v1168 = vmax.f32 %v684, 0.0
      %v1169 = vmax.f32 %v689, 0.0
      %v1170 = vmax.f32 %v694, 0.0
      %v1171 = vmax.f32 %v699, 0.0
      %v1172 = vmax.f32 %v704, 0.0
      %v1173 = vmax.f32 %v709, 0.0
      %v1174 = vmax.f32 %v714, 0.0
      %v1175 = vmax.f32 %v719, 0.0
      %v1176 = vmax.f32 %v724, 0.0
      %v1177 = vmax.f32 %v729, 0.0
      %v1178 = vmax.f32 %v734, 0.0
      %v1179 = vmax.f32 %v739, 0.0
      %v1180 = vmax.f32 %v744, 0.0
      %v1181 = vmax.f32 %v749, 0.0
      %v1182 = vmax.f32 %v754, 0.0
      %v1183 = vmax.f32 %v759, 0.0
      %v1184 = vmax.f32 %v764, 0.0
      %v1185 = vmax.f32 %v769, 0.0
      %v1186 = vmax.f32 %v774, 0.0
      %v1187 = vmax.f32 %v779, 0.0
      %v1188 = vmax.f32 %v784, 0.0
      %v1189 = vmax.f32 %v789, 0.0
      %v1190 = vmax.f32 %v794, 0.0
      %v1191 = vmax.f32 %v799, 0.0
      %v1192 = vmax.f32 %v804, 0.0
      %v1193 = vmax.f32 %v809, 0.0
      %v1194 = vmax.f32 %v814, 0.0
      %v1195 = vmax.f32 %v819, 0.0
      %v1196 = vmax.f32 %v824, 0.0
      %v1197 = vmax.f32 %v829, 0.0
      %v1198 = vmax.f32 %v834, 0.0
      %v1199 = vmax.f32 %v839, 0.0
      %v1200 = vmax.f32 %v844, 0.0
      %v1201 = vmax.f32 %v849, 0.0
      %v1202 = vmax.f32 %v854, 0.0
      %v1203 = vmax.f32 %v859, 0.0
      %v1204 = vmax.f32 %v864, 0.0
      %v1205 = vmax.f32 %v869, 0.0
      %v1206 = vmax.f32 %v874, 0.0
      %v1207 = vmax.f32 %v879, 0.0
      %v1208 = vmax.f32 %v884, 0.0
      %v1209 = vmax.f32 %v889, 0.0
      %v1210 = vmax.f32 %v894, 0.0
      %v1211 = vmax.f32 %v899, 0.0
      %v1212 = vmax.f32 %v904, 0.0
      %v1213 = vmax.f32 %v909, 0.0
      %v1214 = vmax.f32 %v914, 0.0
      %v1215 = vmax.f32 %v919, 0.0
      %v1216 = vmax.f32 %v924, 0.0
      %v1217 = vmax.f32 %v929, 0.0
      %v1218 = vmax.f32 %v934, 0.0
      %v1219 = vmax.f32 %v939, 0.0
      %v1220 = vmax.f32 %v944, 0.0
      %v1221 = vmax.f32 %v949, 0.0
      %v1222 = vmax.f32 %v954, 0.0
      %v1223 = vmax.f32 %v959, 0.0
      %v1224 = vmax.f32 %v964, 0.0
      %v1225 = vmax.f32 %v969, 0.0
      %v1226 = vmax.f32 %v974, 0.0
      %v1227 = vmax.f32 %v979, 0.0
      %v1228 = vmax.f32 %v984, 0.0
      %v1229 = vmax.f32 %v989, 0.0
      %v1230 = vmax.f32 %v994, 0.0
      %v1231 = vmax.f32 %v999, 0.0
      %v1232 = vmax.f32 %v1004, 0.0
      %v1233 = vmax.f32 %v1009, 0.0
      %v1234 = vmax.f32 %v1014, 0.0
      %v1235 = vmax.f32 %v1019, 0.0
      %v1236 = vmax.f32 %v1024, 0.0
      %v1237 = vmax.f32 %v1029, 0.0
      %v1238 = vmax.f32 %v1034, 0.0
      %v1239 = vmax.f32 %v1039, 0.0
      %v1240 = vmax.f32 %v1044, 0.0
      %v1241 = vmax.f32 %v1049, 0.0
      %v1242 = vmax.f32 %v1054, 0.0
      %v1243 = vmax.f32 %v1059, 0.0
      %v1244 = vmax.f32 %v1064, 0.0
      %v1245 = vmax.f32 %v1069, 0.0
      %v1246 = vmax.f32 %v1074, 0.0
      %v1247 = vmax.f32 %v1079, 0.0
      %v1248 = vmax.f32 %v1084, 0.0
      %v1249 = vmax.f32 %v1089, 0.0
      %v1250 = vmax.f32 %v1094, 0.0
      %v1251 = vmax.f32 %v1099, 0.0
      %v1252 = vmax.f32 %v1104, 0.0
      %v1253 = vmax.f32 %v1109, 0.0
      %v1254 = vmax.f32 %v1114, 0.0
      %v1255 = vmax.f32 %v1119, 0.0
      %v1256 = vmax.f32 %v1124, 0.0
      %v1257 = vmax.f32 %v1129, 0.0
      %v1258 = vmax.f32 %v1134, 0.0
      %v1259 = vmax.f32 %v1139, 0.0
      %v1260 = vmax.f32 %v1144, 0.0
      %v1261 = vmax.f32 %v1149, 0.0
      %v1262 = vmax.f32 %v1154, 0.0
      %v1263 = vmax.f32 %v1159, 0.0
      %v1264 = vmax.f32 %v1164, 0.0
      %v1265 = vld [vmem:[%s3] sm:$0xff]
      %v1266 = vld [vmem:[%s3 + $0x8] sm:$0xff]
      %v1267 = vld [vmem:[%s3 + $0x10] sm:$0xff]
      %v1268 = vld [vmem:[%s3 + $0x18] sm:$0xff]
      %v1269 = vld [vmem:[%s3 + $0x20] sm:$0xff]
      %v1270 = vld [vmem:[%s3 + $0x28] sm:$0xff]
      %v1271 = vld [vmem:[%s3 + $0x30] sm:$0xff]
      %v1272 = vld [vmem:[%s3 + $0x38] sm:$0xff]
      %v1273 = vld [vmem:[%s3 + $0x40] sm:$0xff]
      %v1274 = vld [vmem:[%s3 + $0x48] sm:$0xff]
      %v1275 = vld [vmem:[%s3 + $0x50] sm:$0xff]
      %v1276 = vld [vmem:[%s3 + $0x58] sm:$0xff]
      %v1277 = vld [vmem:[%s3 + $0x60] sm:$0xff]
      %v1278 = vld [vmem:[%s3 + $0x68] sm:$0xff]
      %v1279 = vld [vmem:[%s3 + $0x70] sm:$0xff]
      %v1280 = vld [vmem:[%s3 + $0x78] sm:$0xff]
      %v1281 = vld [vmem:[%s3 + $0x80] sm:$0xff]
      %v1282 = vld [vmem:[%s3 + $0x88] sm:$0xff]
      %v1283 = vld [vmem:[%s3 + $0x90] sm:$0xff]
      %v1284 = vld [vmem:[%s3 + $0x98] sm:$0xff]
      %v1285 = vld [vmem:[%s3 + $0xa0] sm:$0xff]
      %v1286 = vld [vmem:[%s3 + $0xa8] sm:$0xff]
      %v1287 = vld [vmem:[%s3 + $0xb0] sm:$0xff]
      %v1288 = vld [vmem:[%s3 + $0xb8] sm:$0xff]
      %v1289 = vld [vmem:[%s3 + $0xc0] sm:$0xff]
      %v1290 = vld [vmem:[%s3 + $0xc8] sm:$0xff]
      %v1291 = vld [vmem:[%s3 + $0xd0] sm:$0xff]
      %v1292 = vld [vmem:[%s3 + $0xd8] sm:$0xff]
      %v1293 = vld [vmem:[%s3 + $0xe0] sm:$0xff]
      %v1294 = vld [vmem:[%s3 + $0xe8] sm:$0xff]
      %v1295 = vld [vmem:[%s3 + $0xf0] sm:$0xff]
      %v1296 = vld [vmem:[%s3 + $0xf8] sm:$0xff]
      %v1297 = vld [vmem:[%s3 + $0x100] sm:$0xff]
      %v1298 = vld [vmem:[%s3 + $0x108] sm:$0xff]
      %v1299 = vld [vmem:[%s3 + $0x110] sm:$0xff]
      %v1300 = vld [vmem:[%s3 + $0x118] sm:$0xff]
      %v1301 = vld [vmem:[%s3 + $0x120] sm:$0xff]
      %v1302 = vld [vmem:[%s3 + $0x128] sm:$0xff]
      %v1303 = vld [vmem:[%s3 + $0x130] sm:$0xff]
      %v1304 = vld [vmem:[%s3 + $0x138] sm:$0xff]
      %v1305 = vld [vmem:[%s3 + $0x140] sm:$0xff]
      %v1306 = vld [vmem:[%s3 + $0x148] sm:$0xff]
      %v1307 = vld [vmem:[%s3 + $0x150] sm:$0xff]
      %v1308 = vld [vmem:[%s3 + $0x158] sm:$0xff]
      %v1309 = vld [vmem:[%s3 + $0x160] sm:$0xff]
      %v1310 = vld [vmem:[%s3 + $0x168] sm:$0xff]
      %v1311 = vld [vmem:[%s3 + $0x170] sm:$0xff]
      %v1312 = vld [vmem:[%s3 + $0x178] sm:$0xff]
      %v1313 = vld [vmem:[%s3 + $0x180] sm:$0xff]
      %v1314 = vld [vmem:[%s3 + $0x188] sm:$0xff]
      %v1315 = vld [vmem:[%s3 + $0x190] sm:$0xff]
      %v1316 = vld [vmem:[%s3 + $0x198] sm:$0xff]
      %v1317 = vld [vmem:[%s3 + $0x1a0] sm:$0xff]
      %v1318 = vld [vmem:[%s3 + $0x1a8] sm:$0xff]
      %v1319 = vld [vmem:[%s3 + $0x1b0] sm:$0xff]
      %v1320 = vld [vmem:[%s3 + $0x1b8] sm:$0xff]
      %v1321 = vld [vmem:[%s3 + $0x1c0] sm:$0xff]
      %v1322 = vld [vmem:[%s3 + $0x1c8] sm:$0xff]
      %v1323 = vld [vmem:[%s3 + $0x1d0] sm:$0xff]
      %v1324 = vld [vmem:[%s3 + $0x1d8] sm:$0xff]
      %v1325 = vld [vmem:[%s3 + $0x1e0] sm:$0xff]
      %v1326 = vld [vmem:[%s3 + $0x1e8] sm:$0xff]
      %v1327 = vld [vmem:[%s3 + $0x1f0] sm:$0xff]
      %v1328 = vld [vmem:[%s3 + $0x1f8] sm:$0xff]
      %v1329 = vld [vmem:[%s3 + $0x200] sm:$0xff]
      %v1330 = vld [vmem:[%s3 + $0x208] sm:$0xff]
      %v1331 = vld [vmem:[%s3 + $0x210] sm:$0xff]
      %v1332 = vld [vmem:[%s3 + $0x218] sm:$0xff]
      %v1333 = vld [vmem:[%s3 + $0x220] sm:$0xff]
      %v1334 = vld [vmem:[%s3 + $0x228] sm:$0xff]
      %v1335 = vld [vmem:[%s3 + $0x230] sm:$0xff]
      %v1336 = vld [vmem:[%s3 + $0x238] sm:$0xff]
      %v1337 = vld [vmem:[%s3 + $0x240] sm:$0xff]
      %v1338 = vld [vmem:[%s3 + $0x248] sm:$0xff]
      %v1339 = vld [vmem:[%s3 + $0x250] sm:$0xff]
      %v1340 = vld [vmem:[%s3 + $0x258] sm:$0xff]
      %v1341 = vld [vmem:[%s3 + $0x260] sm:$0xff]
      %v1342 = vld [vmem:[%s3 + $0x268] sm:$0xff]
      %v1343 = vld [vmem:[%s3 + $0x270] sm:$0xff]
      %v1344 = vld [vmem:[%s3 + $0x278] sm:$0xff]
      %v1345 = vld [vmem:[%s3 + $0x280] sm:$0xff]
      %v1346 = vld [vmem:[%s3 + $0x288] sm:$0xff]
      %v1347 = vld [vmem:[%s3 + $0x290] sm:$0xff]
      %v1348 = vld [vmem:[%s3 + $0x298] sm:$0xff]
      %v1349 = vld [vmem:[%s3 + $0x2a0] sm:$0xff]
      %v1350 = vld [vmem:[%s3 + $0x2a8] sm:$0xff]
      %v1351 = vld [vmem:[%s3 + $0x2b0] sm:$0xff]
      %v1352 = vld [vmem:[%s3 + $0x2b8] sm:$0xff]
      %v1353 = vld [vmem:[%s3 + $0x2c0] sm:$0xff]
      %v1354 = vld [vmem:[%s3 + $0x2c8] sm:$0xff]
      %v1355 = vld [vmem:[%s3 + $0x2d0] sm:$0xff]
      %v1356 = vld [vmem:[%s3 + $0x2d8] sm:$0xff]
      %v1357 = vld [vmem:[%s3 + $0x2e0] sm:$0xff]
      %v1358 = vld [vmem:[%s3 + $0x2e8] sm:$0xff]
      %v1359 = vld [vmem:[%s3 + $0x2f0] sm:$0xff]
      %v1360 = vld [vmem:[%s3 + $0x2f8] sm:$0xff]
      %v1361 = vld [vmem:[%s3 + $0x300] sm:$0xff]
      %v1362 = vld [vmem:[%s3 + $0x308] sm:$0xff]
      %v1363 = vld [vmem:[%s3 + $0x310] sm:$0xff]
      %v1364 = vld [vmem:[%s3 + $0x318] sm:$0xff]
      %v1365 = vld [vmem:[%s3 + $0x320] sm:$0xff]
      %v1366 = vld [vmem:[%s3 + $0x328] sm:$0xff]
      %v1367 = vld [vmem:[%s3 + $0x330] sm:$0xff]
      %v1368 = vld [vmem:[%s3 + $0x338] sm:$0xff]
      %v1369 = vld [vmem:[%s3 + $0x340] sm:$0xff]
      %v1370 = vld [vmem:[%s3 + $0x348] sm:$0xff]
      %v1371 = vld [vmem:[%s3 + $0x350] sm:$0xff]
      %v1372 = vld [vmem:[%s3 + $0x358] sm:$0xff]
      %v1373 = vld [vmem:[%s3 + $0x360] sm:$0xff]
      %v1374 = vld [vmem:[%s3 + $0x368] sm:$0xff]
      %v1375 = vld [vmem:[%s3 + $0x370] sm:$0xff]
      %v1376 = vld [vmem:[%s3 + $0x378] sm:$0xff]
      %v1377 = vld [vmem:[%s3 + $0x380] sm:$0xff]
      %v1378 = vld [vmem:[%s3 + $0x388] sm:$0xff]
      %v1379 = vld [vmem:[%s3 + $0x390] sm:$0xff]
      %v1380 = vld [vmem:[%s3 + $0x398] sm:$0xff]
      %v1381 = vld [vmem:[%s3 + $0x3a0] sm:$0xff]
      %v1382 = vld [vmem:[%s3 + $0x3a8] sm:$0xff]
      %v1383 = vld [vmem:[%s3 + $0x3b0] sm:$0xff]
      %v1384 = vld [vmem:[%s3 + $0x3b8] sm:$0xff]
      %v1385 = vld [vmem:[%s3 + $0x3c0] sm:$0xff]
      %v1386 = vld [vmem:[%s3 + $0x3c8] sm:$0xff]
      %v1387 = vld [vmem:[%s3 + $0x3d0] sm:$0xff]
      %v1388 = vld [vmem:[%s3 + $0x3d8] sm:$0xff]
      %v1389 = vld [vmem:[%s3 + $0x3e0] sm:$0xff]
      %v1390 = vld [vmem:[%s3 + $0x3e8] sm:$0xff]
      %v1391 = vld [vmem:[%s3 + $0x3f0] sm:$0xff]
      %v1392 = vld [vmem:[%s3 + $0x3f8] sm:$0xff]
      %v1393 = vld [vmem:[%s3 + $0x400] sm:$0xff]
      %v1394 = vld [vmem:[%s3 + $0x408] sm:$0xff]
      %v1395 = vld [vmem:[%s3 + $0x410] sm:$0xff]
      %v1396 = vld [vmem:[%s3 + $0x418] sm:$0xff]
      %v1397 = vld [vmem:[%s3 + $0x420] sm:$0xff]
      %v1398 = vld [vmem:[%s3 + $0x428] sm:$0xff]
      %v1399 = vld [vmem:[%s3 + $0x430] sm:$0xff]
      %v1400 = vld [vmem:[%s3 + $0x438] sm:$0xff]
      %v1401 = vld [vmem:[%s3 + $0x440] sm:$0xff]
      %v1402 = vld [vmem:[%s3 + $0x448] sm:$0xff]
      %v1403 = vld [vmem:[%s3 + $0x450] sm:$0xff]
      %v1404 = vld [vmem:[%s3 + $0x458] sm:$0xff]
      %v1405 = vld [vmem:[%s3 + $0x460] sm:$0xff]
      %v1406 = vld [vmem:[%s3 + $0x468] sm:$0xff]
      %v1407 = vld [vmem:[%s3 + $0x470] sm:$0xff]
      %v1408 = vld [vmem:[%s3 + $0x478] sm:$0xff]
      %v1409 = vld [vmem:[%s3 + $0x480] sm:$0xff]
      %v1410 = vld [vmem:[%s3 + $0x488] sm:$0xff]
      %v1411 = vld [vmem:[%s3 + $0x490] sm:$0xff]
      %v1412 = vld [vmem:[%s3 + $0x498] sm:$0xff]
      %v1413 = vld [vmem:[%s3 + $0x4a0] sm:$0xff]
      %v1414 = vld [vmem:[%s3 + $0x4a8] sm:$0xff]
      %v1415 = vld [vmem:[%s3 + $0x4b0] sm:$0xff]
      %v1416 = vld [vmem:[%s3 + $0x4b8] sm:$0xff]
      %v1417 = vld [vmem:[%s3 + $0x4c0] sm:$0xff]
      %v1418 = vld [vmem:[%s3 + $0x4c8] sm:$0xff]
      %v1419 = vld [vmem:[%s3 + $0x4d0] sm:$0xff]
      %v1420 = vld [vmem:[%s3 + $0x4d8] sm:$0xff]
      %v1421 = vld [vmem:[%s3 + $0x4e0] sm:$0xff]
      %v1422 = vld [vmem:[%s3 + $0x4e8] sm:$0xff]
      %v1423 = vld [vmem:[%s3 + $0x4f0] sm:$0xff]
      %v1424 = vld [vmem:[%s3 + $0x4f8] sm:$0xff]
      %v1425 = vld [vmem:[%s3 + $0x500] sm:$0xff]
      %v1426 = vld [vmem:[%s3 + $0x508] sm:$0xff]
      %v1427 = vld [vmem:[%s3 + $0x510] sm:$0xff]
      %v1428 = vld [vmem:[%s3 + $0x518] sm:$0xff]
      %v1429 = vld [vmem:[%s3 + $0x520] sm:$0xff]
      %v1430 = vld [vmem:[%s3 + $0x528] sm:$0xff]
      %v1431 = vld [vmem:[%s3 + $0x530] sm:$0xff]
      %v1432 = vld [vmem:[%s3 + $0x538] sm:$0xff]
      %v1433 = vld [vmem:[%s3 + $0x540] sm:$0xf]
      %v1434 = vld [vmem:[%s3 + $0x548] sm:$0xf]
      %v1435 = vld [vmem:[%s3 + $0x550] sm:$0xf]
      %v1436 = vld [vmem:[%s3 + $0x558] sm:$0xf]
      %v1437 = vld [vmem:[%s3 + $0x560] sm:$0xf]
      %v1438 = vld [vmem:[%s3 + $0x568] sm:$0xf]
      %v1439 = vld [vmem:[%s3 + $0x570] sm:$0xf]
      %vm1440 = vcmask 130048
      %v1442 = vsel %vm1440, %v1271, 0
      %v1445 = vsel %vm1440, %v1278, 0
      %v1448 = vsel %vm1440, %v1285, 0
      %v1451 = vsel %vm1440, %v1292, 0
      %v1454 = vsel %vm1440, %v1299, 0
      %v1457 = vsel %vm1440, %v1306, 0
      %v1460 = vsel %vm1440, %v1313, 0
      %v1463 = vsel %vm1440, %v1320, 0
      %v1466 = vsel %vm1440, %v1327, 0
      %v1469 = vsel %vm1440, %v1334, 0
      %v1472 = vsel %vm1440, %v1341, 0
      %v1475 = vsel %vm1440, %v1348, 0
      %v1478 = vsel %vm1440, %v1355, 0
      %v1481 = vsel %vm1440, %v1362, 0
      %v1484 = vsel %vm1440, %v1369, 0
      %v1487 = vsel %vm1440, %v1376, 0
      %v1490 = vsel %vm1440, %v1383, 0
      %v1493 = vsel %vm1440, %v1390, 0
      %v1496 = vsel %vm1440, %v1397, 0
      %v1499 = vsel %vm1440, %v1404, 0
      %v1502 = vsel %vm1440, %v1411, 0
      %v1505 = vsel %vm1440, %v1418, 0
      %v1508 = vsel %vm1440, %v1425, 0
      %v1511 = vsel %vm1440, %v1432, 0
      %v1514 = vsel %vm1440, %v1439, 0
      %1516 = vmatprep.subr.mxu0 0.0
      %1517 = vmatpush1.msra.mxu0 %v1182
      %1518 = vmatprep.subr.mxu0 0.0
      %1519 = vmatpush1.msra.mxu0 %v1181
      %1520 = vmatprep.subr.mxu0 0.0
      %1521 = vmatpush1.msra.mxu0 %v1180
      %1522 = vmatprep.subr.mxu0 0.0
      %1523 = vmatpush1.msra.mxu0 %v1179
      %1524 = vmatprep.subr.mxu0 0.0
      %1525 = vmatpush1.msra.mxu0 %v1178
      %1526 = vmatprep.subr.mxu0 0.0
      %1527 = vmatpush1.msra.mxu0 %v1177
      %1528 = vmatprep.subr.mxu0 0.0
      %1529 = vmatpush1.msra.mxu0 %v1176
      %1530 = vmatprep.subr.mxu0 0.0
      %1531 = vmatpush1.msra.mxu0 %v1175
      %1532 = vmatprep.subr.mxu0 0.0
      %1533 = vmatpush1.msra.mxu0 %v1174
      %1534 = vmatprep.subr.mxu0 0.0
      %1535 = vmatpush1.msra.mxu0 %v1173
      %1536 = vmatprep.subr.mxu0 0.0
      %1537 = vmatpush1.msra.mxu0 %v1172
      %1538 = vmatprep.subr.mxu0 0.0
      %1539 = vmatpush1.msra.mxu0 %v1171
      %1540 = vmatprep.subr.mxu0 0.0
      %1541 = vmatpush1.msra.mxu0 %v1170
      %1542 = vmatprep.subr.mxu0 0.0
      %1543 = vmatpush1.msra.mxu0 %v1169
      %1544 = vmatprep.subr.mxu0 0.0
      %1545 = vmatpush1.msra.mxu0 %v1168
      %1546 = vmatprep.subr.mxu0 0.0
      %1547 = vmatpush1.msra.mxu0 %v1167
      %1548 = vmatprep.subr.mxu0 0.0
      %1549 = vmatpush2.msra.mxu0 %v1198
      %1550 = vmatprep.subr.mxu0 0.0
      %1551 = vmatpush2.msra.mxu0 %v1197
      %1552 = vmatprep.subr.mxu0 0.0
      %1553 = vmatpush2.msra.mxu0 %v1196
      %1554 = vmatprep.subr.mxu0 0.0
      %1555 = vmatpush2.msra.mxu0 %v1195
      %1556 = vmatprep.subr.mxu0 0.0
      %1557 = vmatpush2.msra.mxu0 %v1194
      %1558 = vmatprep.subr.mxu0 0.0
      %1559 = vmatpush2.msra.mxu0 %v1193
      %1560 = vmatprep.subr.mxu0 0.0
      %1561 = vmatpush2.msra.mxu0 %v1192
      %1562 = vmatprep.subr.mxu0 0.0
      %1563 = vmatpush2.msra.mxu0 %v1191
      %1564 = vmatprep.subr.mxu0 0.0
      %1565 = vmatpush2.msra.mxu0 %v1190
      %1566 = vmatprep.subr.mxu0 0.0
      %1567 = vmatpush2.msra.mxu0 %v1189
      %1568 = vmatprep.subr.mxu0 0.0
      %1569 = vmatpush2.msra.mxu0 %v1188
      %1570 = vmatprep.subr.mxu0 0.0
      %1571 = vmatpush2.msra.mxu0 %v1187
      %1572 = vmatprep.subr.mxu0 0.0
      %1573 = vmatpush2.msra.mxu0 %v1186
      %1574 = vmatprep.subr.mxu0 0.0
      %1575 = vmatpush2.msra.mxu0 %v1185
      %1576 = vmatprep.subr.mxu0 0.0
      %1577 = vmatpush2.msra.mxu0 %v1184
      %1578 = vmatprep.subr.mxu0 0.0
      %1579 = vmatpush2.msra.mxu0 %v1183
      %1580 = vmatprep.mubr.f32.mxu0 %v1266
      %1581 = vmatmul.mubr.f32.gmra.mxu0 %v1265
      %v1582 = vpop.f32.mrf.mxu0
      %v1583 = vadd.f32 0.0, %v1582
      %v1584 = vpop.f32.mrf.mxu0
      %1585 = vmatprep.mubr.f32.mxu0 %v1273
      %1586 = vmatmul.mubr.f32.gmra.mxu0 %v1272
      %v1587 = vpop.f32.mrf.mxu0
      %v1588 = vadd.f32 0.0, %v1587
      %v1589 = vpop.f32.mrf.mxu0
      %1590 = vmatprep.mubr.f32.mxu0 %v1280
      %1591 = vmatmul.mubr.f32.gmra.mxu0 %v1279
      %v1592 = vpop.f32.mrf.mxu0
      %v1593 = vadd.f32 0.0, %v1592
      %v1594 = vpop.f32.mrf.mxu0
      %1595 = vmatprep.mubr.f32.mxu0 %v1287
      %1596 = vmatmul.mubr.f32.gmra.mxu0 %v1286
      %v1597 = vpop.f32.mrf.mxu0
      %v1598 = vadd.f32 0.0, %v1597
      %v1599 = vpop.f32.mrf.mxu0
      %1600 = vmatprep.mubr.f32.mxu0 %v1294
      %1601 = vmatmul.mubr.f32.gmra.mxu0 %v1293
      %v1602 = vpop.f32.mrf.mxu0
      %v1603 = vadd.f32 0.0, %v1602
      %v1604 = vpop.f32.mrf.mxu0
      %1605 = vmatprep.mubr.f32.mxu0 %v1301
      %1606 = vmatmul.mubr.f32.gmra.mxu0 %v1300
      %v1607 = vpop.f32.mrf.mxu0
      %v1608 = vadd.f32 0.0, %v1607
      %v1609 = vpop.f32.mrf.mxu0
      %1610 = vmatprep.mubr.f32.mxu0 %v1308
      %1611 = vmatmul.mubr.f32.gmra.mxu0 %v1307
      %v1612 = vpop.f32.mrf.mxu0
      %v1613 = vadd.f32 0.0, %v1612
      %v1614 = vpop.f32.mrf.mxu0
      %1615 = vmatprep.mubr.f32.mxu0 %v1315
      %1616 = vmatmul.mubr.f32.gmra.mxu0 %v1314
      %v1617 = vpop.f32.mrf.mxu0
      %v1618 = vadd.f32 0.0, %v1617
      %v1619 = vpop.f32.mrf.mxu0
      %1620 = vmatprep.mubr.f32.mxu0 %v1322
      %1621 = vmatmul.mubr.f32.gmra.mxu0 %v1321
      %v1622 = vpop.f32.mrf.mxu0
      %v1623 = vadd.f32 0.0, %v1622
      %v1624 = vpop.f32.mrf.mxu0
      %1625 = vmatprep.mubr.f32.mxu0 %v1329
      %1626 = vmatmul.mubr.f32.gmra.mxu0 %v1328
      %v1627 = vpop.f32.mrf.mxu0
      %v1628 = vadd.f32 0.0, %v1627
      %v1629 = vpop.f32.mrf.mxu0
      %1630 = vmatprep.mubr.f32.mxu0 %v1336
      %1631 = vmatmul.mubr.f32.gmra.mxu0 %v1335
      %v1632 = vpop.f32.mrf.mxu0
      %v1633 = vadd.f32 0.0, %v1632
      %v1634 = vpop.f32.mrf.mxu0
      %1635 = vmatprep.mubr.f32.mxu0 %v1343
      %1636 = vmatmul.mubr.f32.gmra.mxu0 %v1342
      %v1637 = vpop.f32.mrf.mxu0
      %v1638 = vadd.f32 0.0, %v1637
      %v1639 = vpop.f32.mrf.mxu0
      %1640 = vmatprep.mubr.f32.mxu0 %v1350
      %1641 = vmatmul.mubr.f32.gmra.mxu0 %v1349
      %v1642 = vpop.f32.mrf.mxu0
      %v1643 = vadd.f32 0.0, %v1642
      %v1644 = vpop.f32.mrf.mxu0
      %1645 = vmatprep.mubr.f32.mxu0 %v1357
      %1646 = vmatmul.mubr.f32.gmra.mxu0 %v1356
      %v1647 = vpop.f32.mrf.mxu0
      %v1648 = vadd.f32 0.0, %v1647
      %v1649 = vpop.f32.mrf.mxu0
      %1650 = vmatprep.mubr.f32.mxu0 %v1364
      %1651 = vmatmul.mubr.f32.gmra.mxu0 %v1363
      %v1652 = vpop.f32.mrf.mxu0
      %v1653 = vadd.f32 0.0, %v1652
      %v1654 = vpop.f32.mrf.mxu0
      %1655 = vmatprep.mubr.f32.mxu0 %v1371
      %1656 = vmatmul.mubr.f32.gmra.mxu0 %v1370
      %v1657 = vpop.f32.mrf.mxu0
      %v1658 = vadd.f32 0.0, %v1657
      %v1659 = vpop.f32.mrf.mxu0
      %1660 = vmatprep.mubr.f32.mxu0 %v1378
      %1661 = vmatmul.mubr.f32.gmra.mxu0 %v1377
      %v1662 = vpop.f32.mrf.mxu0
      %v1663 = vadd.f32 0.0, %v1662
      %v1664 = vpop.f32.mrf.mxu0
      %1665 = vmatprep.mubr.f32.mxu0 %v1385
      %1666 = vmatmul.mubr.f32.gmra.mxu0 %v1384
      %v1667 = vpop.f32.mrf.mxu0
      %v1668 = vadd.f32 0.0, %v1667
      %v1669 = vpop.f32.mrf.mxu0
      %1670 = vmatprep.mubr.f32.mxu0 %v1392
      %1671 = vmatmul.mubr.f32.gmra.mxu0 %v1391
      %v1672 = vpop.f32.mrf.mxu0
      %v1673 = vadd.f32 0.0, %v1672
      %v1674 = vpop.f32.mrf.mxu0
      %1675 = vmatprep.mubr.f32.mxu0 %v1399
      %1676 = vmatmul.mubr.f32.gmra.mxu0 %v1398
      %v1677 = vpop.f32.mrf.mxu0
      %v1678 = vadd.f32 0.0, %v1677
      %v1679 = vpop.f32.mrf.mxu0
      %1680 = vmatprep.mubr.f32.mxu0 %v1406
      %1681 = vmatmul.mubr.f32.gmra.mxu0 %v1405
      %v1682 = vpop.f32.mrf.mxu0
      %v1683 = vadd.f32 0.0, %v1682
      %v1684 = vpop.f32.mrf.mxu0
      %1685 = vmatprep.mubr.f32.mxu0 %v1413
      %1686 = vmatmul.mubr.f32.gmra.mxu0 %v1412
      %v1687 = vpop.f32.mrf.mxu0
      %v1688 = vadd.f32 0.0, %v1687
      %v1689 = vpop.f32.mrf.mxu0
      %1690 = vmatprep.mubr.f32.mxu0 %v1420
      %1691 = vmatmul.mubr.f32.gmra.mxu0 %v1419
      %v1692 = vpop.f32.mrf.mxu0
      %v1693 = vadd.f32 0.0, %v1692
      %v1694 = vpop.f32.mrf.mxu0
      %1695 = vmatprep.mubr.f32.mxu0 %v1427
      %1696 = vmatmul.mubr.f32.gmra.mxu0 %v1426
      %v1697 = vpop.f32.mrf.mxu0
      %v1698 = vadd.f32 0.0, %v1697
      %v1699 = vpop.f32.mrf.mxu0
      %1700 = vmatprep.mubr.f32.mxu0 %v1434
      %1701 = vmatmul.mubr.f32.gmra.mxu0 %v1433
      %v1702 = vpop.f32.mrf.mxu0
      %v1703 = vadd.f32 0.0, %v1702
      %v1704 = vpop.f32.mrf.mxu0
      %1705 = vdwg.mxu0
      %1706 = vmatprep.subr.mxu0 0.0
      %1707 = vmatpush1.msra.mxu0 %v1214
      %1708 = vmatprep.subr.mxu0 0.0
      %1709 = vmatpush1.msra.mxu0 %v1213
      %1710 = vmatprep.subr.mxu0 0.0
      %1711 = vmatpush1.msra.mxu0 %v1212
      %1712 = vmatprep.subr.mxu0 0.0
      %1713 = vmatpush1.msra.mxu0 %v1211
      %1714 = vmatprep.subr.mxu0 0.0
      %1715 = vmatpush1.msra.mxu0 %v1210
      %1716 = vmatprep.subr.mxu0 0.0
      %1717 = vmatpush1.msra.mxu0 %v1209
      %1718 = vmatprep.subr.mxu0 0.0
      %1719 = vmatpush1.msra.mxu0 %v1208
      %1720 = vmatprep.subr.mxu0 0.0
      %1721 = vmatpush1.msra.mxu0 %v1207
      %1722 = vmatprep.subr.mxu0 0.0
      %1723 = vmatpush1.msra.mxu0 %v1206
      %1724 = vmatprep.subr.mxu0 0.0
      %1725 = vmatpush1.msra.mxu0 %v1205
      %1726 = vmatprep.subr.mxu0 0.0
      %1727 = vmatpush1.msra.mxu0 %v1204
      %1728 = vmatprep.subr.mxu0 0.0
      %1729 = vmatpush1.msra.mxu0 %v1203
      %1730 = vmatprep.subr.mxu0 0.0
      %1731 = vmatpush1.msra.mxu0 %v1202
      %1732 = vmatprep.subr.mxu0 0.0
      %1733 = vmatpush1.msra.mxu0 %v1201
      %1734 = vmatprep.subr.mxu0 0.0
      %1735 = vmatpush1.msra.mxu0 %v1200
      %1736 = vmatprep.subr.mxu0 0.0
      %1737 = vmatpush1.msra.mxu0 %v1199
      %1738 = vmatprep.subr.mxu0 0.0
      %1739 = vmatpush2.msra.mxu0 %v1230
      %1740 = vmatprep.subr.mxu0 0.0
      %1741 = vmatpush2.msra.mxu0 %v1229
      %1742 = vmatprep.subr.mxu0 0.0
      %1743 = vmatpush2.msra.mxu0 %v1228
      %1744 = vmatprep.subr.mxu0 0.0
      %1745 = vmatpush2.msra.mxu0 %v1227
      %1746 = vmatprep.subr.mxu0 0.0
      %1747 = vmatpush2.msra.mxu0 %v1226
      %1748 = vmatprep.subr.mxu0 0.0
      %1749 = vmatpush2.msra.mxu0 %v1225
      %1750 = vmatprep.subr.mxu0 0.0
      %1751 = vmatpush2.msra.mxu0 %v1224
      %1752 = vmatprep.subr.mxu0 0.0
      %1753 = vmatpush2.msra.mxu0 %v1223
      %1754 = vmatprep.subr.mxu0 0.0
      %1755 = vmatpush2.msra.mxu0 %v1222
      %1756 = vmatprep.subr.mxu0 0.0
      %1757 = vmatpush2.msra.mxu0 %v1221
      %1758 = vmatprep.subr.mxu0 0.0
      %1759 = vmatpush2.msra.mxu0 %v1220
      %1760 = vmatprep.subr.mxu0 0.0
      %1761 = vmatpush2.msra.mxu0 %v1219
      %1762 = vmatprep.subr.mxu0 0.0
      %1763 = vmatpush2.msra.mxu0 %v1218
      %1764 = vmatprep.subr.mxu0 0.0
      %1765 = vmatpush2.msra.mxu0 %v1217
      %1766 = vmatprep.subr.mxu0 0.0
      %1767 = vmatpush2.msra.mxu0 %v1216
      %1768 = vmatprep.subr.mxu0 0.0
      %1769 = vmatpush2.msra.mxu0 %v1215
      %1770 = vmatprep.mubr.f32.mxu0 %v1268
      %1771 = vmatmul.mubr.f32.gmra.mxu0 %v1267
      %v1772 = vpop.f32.mrf.mxu0
      %v1773 = vadd.f32 %v1583, %v1772
      %v1774 = vpop.f32.mrf.mxu0
      %1775 = vmatprep.mubr.f32.mxu0 %v1275
      %1776 = vmatmul.mubr.f32.gmra.mxu0 %v1274
      %v1777 = vpop.f32.mrf.mxu0
      %v1778 = vadd.f32 %v1588, %v1777
      %v1779 = vpop.f32.mrf.mxu0
      %1780 = vmatprep.mubr.f32.mxu0 %v1282
      %1781 = vmatmul.mubr.f32.gmra.mxu0 %v1281
      %v1782 = vpop.f32.mrf.mxu0
      %v1783 = vadd.f32 %v1593, %v1782
      %v1784 = vpop.f32.mrf.mxu0
      %1785 = vmatprep.mubr.f32.mxu0 %v1289
      %1786 = vmatmul.mubr.f32.gmra.mxu0 %v1288
      %v1787 = vpop.f32.mrf.mxu0
      %v1788 = vadd.f32 %v1598, %v1787
      %v1789 = vpop.f32.mrf.mxu0
      %1790 = vmatprep.mubr.f32.mxu0 %v1296
      %1791 = vmatmul.mubr.f32.gmra.mxu0 %v1295
      %v1792 = vpop.f32.mrf.mxu0
      %v1793 = vadd.f32 %v1603, %v1792
      %v1794 = vpop.f32.mrf.mxu0
      %1795 = vmatprep.mubr.f32.mxu0 %v1303
      %1796 = vmatmul.mubr.f32.gmra.mxu0 %v1302
      %v1797 = vpop.f32.mrf.mxu0
      %v1798 = vadd.f32 %v1608, %v1797
      %v1799 = vpop.f32.mrf.mxu0
      %1800 = vmatprep.mubr.f32.mxu0 %v1310
      %1801 = vmatmul.mubr.f32.gmra.mxu0 %v1309
      %v1802 = vpop.f32.mrf.mxu0
      %v1803 = vadd.f32 %v1613, %v1802
      %v1804 = vpop.f32.mrf.mxu0
      %1805 = vmatprep.mubr.f32.mxu0 %v1317
      %1806 = vmatmul.mubr.f32.gmra.mxu0 %v1316
      %v1807 = vpop.f32.mrf.mxu0
      %v1808 = vadd.f32 %v1618, %v1807
      %v1809 = vpop.f32.mrf.mxu0
      %1810 = vmatprep.mubr.f32.mxu0 %v1324
      %1811 = vmatmul.mubr.f32.gmra.mxu0 %v1323
      %v1812 = vpop.f32.mrf.mxu0
      %v1813 = vadd.f32 %v1623, %v1812
      %v1814 = vpop.f32.mrf.mxu0
      %1815 = vmatprep.mubr.f32.mxu0 %v1331
      %1816 = vmatmul.mubr.f32.gmra.mxu0 %v1330
      %v1817 = vpop.f32.mrf.mxu0
      %v1818 = vadd.f32 %v1628, %v1817
      %v1819 = vpop.f32.mrf.mxu0
      %1820 = vmatprep.mubr.f32.mxu0 %v1338
      %1821 = vmatmul.mubr.f32.gmra.mxu0 %v1337
      %v1822 = vpop.f32.mrf.mxu0
      %v1823 = vadd.f32 %v1633, %v1822
      %v1824 = vpop.f32.mrf.mxu0
      %1825 = vmatprep.mubr.f32.mxu0 %v1345
      %1826 = vmatmul.mubr.f32.gmra.mxu0 %v1344
      %v1827 = vpop.f32.mrf.mxu0
      %v1828 = vadd.f32 %v1638, %v1827
      %v1829 = vpop.f32.mrf.mxu0
      %1830 = vmatprep.mubr.f32.mxu0 %v1352
      %1831 = vmatmul.mubr.f32.gmra.mxu0 %v1351
      %v1832 = vpop.f32.mrf.mxu0
      %v1833 = vadd.f32 %v1643, %v1832
      %v1834 = vpop.f32.mrf.mxu0
      %1835 = vmatprep.mubr.f32.mxu0 %v1359
      %1836 = vmatmul.mubr.f32.gmra.mxu0 %v1358
      %v1837 = vpop.f32.mrf.mxu0
      %v1838 = vadd.f32 %v1648, %v1837
      %v1839 = vpop.f32.mrf.mxu0
      %1840 = vmatprep.mubr.f32.mxu0 %v1366
      %1841 = vmatmul.mubr.f32.gmra.mxu0 %v1365
      %v1842 = vpop.f32.mrf.mxu0
      %v1843 = vadd.f32 %v1653, %v1842
      %v1844 = vpop.f32.mrf.mxu0
      %1845 = vmatprep.mubr.f32.mxu0 %v1373
      %1846 = vmatmul.mubr.f32.gmra.mxu0 %v1372
      %v1847 = vpop.f32.mrf.mxu0
      %v1848 = vadd.f32 %v1658, %v1847
      %v1849 = vpop.f32.mrf.mxu0
      %1850 = vmatprep.mubr.f32.mxu0 %v1380
      %1851 = vmatmul.mubr.f32.gmra.mxu0 %v1379
      %v1852 = vpop.f32.mrf.mxu0
      %v1853 = vadd.f32 %v1663, %v1852
      %v1854 = vpop.f32.mrf.mxu0
      %1855 = vmatprep.mubr.f32.mxu0 %v1387
      %1856 = vmatmul.mubr.f32.gmra.mxu0 %v1386
      %v1857 = vpop.f32.mrf.mxu0
      %v1858 = vadd.f32 %v1668, %v1857
      %v1859 = vpop.f32.mrf.mxu0
      %1860 = vmatprep.mubr.f32.mxu0 %v1394
      %1861 = vmatmul.mubr.f32.gmra.mxu0 %v1393
      %v1862 = vpop.f32.mrf.mxu0
      %v1863 = vadd.f32 %v1673, %v1862
      %v1864 = vpop.f32.mrf.mxu0
      %1865 = vmatprep.mubr.f32.mxu0 %v1401
      %1866 = vmatmul.mubr.f32.gmra.mxu0 %v1400
      %v1867 = vpop.f32.mrf.mxu0
      %v1868 = vadd.f32 %v1678, %v1867
      %v1869 = vpop.f32.mrf.mxu0
      %1870 = vmatprep.mubr.f32.mxu0 %v1408
      %1871 = vmatmul.mubr.f32.gmra.mxu0 %v1407
      %v1872 = vpop.f32.mrf.mxu0
      %v1873 = vadd.f32 %v1683, %v1872
      %v1874 = vpop.f32.mrf.mxu0
      %1875 = vmatprep.mubr.f32.mxu0 %v1415
      %1876 = vmatmul.mubr.f32.gmra.mxu0 %v1414
      %v1877 = vpop.f32.mrf.mxu0
      %v1878 = vadd.f32 %v1688, %v1877
      %v1879 = vpop.f32.mrf.mxu0
      %1880 = vmatprep.mubr.f32.mxu0 %v1422
      %1881 = vmatmul.mubr.f32.gmra.mxu0 %v1421
      %v1882 = vpop.f32.mrf.mxu0
      %v1883 = vadd.f32 %v1693, %v1882
      %v1884 = vpop.f32.mrf.mxu0
      %1885 = vmatprep.mubr.f32.mxu0 %v1429
      %1886 = vmatmul.mubr.f32.gmra.mxu0 %v1428
      %v1887 = vpop.f32.mrf.mxu0
      %v1888 = vadd.f32 %v1698, %v1887
      %v1889 = vpop.f32.mrf.mxu0
      %1890 = vmatprep.mubr.f32.mxu0 %v1436
      %1891 = vmatmul.mubr.f32.gmra.mxu0 %v1435
      %v1892 = vpop.f32.mrf.mxu0
      %v1893 = vadd.f32 %v1703, %v1892
      %v1894 = vpop.f32.mrf.mxu0
      %1895 = vdwg.mxu0
      %1896 = vmatprep.subr.mxu0 0.0
      %1897 = vmatpush1.msra.mxu0 %v1246
      %1898 = vmatprep.subr.mxu0 0.0
      %1899 = vmatpush1.msra.mxu0 %v1245
      %1900 = vmatprep.subr.mxu0 0.0
      %1901 = vmatpush1.msra.mxu0 %v1244
      %1902 = vmatprep.subr.mxu0 0.0
      %1903 = vmatpush1.msra.mxu0 %v1243
      %1904 = vmatprep.subr.mxu0 0.0
      %1905 = vmatpush1.msra.mxu0 %v1242
      %1906 = vmatprep.subr.mxu0 0.0
      %1907 = vmatpush1.msra.mxu0 %v1241
      %1908 = vmatprep.subr.mxu0 0.0
      %1909 = vmatpush1.msra.mxu0 %v1240
      %1910 = vmatprep.subr.mxu0 0.0
      %1911 = vmatpush1.msra.mxu0 %v1239
      %1912 = vmatprep.subr.mxu0 0.0
      %1913 = vmatpush1.msra.mxu0 %v1238
      %1914 = vmatprep.subr.mxu0 0.0
      %1915 = vmatpush1.msra.mxu0 %v1237
      %1916 = vmatprep.subr.mxu0 0.0
      %1917 = vmatpush1.msra.mxu0 %v1236
      %1918 = vmatprep.subr.mxu0 0.0
      %1919 = vmatpush1.msra.mxu0 %v1235
      %1920 = vmatprep.subr.mxu0 0.0
      %1921 = vmatpush1.msra.mxu0 %v1234
      %1922 = vmatprep.subr.mxu0 0.0
      %1923 = vmatpush1.msra.mxu0 %v1233
      %1924 = vmatprep.subr.mxu0 0.0
      %1925 = vmatpush1.msra.mxu0 %v1232
      %1926 = vmatprep.subr.mxu0 0.0
      %1927 = vmatpush1.msra.mxu0 %v1231
      %1928 = vmatprep.subr.mxu0 0.0
      %1929 = vmatpush2.msra.mxu0 %v1262
      %1930 = vmatprep.subr.mxu0 0.0
      %1931 = vmatpush2.msra.mxu0 %v1261
      %1932 = vmatprep.subr.mxu0 0.0
      %1933 = vmatpush2.msra.mxu0 %v1260
      %1934 = vmatprep.subr.mxu0 0.0
      %1935 = vmatpush2.msra.mxu0 %v1259
      %1936 = vmatprep.subr.mxu0 0.0
      %1937 = vmatpush2.msra.mxu0 %v1258
      %1938 = vmatprep.subr.mxu0 0.0
      %1939 = vmatpush2.msra.mxu0 %v1257
      %1940 = vmatprep.subr.mxu0 0.0
      %1941 = vmatpush2.msra.mxu0 %v1256
      %1942 = vmatprep.subr.mxu0 0.0
      %1943 = vmatpush2.msra.mxu0 %v1255
      %1944 = vmatprep.subr.mxu0 0.0
      %1945 = vmatpush2.msra.mxu0 %v1254
      %1946 = vmatprep.subr.mxu0 0.0
      %1947 = vmatpush2.msra.mxu0 %v1253
      %1948 = vmatprep.subr.mxu0 0.0
      %1949 = vmatpush2.msra.mxu0 %v1252
      %1950 = vmatprep.subr.mxu0 0.0
      %1951 = vmatpush2.msra.mxu0 %v1251
      %1952 = vmatprep.subr.mxu0 0.0
      %1953 = vmatpush2.msra.mxu0 %v1250
      %1954 = vmatprep.subr.mxu0 0.0
      %1955 = vmatpush2.msra.mxu0 %v1249
      %1956 = vmatprep.subr.mxu0 0.0
      %1957 = vmatpush2.msra.mxu0 %v1248
      %1958 = vmatprep.subr.mxu0 0.0
      %1959 = vmatpush2.msra.mxu0 %v1247
      %1960 = vmatprep.mubr.f32.mxu0 %v1270
      %1961 = vmatmul.mubr.f32.gmra.mxu0 %v1269
      %v1962 = vpop.f32.mrf.mxu0
      %v1963 = vadd.f32 %v1773, %v1962
      %v1964 = vpop.f32.mrf.mxu0
      %1965 = vmatprep.mubr.f32.mxu0 %v1277
      %1966 = vmatmul.mubr.f32.gmra.mxu0 %v1276
      %v1967 = vpop.f32.mrf.mxu0
      %v1968 = vadd.f32 %v1778, %v1967
      %v1969 = vpop.f32.mrf.mxu0
      %1970 = vmatprep.mubr.f32.mxu0 %v1284
      %1971 = vmatmul.mubr.f32.gmra.mxu0 %v1283
      %v1972 = vpop.f32.mrf.mxu0
      %v1973 = vadd.f32 %v1783, %v1972
      %v1974 = vpop.f32.mrf.mxu0
      %1975 = vmatprep.mubr.f32.mxu0 %v1291
      %1976 = vmatmul.mubr.f32.gmra.mxu0 %v1290
      %v1977 = vpop.f32.mrf.mxu0
      %v1978 = vadd.f32 %v1788, %v1977
      %v1979 = vpop.f32.mrf.mxu0
      %1980 = vmatprep.mubr.f32.mxu0 %v1298
      %1981 = vmatmul.mubr.f32.gmra.mxu0 %v1297
      %v1982 = vpop.f32.mrf.mxu0
      %v1983 = vadd.f32 %v1793, %v1982
      %v1984 = vpop.f32.mrf.mxu0
      %1985 = vmatprep.mubr.f32.mxu0 %v1305
      %1986 = vmatmul.mubr.f32.gmra.mxu0 %v1304
      %v1987 = vpop.f32.mrf.mxu0
      %v1988 = vadd.f32 %v1798, %v1987
      %v1989 = vpop.f32.mrf.mxu0
      %1990 = vmatprep.mubr.f32.mxu0 %v1312
      %1991 = vmatmul.mubr.f32.gmra.mxu0 %v1311
      %v1992 = vpop.f32.mrf.mxu0
      %v1993 = vadd.f32 %v1803, %v1992
      %v1994 = vpop.f32.mrf.mxu0
      %1995 = vmatprep.mubr.f32.mxu0 %v1319
      %1996 = vmatmul.mubr.f32.gmra.mxu0 %v1318
      %v1997 = vpop.f32.mrf.mxu0
      %v1998 = vadd.f32 %v1808, %v1997
      %v1999 = vpop.f32.mrf.mxu0
      %2000 = vmatprep.mubr.f32.mxu0 %v1326
      %2001 = vmatmul.mubr.f32.gmra.mxu0 %v1325
      %v2002 = vpop.f32.mrf.mxu0
      %v2003 = vadd.f32 %v1813, %v2002
      %v2004 = vpop.f32.mrf.mxu0
      %2005 = vmatprep.mubr.f32.mxu0 %v1333
      %2006 = vmatmul.mubr.f32.gmra.mxu0 %v1332
      %v2007 = vpop.f32.mrf.mxu0
      %v2008 = vadd.f32 %v1818, %v2007
      %v2009 = vpop.f32.mrf.mxu0
      %2010 = vmatprep.mubr.f32.mxu0 %v1340
      %2011 = vmatmul.mubr.f32.gmra.mxu0 %v1339
      %v2012 = vpop.f32.mrf.mxu0
      %v2013 = vadd.f32 %v1823, %v2012
      %v2014 = vpop.f32.mrf.mxu0
      %2015 = vmatprep.mubr.f32.mxu0 %v1347
      %2016 = vmatmul.mubr.f32.gmra.mxu0 %v1346
      %v2017 = vpop.f32.mrf.mxu0
      %v2018 = vadd.f32 %v1828, %v2017
      %v2019 = vpop.f32.mrf.mxu0
      %2020 = vmatprep.mubr.f32.mxu0 %v1354
      %2021 = vmatmul.mubr.f32.gmra.mxu0 %v1353
      %v2022 = vpop.f32.mrf.mxu0
      %v2023 = vadd.f32 %v1833, %v2022
      %v2024 = vpop.f32.mrf.mxu0
      %2025 = vmatprep.mubr.f32.mxu0 %v1361
      %2026 = vmatmul.mubr.f32.gmra.mxu0 %v1360
      %v2027 = vpop.f32.mrf.mxu0
      %v2028 = vadd.f32 %v1838, %v2027
      %v2029 = vpop.f32.mrf.mxu0
      %2030 = vmatprep.mubr.f32.mxu0 %v1368
      %2031 = vmatmul.mubr.f32.gmra.mxu0 %v1367
      %v2032 = vpop.f32.mrf.mxu0
      %v2033 = vadd.f32 %v1843, %v2032
      %v2034 = vpop.f32.mrf.mxu0
      %2035 = vmatprep.mubr.f32.mxu0 %v1375
      %2036 = vmatmul.mubr.f32.gmra.mxu0 %v1374
      %v2037 = vpop.f32.mrf.mxu0
      %v2038 = vadd.f32 %v1848, %v2037
      %v2039 = vpop.f32.mrf.mxu0
      %2040 = vmatprep.mubr.f32.mxu0 %v1382
      %2041 = vmatmul.mubr.f32.gmra.mxu0 %v1381
      %v2042 = vpop.f32.mrf.mxu0
      %v2043 = vadd.f32 %v1853, %v2042
      %v2044 = vpop.f32.mrf.mxu0
      %2045 = vmatprep.mubr.f32.mxu0 %v1389
      %2046 = vmatmul.mubr.f32.gmra.mxu0 %v1388
      %v2047 = vpop.f32.mrf.mxu0
      %v2048 = vadd.f32 %v1858, %v2047
      %v2049 = vpop.f32.mrf.mxu0
      %2050 = vmatprep.mubr.f32.mxu0 %v1396
      %2051 = vmatmul.mubr.f32.gmra.mxu0 %v1395
      %v2052 = vpop.f32.mrf.mxu0
      %v2053 = vadd.f32 %v1863, %v2052
      %v2054 = vpop.f32.mrf.mxu0
      %2055 = vmatprep.mubr.f32.mxu0 %v1403
      %2056 = vmatmul.mubr.f32.gmra.mxu0 %v1402
      %v2057 = vpop.f32.mrf.mxu0
      %v2058 = vadd.f32 %v1868, %v2057
      %v2059 = vpop.f32.mrf.mxu0
      %2060 = vmatprep.mubr.f32.mxu0 %v1410
      %2061 = vmatmul.mubr.f32.gmra.mxu0 %v1409
      %v2062 = vpop.f32.mrf.mxu0
      %v2063 = vadd.f32 %v1873, %v2062
      %v2064 = vpop.f32.mrf.mxu0
      %2065 = vmatprep.mubr.f32.mxu0 %v1417
      %2066 = vmatmul.mubr.f32.gmra.mxu0 %v1416
      %v2067 = vpop.f32.mrf.mxu0
      %v2068 = vadd.f32 %v1878, %v2067
      %v2069 = vpop.f32.mrf.mxu0
      %2070 = vmatprep.mubr.f32.mxu0 %v1424
      %2071 = vmatmul.mubr.f32.gmra.mxu0 %v1423
      %v2072 = vpop.f32.mrf.mxu0
      %v2073 = vadd.f32 %v1883, %v2072
      %v2074 = vpop.f32.mrf.mxu0
      %2075 = vmatprep.mubr.f32.mxu0 %v1431
      %2076 = vmatmul.mubr.f32.gmra.mxu0 %v1430
      %v2077 = vpop.f32.mrf.mxu0
      %v2078 = vadd.f32 %v1888, %v2077
      %v2079 = vpop.f32.mrf.mxu0
      %2080 = vmatprep.mubr.f32.mxu0 %v1438
      %2081 = vmatmul.mubr.f32.gmra.mxu0 %v1437
      %v2082 = vpop.f32.mrf.mxu0
      %v2083 = vadd.f32 %v1893, %v2082
      %v2084 = vpop.f32.mrf.mxu0
      %2085 = vdwg.mxu0
      %2086 = vmatprep.subr.mxu0 0.0
      %2087 = vmatpush1.msra.mxu0 0.0
      %2088 = vmatprep.subr.mxu0 0.0
      %2089 = vmatpush1.msra.mxu0 0.0
      %2090 = vmatprep.subr.mxu0 0.0
      %2091 = vmatpush1.msra.mxu0 0.0
      %2092 = vmatprep.subr.mxu0 0.0
      %2093 = vmatpush1.msra.mxu0 0.0
      %2094 = vmatprep.subr.mxu0 0.0
      %2095 = vmatpush1.msra.mxu0 0.0
      %2096 = vmatprep.subr.mxu0 0.0
      %2097 = vmatpush1.msra.mxu0 0.0
      %2098 = vmatprep.subr.mxu0 0.0
      %2099 = vmatpush1.msra.mxu0 0.0
      %2100 = vmatprep.subr.mxu0 0.0
      %2101 = vmatpush1.msra.mxu0 0.0
      %2102 = vmatprep.subr.mxu0 0.0
      %2103 = vmatpush1.msra.mxu0 0.0
      %2104 = vmatprep.subr.mxu0 0.0
      %2105 = vmatpush1.msra.mxu0 0.0
      %2106 = vmatprep.subr.mxu0 0.0
      %2107 = vmatpush1.msra.mxu0 0.0
      %2108 = vmatprep.subr.mxu0 0.0
      %2109 = vmatpush1.msra.mxu0 0.0
      %2110 = vmatprep.subr.mxu0 0.0
      %2111 = vmatpush1.msra.mxu0 0.0
      %2112 = vmatprep.subr.mxu0 0.0
      %2113 = vmatpush1.msra.mxu0 0.0
      %2114 = vmatprep.subr.mxu0 0.0
      %2115 = vmatpush1.msra.mxu0 %v1264
      %2116 = vmatprep.subr.mxu0 0.0
      %2117 = vmatpush1.msra.mxu0 %v1263
      %2118 = vmatprep.subr.mxu0 0.0
      %2119 = vmatpush2.msra.mxu0 0.0
      %2120 = vmatprep.subr.mxu0 0.0
      %2121 = vmatpush2.msra.mxu0 0.0
      %2122 = vmatprep.subr.mxu0 0.0
      %2123 = vmatpush2.msra.mxu0 0.0
      %2124 = vmatprep.subr.mxu0 0.0
      %2125 = vmatpush2.msra.mxu0 0.0
      %2126 = vmatprep.subr.mxu0 0.0
      %2127 = vmatpush2.msra.mxu0 0.0
      %2128 = vmatprep.subr.mxu0 0.0
      %2129 = vmatpush2.msra.mxu0 0.0
      %2130 = vmatprep.subr.mxu0 0.0
      %2131 = vmatpush2.msra.mxu0 0.0
      %2132 = vmatprep.subr.mxu0 0.0
      %2133 = vmatpush2.msra.mxu0 0.0
      %2134 = vmatprep.subr.mxu0 0.0
      %2135 = vmatpush2.msra.mxu0 0.0
      %2136 = vmatprep.subr.mxu0 0.0
      %2137 = vmatpush2.msra.mxu0 0.0
      %2138 = vmatprep.subr.mxu0 0.0
      %2139 = vmatpush2.msra.mxu0 0.0
      %2140 = vmatprep.subr.mxu0 0.0
      %2141 = vmatpush2.msra.mxu0 0.0
      %2142 = vmatprep.subr.mxu0 0.0
      %2143 = vmatpush2.msra.mxu0 0.0
      %2144 = vmatprep.subr.mxu0 0.0
      %2145 = vmatpush2.msra.mxu0 0.0
      %2146 = vmatprep.subr.mxu0 0.0
      %2147 = vmatpush2.msra.mxu0 0.0
      %2148 = vmatprep.subr.mxu0 0.0
      %2149 = vmatpush2.msra.mxu0 0.0
      %2150 = vmatprep.mubr.f32.mxu0 0.0
      %2151 = vmatmul.mubr.f32.gmra.mxu0 %v1442
      %v2152 = vpop.f32.mrf.mxu0
      %v2153 = vadd.f32 %v1963, %v2152
      %v2154 = vpop.f32.mrf.mxu0
      %2155 = vmatprep.mubr.f32.mxu0 0.0
      %2156 = vmatmul.mubr.f32.gmra.mxu0 %v1445
      %v2157 = vpop.f32.mrf.mxu0
      %v2158 = vadd.f32 %v1968, %v2157
      %v2159 = vpop.f32.mrf.mxu0
      %2160 = vmatprep.mubr.f32.mxu0 0.0
      %2161 = vmatmul.mubr.f32.gmra.mxu0 %v1448
      %v2162 = vpop.f32.mrf.mxu0
      %v2163 = vadd.f32 %v1973, %v2162
      %v2164 = vpop.f32.mrf.mxu0
      %2165 = vmatprep.mubr.f32.mxu0 0.0
      %2166 = vmatmul.mubr.f32.gmra.mxu0 %v1451
      %v2167 = vpop.f32.mrf.mxu0
      %v2168 = vadd.f32 %v1978, %v2167
      %v2169 = vpop.f32.mrf.mxu0
      %2170 = vmatprep.mubr.f32.mxu0 0.0
      %2171 = vmatmul.mubr.f32.gmra.mxu0 %v1454
      %v2172 = vpop.f32.mrf.mxu0
      %v2173 = vadd.f32 %v1983, %v2172
      %v2174 = vpop.f32.mrf.mxu0
      %2175 = vmatprep.mubr.f32.mxu0 0.0
      %2176 = vmatmul.mubr.f32.gmra.mxu0 %v1457
      %v2177 = vpop.f32.mrf.mxu0
      %v2178 = vadd.f32 %v1988, %v2177
      %v2179 = vpop.f32.mrf.mxu0
      %2180 = vmatprep.mubr.f32.mxu0 0.0
      %2181 = vmatmul.mubr.f32.gmra.mxu0 %v1460
      %v2182 = vpop.f32.mrf.mxu0
      %v2183 = vadd.f32 %v1993, %v2182
      %v2184 = vpop.f32.mrf.mxu0
      %2185 = vmatprep.mubr.f32.mxu0 0.0
      %2186 = vmatmul.mubr.f32.gmra.mxu0 %v1463
      %v2187 = vpop.f32.mrf.mxu0
      %v2188 = vadd.f32 %v1998, %v2187
      %v2189 = vpop.f32.mrf.mxu0
      %2190 = vmatprep.mubr.f32.mxu0 0.0
      %2191 = vmatmul.mubr.f32.gmra.mxu0 %v1466
      %v2192 = vpop.f32.mrf.mxu0
      %v2193 = vadd.f32 %v2003, %v2192
      %v2194 = vpop.f32.mrf.mxu0
      %2195 = vmatprep.mubr.f32.mxu0 0.0
      %2196 = vmatmul.mubr.f32.gmra.mxu0 %v1469
      %v2197 = vpop.f32.mrf.mxu0
      %v2198 = vadd.f32 %v2008, %v2197
      %v2199 = vpop.f32.mrf.mxu0
      %2200 = vmatprep.mubr.f32.mxu0 0.0
      %2201 = vmatmul.mubr.f32.gmra.mxu0 %v1472
      %v2202 = vpop.f32.mrf.mxu0
      %v2203 = vadd.f32 %v2013, %v2202
      %v2204 = vpop.f32.mrf.mxu0
      %2205 = vmatprep.mubr.f32.mxu0 0.0
      %2206 = vmatmul.mubr.f32.gmra.mxu0 %v1475
      %v2207 = vpop.f32.mrf.mxu0
      %v2208 = vadd.f32 %v2018, %v2207
      %v2209 = vpop.f32.mrf.mxu0
      %2210 = vmatprep.mubr.f32.mxu0 0.0
      %2211 = vmatmul.mubr.f32.gmra.mxu0 %v1478
      %v2212 = vpop.f32.mrf.mxu0
      %v2213 = vadd.f32 %v2023, %v2212
      %v2214 = vpop.f32.mrf.mxu0
      %2215 = vmatprep.mubr.f32.mxu0 0.0
      %2216 = vmatmul.mubr.f32.gmra.mxu0 %v1481
      %v2217 = vpop.f32.mrf.mxu0
      %v2218 = vadd.f32 %v2028, %v2217
      %v2219 = vpop.f32.mrf.mxu0
      %2220 = vmatprep.mubr.f32.mxu0 0.0
      %2221 = vmatmul.mubr.f32.gmra.mxu0 %v1484
      %v2222 = vpop.f32.mrf.mxu0
      %v2223 = vadd.f32 %v2033, %v2222
      %v2224 = vpop.f32.mrf.mxu0
      %2225 = vmatprep.mubr.f32.mxu0 0.0
      %2226 = vmatmul.mubr.f32.gmra.mxu0 %v1487
      %v2227 = vpop.f32.mrf.mxu0
      %v2228 = vadd.f32 %v2038, %v2227
      %v2229 = vpop.f32.mrf.mxu0
      %2230 = vmatprep.mubr.f32.mxu0 0.0
      %2231 = vmatmul.mubr.f32.gmra.mxu0 %v1490
      %v2232 = vpop.f32.mrf.mxu0
      %v2233 = vadd.f32 %v2043, %v2232
      %v2234 = vpop.f32.mrf.mxu0
      %2235 = vmatprep.mubr.f32.mxu0 0.0
      %2236 = vmatmul.mubr.f32.gmra.mxu0 %v1493
      %v2237 = vpop.f32.mrf.mxu0
      %v2238 = vadd.f32 %v2048, %v2237
      %v2239 = vpop.f32.mrf.mxu0
      %2240 = vmatprep.mubr.f32.mxu0 0.0
      %2241 = vmatmul.mubr.f32.gmra.mxu0 %v1496
      %v2242 = vpop.f32.mrf.mxu0
      %v2243 = vadd.f32 %v2053, %v2242
      %v2244 = vpop.f32.mrf.mxu0
      %2245 = vmatprep.mubr.f32.mxu0 0.0
      %2246 = vmatmul.mubr.f32.gmra.mxu0 %v1499
      %v2247 = vpop.f32.mrf.mxu0
      %v2248 = vadd.f32 %v2058, %v2247
      %v2249 = vpop.f32.mrf.mxu0
      %2250 = vmatprep.mubr.f32.mxu0 0.0
      %2251 = vmatmul.mubr.f32.gmra.mxu0 %v1502
      %v2252 = vpop.f32.mrf.mxu0
      %v2253 = vadd.f32 %v2063, %v2252
      %v2254 = vpop.f32.mrf.mxu0
      %2255 = vmatprep.mubr.f32.mxu0 0.0
      %2256 = vmatmul.mubr.f32.gmra.mxu0 %v1505
      %v2257 = vpop.f32.mrf.mxu0
      %v2258 = vadd.f32 %v2068, %v2257
      %v2259 = vpop.f32.mrf.mxu0
      %2260 = vmatprep.mubr.f32.mxu0 0.0
      %2261 = vmatmul.mubr.f32.gmra.mxu0 %v1508
      %v2262 = vpop.f32.mrf.mxu0
      %v2263 = vadd.f32 %v2073, %v2262
      %v2264 = vpop.f32.mrf.mxu0
      %2265 = vmatprep.mubr.f32.mxu0 0.0
      %2266 = vmatmul.mubr.f32.gmra.mxu0 %v1511
      %v2267 = vpop.f32.mrf.mxu0
      %v2268 = vadd.f32 %v2078, %v2267
      %v2269 = vpop.f32.mrf.mxu0
      %2270 = vmatprep.mubr.f32.mxu0 0.0
      %2271 = vmatmul.mubr.f32.gmra.mxu0 %v1514
      %v2272 = vpop.f32.mrf.mxu0
      %v2273 = vadd.f32 %v2083, %v2272
      %v2274 = vpop.f32.mrf.mxu0
      %2275 = vdwg.mxu0
      %2276 = vst [vmem:[%s197] sm:$0xff] %v2153
      %2277 = vst [vmem:[%s197 + $0x8] sm:$0xff] %v2158
      %2278 = vst [vmem:[%s197 + $0x10] sm:$0xff] %v2163
      %2279 = vst [vmem:[%s197 + $0x18] sm:$0xff] %v2168
      %2280 = vst [vmem:[%s197 + $0x20] sm:$0xff] %v2173
      %2281 = vst [vmem:[%s197 + $0x28] sm:$0xff] %v2178
      %2282 = vst [vmem:[%s197 + $0x30] sm:$0xff] %v2183
      %2283 = vst [vmem:[%s197 + $0x38] sm:$0xff] %v2188
      %2284 = vst [vmem:[%s197 + $0x40] sm:$0xff] %v2193
      %2285 = vst [vmem:[%s197 + $0x48] sm:$0xff] %v2198
      %2286 = vst [vmem:[%s197 + $0x50] sm:$0xff] %v2203
      %2287 = vst [vmem:[%s197 + $0x58] sm:$0xff] %v2208
      %2288 = vst [vmem:[%s197 + $0x60] sm:$0xff] %v2213
      %2289 = vst [vmem:[%s197 + $0x68] sm:$0xff] %v2218
      %2290 = vst [vmem:[%s197 + $0x70] sm:$0xff] %v2223
      %2291 = vst [vmem:[%s197 + $0x78] sm:$0xff] %v2228
      %2292 = vst [vmem:[%s197 + $0x80] sm:$0xff] %v2233
      %2293 = vst [vmem:[%s197 + $0x88] sm:$0xff] %v2238
      %2294 = vst [vmem:[%s197 + $0x90] sm:$0xff] %v2243
      %2295 = vst [vmem:[%s197 + $0x98] sm:$0xff] %v2248
      %2296 = vst [vmem:[%s197 + $0xa0] sm:$0xff] %v2253
      %2297 = vst [vmem:[%s197 + $0xa8] sm:$0xff] %v2258
      %2298 = vst [vmem:[%s197 + $0xb0] sm:$0xff] %v2263
      %2299 = vst [vmem:[%s197 + $0xb8] sm:$0xff] %v2268
      %2300 = vst [vmem:[%s197 + $0xc0] sm:$0xf] %v2273
      %p2301 = scmp.lt.s32.totalorder %s15, 1
      %s2302 = scalar_select %p2301, %s15, 1
      %s2303 = smul.addr %s2302, 25
      %s2304 = smul.addr %s2303, 8
      %s2305 = scalar_lea.vmem %s4, %s2304
      // Predicated region
      $region37: #{lenet5_forward.3} parent=35 // pred_check
        %p2306 = pneg %p122
      $region38: #{lenet5_forward.3} parent=35 // pred_check_branch
        %2308 = sbr.rel (%p2306) target = $region40
      $region39: #{lenet5_forward.3} parent=35 // pred_region
        _
      $region40: #{lenet5_forward.3} parent=35 // pred_fallthru
        _
    $region36: #{lenet5_forward.3} parent=5 // pred_fallthru
      _
    %p2309 = scmp.le.s32.totalorder 2, %s10
    // Predicated region
    $region41: #{lenet5_forward.3} parent=5 // pred_check
      %p2310 = pneg %p2309
    $region42: #{lenet5_forward.3} parent=5 // pred_check_branch
      %2312 = sbr.rel (%p2310) target = $region44
    $region43: #{lenet5_forward.3} parent=5 // pred_region
      %s2313 = ssub.s32 %s10, 2
      // Predicated region
      $region45: #{lenet5_forward.3} parent=43 // pred_check
        %p2314 = pneg %p128
      $region46: #{lenet5_forward.3} parent=43 // pred_check_branch
        %2316 = sbr.rel (%p2314) target = $region48
      $region47: #{lenet5_forward.3} parent=43 // pred_region
        %p2317 = scmp.lt.s32.totalorder %s16, 1
        %s2318 = scalar_select %p2317, %s16, 1
        %s2319 = smul.addr %s2318, 25
        %s2320 = smul.addr %s2319, 8
        %s2321 = scalar_lea.vmem %s4, %s2320
      $region48: #{lenet5_forward.3} parent=43 // pred_fallthru
        _
    $region44: #{lenet5_forward.3} parent=5 // pred_fallthru
      _
  $region6: #{lenet5_forward.3} parent=0 // loop_footer
    %s14 = sadd.s32 1, %s10
  $region7: #{lenet5_forward.3} parent=0 // loop_footer_branch
    %9 = sbr.rel target = $region3
  $region8: #{lenet5_forward.3} parent=0 // loop_exit
    _

// kernel: lenet5_forward.4
$region0: #{lenet5_forward.4}
  #allocation0 [shape = 'u32[]', space=smem, size = 0x4, offset = 0x4, fixed_abs, tag = 'smem constant byte address 0x4 - core index']
  #allocation1 [shape = 'u32[144,128]{1,0:T(1,128)}', space=vmem, size = 0x12000, scoped, tag = 'internal scratch']
  %s0 = inlined_call_operand.vmem [shape: f32[2,100,150], index: 0, kind: input, shape index: {}]
  %s1 = inlined_call_operand.vmem [shape: f32[150,128], index: 1, kind: input, shape index: {}]
  %s2 = inlined_call_operand.vmem [shape: f32[1,128], index: 2, kind: input, shape index: {}]
  %s3 = inlined_call_operand.vmem [shape: f32[25,100], index: 3, kind: input, shape index: {}]
  %s4 = inlined_call_operand.vmem [shape: f32[2,25,128], index: 4, kind: output, shape index: {}]
  %s5 = sld [smem:[#allocation0]]
  $region49: #{lenet5_forward.4} parent=0
    _
  %s7 = ssub.s32 1, %s5
  %s8 = scalar_select 0, %s7, %s5
  loop: start=0, step=1, limit=4
  $region2: #{lenet5_forward.4} parent=0 // loop_pre_header
    _
  $region3: #{lenet5_forward.4} parent=0 // loop_header
    %s10 = sphi 0, %s14
    %p11 = scmp.ge.s32.totalorder %s10, 4
    %s20 = sphi 0, %s22
    %s23 = sphi 0, %s20
    %s24 = sphi 0, %s23
    %s40 = sphi 0, %s24
    %s44 = sphi 0, %s44
    %s46 = sphi 0, %s44
    %s47 = sphi 0, %s46
    %s61 = sphi 0, %s47
    %s65 = sphi 0, %s65
    %s67 = sphi 0, %s65
    %s68 = sphi 0, %s67
    %s82 = sphi 0, %s68
    %s86 = sphi 0, %s86
    %s88 = sphi 0, %s86
    %s89 = sphi 0, %s88
    %s103 = sphi 0, %s89
    %s109 = sphi 0, %s111
    %s112 = sphi 0, %s109
    %s113 = sphi 0, %s112
    %s129 = sphi 0, %s113
  $region4: #{lenet5_forward.4} parent=0 // loop_header_branch
    %13 = sbr.rel (%p11) target = $region8
  $region5: #{lenet5_forward.4} parent=0 // loop_body
    %s15 = ssub.s32 %s10, 1
    %s16 = ssub.s32 %s10, 2
    %s17 = sadd.s32 %s10, 1
    %s18 = ssub.s32 %s10, %s17
    %p19 = scmp.eq.s32.totalorder %s18, 0
    %s21 = sadd.s32 %s20, 1
    %s22 = scalar_select %p19, %s20, %s21
    %p25 = pneg %p19
    %p26 = scmp.eq.s32.totalorder %s10, 1
    %p27 = por %p25, %p26
    %p28 = scmp.ne.s32.totalorder %s20, %s23
    %p29 = scmp.eq.s32.totalorder %s10, 0
    %p30 = por %p28, %p29
    %p31 = scmp.ne.s32.totalorder %s20, %s23
    %p32 = scmp.eq.s32.totalorder %s15, 1
    %p33 = por %p31, %p32
    %p34 = scmp.ne.s32.totalorder %s23, %s24
    %p35 = scmp.eq.s32.totalorder %s15, 0
    %p36 = por %p34, %p35
    %p37 = scmp.ne.s32.totalorder %s23, %s24
    %p38 = scmp.eq.s32.totalorder %s16, 1
    %p39 = por %p37, %p38
    %p41 = scmp.ne.s32.totalorder %s24, %s40
    %p42 = scmp.eq.s32.totalorder %s16, 0
    %p43 = por %p41, %p42
    %s45 = sadd.s32 %s44, 1
    %p48 = scmp.eq.s32.totalorder %s10, 1
    %p49 = scmp.ne.s32.totalorder %s44, %s46
    %p50 = scmp.eq.s32.totalorder %s10, 0
    %p51 = por %p49, %p50
    %p52 = scmp.ne.s32.totalorder %s44, %s46
    %p53 = scmp.eq.s32.totalorder %s15, 1
    %p54 = por %p52, %p53
    %p55 = scmp.ne.s32.totalorder %s46, %s47
    %p56 = scmp.eq.s32.totalorder %s15, 0
    %p57 = por %p55, %p56
    %p58 = scmp.ne.s32.totalorder %s46, %s47
    %p59 = scmp.eq.s32.totalorder %s16, 1
    %p60 = por %p58, %p59
    %p62 = scmp.ne.s32.totalorder %s47, %s61
    %p63 = scmp.eq.s32.totalorder %s16, 0
    %p64 = por %p62, %p63
    %s66 = sadd.s32 %s65, 1
    %p69 = scmp.eq.s32.totalorder %s10, 1
    %p70 = scmp.ne.s32.totalorder %s65, %s67
    %p71 = scmp.eq.s32.totalorder %s10, 0
    %p72 = por %p70, %p71
    %p73 = scmp.ne.s32.totalorder %s65, %s67
    %p74 = scmp.eq.s32.totalorder %s15, 1
    %p75 = por %p73, %p74
    %p76 = scmp.ne.s32.totalorder %s67, %s68
    %p77 = scmp.eq.s32.totalorder %s15, 0
    %p78 = por %p76, %p77
    %p79 = scmp.ne.s32.totalorder %s67, %s68
    %p80 = scmp.eq.s32.totalorder %s16, 1
    %p81 = por %p79, %p80
    %p83 = scmp.ne.s32.totalorder %s68, %s82
    %p84 = scmp.eq.s32.totalorder %s16, 0
    %p85 = por %p83, %p84
    %s87 = sadd.s32 %s86, 1
    %p90 = scmp.eq.s32.totalorder %s10, 1
    %p91 = scmp.ne.s32.totalorder %s86, %s88
    %p92 = scmp.eq.s32.totalorder %s10, 0
    %p93 = por %p91, %p92
    %p94 = scmp.ne.s32.totalorder %s86, %s88
    %p95 = scmp.eq.s32.totalorder %s15, 1
    %p96 = por %p94, %p95
    %p97 = scmp.ne.s32.totalorder %s88, %s89
    %p98 = scmp.eq.s32.totalorder %s15, 0
    %p99 = por %p97, %p98
    %p100 = scmp.ne.s32.totalorder %s88, %s89
    %p101 = scmp.eq.s32.totalorder %s16, 1
    %p102 = por %p100, %p101
    %p104 = scmp.ne.s32.totalorder %s89, %s103
    %p105 = scmp.eq.s32.totalorder %s16, 0
    %p106 = por %p104, %p105
    %s107 = ssub.s32 %s10, %s17
    %p108 = scmp.eq.s32.totalorder %s107, 0
    %s110 = sadd.s32 %s109, 1
    %s111 = scalar_select %p108, %s109, %s110
    %p114 = pneg %p108
    %p115 = scmp.eq.s32.totalorder %s10, 1
    %p116 = por %p114, %p115
    %p117 = scmp.ne.s32.totalorder %s109, %s112
    %p118 = scmp.eq.s32.totalorder %s10, 0
    %p119 = por %p117, %p118
    %p120 = scmp.ne.s32.totalorder %s109, %s112
    %p121 = scmp.eq.s32.totalorder %s15, 1
    %p122 = por %p120, %p121
    %p123 = scmp.ne.s32.totalorder %s112, %s113
    %p124 = scmp.eq.s32.totalorder %s15, 0
    %p125 = por %p123, %p124
    %p126 = scmp.ne.s32.totalorder %s112, %s113
    %p127 = scmp.eq.s32.totalorder %s16, 1
    %p128 = por %p126, %p127
    %p130 = scmp.ne.s32.totalorder %s113, %s129
    %p131 = scmp.eq.s32.totalorder %s16, 0
    %p132 = por %p130, %p131
    %p133 = scmp.le.s32.totalorder 1, %s10
    %p134 = scmp.lt.s32.totalorder %s10, 3
    %p135 = pnand %p133, %p134
    %p136 = pneg %p135
    // Predicated region
    $region9: #{lenet5_forward.4} parent=5 // pred_check
      _
    $region10: #{lenet5_forward.4} parent=5 // pred_check_branch
      %138 = sbr.rel (%p135) target = $region12
    $region11: #{lenet5_forward.4} parent=5 // pred_region
      %s139 = ssub.s32 %s10, 1
      // Predicated region
      $region13: #{lenet5_forward.4} parent=11 // pred_check
        %p140 = pneg %p57
      $region14: #{lenet5_forward.4} parent=11 // pred_check_branch
        %142 = sbr.rel (%p140) target = $region16
      $region15: #{lenet5_forward.4} parent=11 // pred_region
        _
      $region16: #{lenet5_forward.4} parent=11 // pred_fallthru
        _
      // Predicated region
      $region17: #{lenet5_forward.4} parent=11 // pred_check
        %p143 = pneg %p78
      $region18: #{lenet5_forward.4} parent=11 // pred_check_branch
        %145 = sbr.rel (%p143) target = $region20
      $region19: #{lenet5_forward.4} parent=11 // pred_region
        _
      $region20: #{lenet5_forward.4} parent=11 // pred_fallthru
        _
      // Predicated region
      $region21: #{lenet5_forward.4} parent=11 // pred_check
        %p146 = pneg %p99
      $region22: #{lenet5_forward.4} parent=11 // pred_check_branch
        %148 = sbr.rel (%p146) target = $region24
      $region23: #{lenet5_forward.4} parent=11 // pred_region
        _
      $region24: #{lenet5_forward.4} parent=11 // pred_fallthru
        _
    $region12: #{lenet5_forward.4} parent=5 // pred_fallthru
      _
    %p149 = scmp.lt.s32.totalorder %s10, 2
    // Predicated region
    $region25: #{lenet5_forward.4} parent=5 // pred_check
      %p150 = pneg %p149
    $region26: #{lenet5_forward.4} parent=5 // pred_check_branch
      %152 = sbr.rel (%p150) target = $region28
    $region27: #{lenet5_forward.4} parent=5 // pred_region
      // Predicated region
      $region29: #{lenet5_forward.4} parent=27 // pred_check
        %p153 = pneg %p30
      $region30: #{lenet5_forward.4} parent=27 // pred_check_branch
        %155 = sbr.rel (%p153) target = $region32
      $region31: #{lenet5_forward.4} parent=27 // pred_region
        %p156 = scmp.lt.s32.totalorder %s10, 1
        %s157 = scalar_select %p156, %s10, 1
        %s158 = smul.addr %s157, 26
        %s159 = smul.addr %s158, 8
        %s160 = scalar_lea.vmem %s0, %s159
      $region32: #{lenet5_forward.4} parent=27 // pred_fallthru
        _
    $region28: #{lenet5_forward.4} parent=5 // pred_fallthru
      _
    %p161 = scmp.le.s32.totalorder 1, %s10
    %p162 = scmp.lt.s32.totalorder %s10, 3
    %p163 = pnand %p161, %p162
    %p164 = pneg %p163
    // Predicated region
    $region33: #{lenet5_forward.4} parent=5 // pred_check
      _
    $region34: #{lenet5_forward.4} parent=5 // pred_check_branch
      %166 = sbr.rel (%p163) target = $region36
    $region35: #{lenet5_forward.4} parent=5 // pred_region
      %s167 = ssub.s32 %s10, 1
      %p168 = scmp.lt.s32.totalorder %s15, 1
      %s169 = scalar_select %p168, %s15, 1
      %s170 = smul.addr %s169, 26
      %s171 = smul.addr %s170, 8
      %s172 = scalar_lea.vmem %s0, %s171
      %p173 = pneg %p36
      %p174 = pneg %p33
      %p175 = pneg %p57
      %p176 = pneg %p54
      %p177 = pneg %p78
      %p178 = pneg %p75
      %p179 = pneg %p99
      %p180 = pneg %p96
      %p181 = pneg %p125
      %p182 = pneg %p122
      %p183 = scmp.lt.s32.totalorder %s15, 1
      %s184 = scalar_select %p183, %s15, 1
      %s185 = smul.addr %s184, 4
      %s186 = smul.addr %s185, 8
      %s187 = scalar_lea.vmem %s4, %s186
      %p188 = scmp.lt.s32.totalorder %s15, 1
      %s189 = scalar_select %p188, %s15, 1
      %s190 = smul.addr %s189, 26
      %s191 = smul.addr %s190, 8
      %s192 = scalar_lea.vmem %s0, %s191
      %p193 = scmp.lt.s32.totalorder %s15, 1
      %s194 = scalar_select %p193, %s15, 1
      %s195 = smul.addr %s194, 4
      %s196 = smul.addr %s195, 8
      %s197 = scalar_lea.vmem %s4, %s196
      %v198 = vld [vmem:[%s192] sm:$0xff]
      %v199 = vld [vmem:[%s192 + $0x8] sm:$0xff]
      %v200 = vld [vmem:[%s192 + $0x10] sm:$0xff]
      %v201 = vld [vmem:[%s192 + $0x18] sm:$0xff]
      %v202 = vld [vmem:[%s192 + $0x20] sm:$0xff]
      %v203 = vld [vmem:[%s192 + $0x28] sm:$0xff]
      %v204 = vld [vmem:[%s192 + $0x30] sm:$0xff]
      %v205 = vld [vmem:[%s192 + $0x38] sm:$0xff]
      %v206 = vld [vmem:[%s192 + $0x40] sm:$0xff]
      %v207 = vld [vmem:[%s192 + $0x48] sm:$0xff]
      %v208 = vld [vmem:[%s192 + $0x50] sm:$0xff]
      %v209 = vld [vmem:[%s192 + $0x58] sm:$0xff]
      %v210 = vld [vmem:[%s192 + $0x60] sm:$0xff]
      %v211 = vld [vmem:[%s192 + $0x68] sm:$0xff]
      %v212 = vld [vmem:[%s192 + $0x70] sm:$0xff]
      %v213 = vld [vmem:[%s192 + $0x78] sm:$0xff]
      %v214 = vld [vmem:[%s192 + $0x80] sm:$0xff]
      %v215 = vld [vmem:[%s192 + $0x88] sm:$0xff]
      %v216 = vld [vmem:[%s192 + $0x90] sm:$0xff]
      %v217 = vld [vmem:[%s192 + $0x98] sm:$0xff]
      %v218 = vld [vmem:[%s192 + $0xa0] sm:$0xff]
      %v219 = vld [vmem:[%s192 + $0xa8] sm:$0xff]
      %v220 = vld [vmem:[%s192 + $0xb0] sm:$0xff]
      %v221 = vld [vmem:[%s192 + $0xb8] sm:$0xff]
      %v222 = vld [vmem:[%s192 + $0xc0] sm:$0xf]
      %v223 = vld [vmem:[%s192 + $0xc8] sm:$0xf]
      %v224 = vld [vmem:[%s1] sm:$0xff]
      %v225 = vld [vmem:[%s1 + $0x8] sm:$0xff]
      %v226 = vld [vmem:[%s1 + $0x10] sm:$0xff]
      %v227 = vld [vmem:[%s1 + $0x18] sm:$0xff]
      %v228 = vld [vmem:[%s1 + $0x20] sm:$0xff]
      %v229 = vld [vmem:[%s1 + $0x28] sm:$0xff]
      %v230 = vld [vmem:[%s1 + $0x30] sm:$0xff]
      %v231 = vld [vmem:[%s1 + $0x38] sm:$0xff]
      %v232 = vld [vmem:[%s1 + $0x40] sm:$0xff]
      %v233 = vld [vmem:[%s1 + $0x48] sm:$0xff]
      %v234 = vld [vmem:[%s1 + $0x50] sm:$0xff]
      %v235 = vld [vmem:[%s1 + $0x58] sm:$0xff]
      %v236 = vld [vmem:[%s1 + $0x60] sm:$0xff]
      %v237 = vld [vmem:[%s1 + $0x68] sm:$0xff]
      %v238 = vld [vmem:[%s1 + $0x70] sm:$0xff]
      %v239 = vld [vmem:[%s1 + $0x78] sm:$0xff]
      %v240 = vld [vmem:[%s1 + $0x80] sm:$0xff]
      %v241 = vld [vmem:[%s1 + $0x88] sm:$0xff]
      %v242 = vld [vmem:[%s1 + $0x90] sm:$0x3f]
      %v243 = vld [vmem:[%s2] sm:$0x1]
      %v245 = vlaneseq
      %v246 = vshrl.u32 %v245, 7
      %v247 = vsub.s32 0, %v246
      %v248 = vrot.slane %v243, %v247
      %vm250 = vcmask 179200
      %v252 = vsel %vm250, %v199, 0
      %v255 = vsel %vm250, %v201, 0
      %v258 = vsel %vm250, %v203, 0
      %v261 = vsel %vm250, %v205, 0
      %v264 = vsel %vm250, %v207, 0
      %v267 = vsel %vm250, %v209, 0
      %v270 = vsel %vm250, %v211, 0
      %v273 = vsel %vm250, %v213, 0
      %v276 = vsel %vm250, %v215, 0
      %v279 = vsel %vm250, %v217, 0
      %v282 = vsel %vm250, %v219, 0
      %v285 = vsel %vm250, %v221, 0
      %v288 = vsel %vm250, %v223, 0
      %vm290 = vcmask 1045504
      %v292 = vsel %vm290, %v242, 0
      %294 = vmatprep.subr.mxu0 0.0
      %295 = vmatpush1.msra.mxu0 %v239
      %296 = vmatprep.subr.mxu0 0.0
      %297 = vmatpush1.msra.mxu0 %v238
      %298 = vmatprep.subr.mxu0 0.0
      %299 = vmatpush1.msra.mxu0 %v237
      %300 = vmatprep.subr.mxu0 0.0
      %301 = vmatpush1.msra.mxu0 %v236
      %302 = vmatprep.subr.mxu0 0.0
      %303 = vmatpush1.msra.mxu0 %v235
      %304 = vmatprep.subr.mxu0 0.0
      %305 = vmatpush1.msra.mxu0 %v234
      %306 = vmatprep.subr.mxu0 0.0
      %307 = vmatpush1.msra.mxu0 %v233
      %308 = vmatprep.subr.mxu0 0.0
      %309 = vmatpush1.msra.mxu0 %v232
      %310 = vmatprep.subr.mxu0 0.0
      %311 = vmatpush1.msra.mxu0 %v231
      %312 = vmatprep.subr.mxu0 0.0
      %313 = vmatpush1.msra.mxu0 %v230
      %314 = vmatprep.subr.mxu0 0.0
      %315 = vmatpush1.msra.mxu0 %v229
      %316 = vmatprep.subr.mxu0 0.0
      %317 = vmatpush1.msra.mxu0 %v228
      %318 = vmatprep.subr.mxu0 0.0
      %319 = vmatpush1.msra.mxu0 %v227
      %320 = vmatprep.subr.mxu0 0.0
      %321 = vmatpush1.msra.mxu0 %v226
      %322 = vmatprep.subr.mxu0 0.0
      %323 = vmatpush1.msra.mxu0 %v225
      %324 = vmatprep.subr.mxu0 0.0
      %325 = vmatpush1.msra.mxu0 %v224
      %326 = vmatprep.subr.mxu0 0.0
      %327 = vmatpush2.msra.mxu0 0.0
      %328 = vmatprep.subr.mxu0 0.0
      %329 = vmatpush2.msra.mxu0 0.0
      %330 = vmatprep.subr.mxu0 0.0
      %331 = vmatpush2.msra.mxu0 0.0
      %332 = vmatprep.subr.mxu0 0.0
      %333 = vmatpush2.msra.mxu0 0.0
      %334 = vmatprep.subr.mxu0 0.0
      %335 = vmatpush2.msra.mxu0 0.0
      %336 = vmatprep.subr.mxu0 0.0
      %337 = vmatpush2.msra.mxu0 0.0
      %338 = vmatprep.subr.mxu0 0.0
      %339 = vmatpush2.msra.mxu0 0.0
      %340 = vmatprep.subr.mxu0 0.0
      %341 = vmatpush2.msra.mxu0 0.0
      %342 = vmatprep.subr.mxu0 0.0
      %343 = vmatpush2.msra.mxu0 0.0
      %344 = vmatprep.subr.mxu0 0.0
      %345 = vmatpush2.msra.mxu0 0.0
      %346 = vmatprep.subr.mxu0 0.0
      %347 = vmatpush2.msra.mxu0 0.0
      %348 = vmatprep.subr.mxu0 0.0
      %349 = vmatpush2.msra.mxu0 0.0
      %350 = vmatprep.subr.mxu0 0.0
      %351 = vmatpush2.msra.mxu0 0.0
      %352 = vmatprep.subr.mxu0 0.0
      %353 = vmatpush2.msra.mxu0 %v292
      %354 = vmatprep.subr.mxu0 0.0
      %355 = vmatpush2.msra.mxu0 %v241
      %356 = vmatprep.subr.mxu0 0.0
      %357 = vmatpush2.msra.mxu0 %v240
      %358 = vmatprep.mubr.f32.mxu0 %v252
      %359 = vmatmul.mubr.f32.gmra.mxu0 %v198
      %v360 = vpop.f32.mrf.mxu0
      %v361 = vadd.f32 %v248, %v360
      %v362 = vpop.f32.mrf.mxu0
      %363 = vmatprep.mubr.f32.mxu0 %v255
      %364 = vmatmul.mubr.f32.gmra.mxu0 %v200
      %v365 = vpop.f32.mrf.mxu0
      %v366 = vadd.f32 %v248, %v365
      %v367 = vpop.f32.mrf.mxu0
      %368 = vmatprep.mubr.f32.mxu0 %v258
      %369 = vmatmul.mubr.f32.gmra.mxu0 %v202
      %v370 = vpop.f32.mrf.mxu0
      %v371 = vadd.f32 %v248, %v370
      %v372 = vpop.f32.mrf.mxu0
      %373 = vmatprep.mubr.f32.mxu0 %v261
      %374 = vmatmul.mubr.f32.gmra.mxu0 %v204
      %v375 = vpop.f32.mrf.mxu0
      %v376 = vadd.f32 %v248, %v375
      %v377 = vpop.f32.mrf.mxu0
      %378 = vmatprep.mubr.f32.mxu0 %v264
      %379 = vmatmul.mubr.f32.gmra.mxu0 %v206
      %v380 = vpop.f32.mrf.mxu0
      %v381 = vadd.f32 %v248, %v380
      %v382 = vpop.f32.mrf.mxu0
      %383 = vmatprep.mubr.f32.mxu0 %v267
      %384 = vmatmul.mubr.f32.gmra.mxu0 %v208
      %v385 = vpop.f32.mrf.mxu0
      %v386 = vadd.f32 %v248, %v385
      %v387 = vpop.f32.mrf.mxu0
      %388 = vmatprep.mubr.f32.mxu0 %v270
      %389 = vmatmul.mubr.f32.gmra.mxu0 %v210
      %v390 = vpop.f32.mrf.mxu0
      %v391 = vadd.f32 %v248, %v390
      %v392 = vpop.f32.mrf.mxu0
      %393 = vmatprep.mubr.f32.mxu0 %v273
      %394 = vmatmul.mubr.f32.gmra.mxu0 %v212
      %v395 = vpop.f32.mrf.mxu0
      %v396 = vadd.f32 %v248, %v395
      %v397 = vpop.f32.mrf.mxu0
      %398 = vmatprep.mubr.f32.mxu0 %v276
      %399 = vmatmul.mubr.f32.gmra.mxu0 %v214
      %v400 = vpop.f32.mrf.mxu0
      %v401 = vadd.f32 %v248, %v400
      %v402 = vpop.f32.mrf.mxu0
      %403 = vmatprep.mubr.f32.mxu0 %v279
      %404 = vmatmul.mubr.f32.gmra.mxu0 %v216
      %v405 = vpop.f32.mrf.mxu0
      %v406 = vadd.f32 %v248, %v405
      %v407 = vpop.f32.mrf.mxu0
      %408 = vmatprep.mubr.f32.mxu0 %v282
      %409 = vmatmul.mubr.f32.gmra.mxu0 %v218
      %v410 = vpop.f32.mrf.mxu0
      %v411 = vadd.f32 %v248, %v410
      %v412 = vpop.f32.mrf.mxu0
      %413 = vmatprep.mubr.f32.mxu0 %v285
      %414 = vmatmul.mubr.f32.gmra.mxu0 %v220
      %v415 = vpop.f32.mrf.mxu0
      %v416 = vadd.f32 %v248, %v415
      %v417 = vpop.f32.mrf.mxu0
      %418 = vmatprep.mubr.f32.mxu0 %v288
      %419 = vmatmul.mubr.f32.gmra.mxu0 %v222
      %v420 = vpop.f32.mrf.mxu0
      %v421 = vadd.f32 %v248, %v420
      %v422 = vpop.f32.mrf.mxu0
      %423 = vdwg.mxu0
      %v424 = vmax.f32 %v361, 0.0
      %v425 = vmax.f32 %v366, 0.0
      %v426 = vmax.f32 %v371, 0.0
      %v427 = vmax.f32 %v376, 0.0
      %v428 = vmax.f32 %v381, 0.0
      %v429 = vmax.f32 %v386, 0.0
      %v430 = vmax.f32 %v391, 0.0
      %v431 = vmax.f32 %v396, 0.0
      %v432 = vmax.f32 %v401, 0.0
      %v433 = vmax.f32 %v406, 0.0
      %v434 = vmax.f32 %v411, 0.0
      %v435 = vmax.f32 %v416, 0.0
      %v436 = vmax.f32 %v421, 0.0
      %v437 = vld [vmem:[%s3] sm:$0xff]
      %v438 = vld [vmem:[%s3 + $0x8] sm:$0xff]
      %v439 = vld [vmem:[%s3 + $0x10] sm:$0xff]
      %v440 = vld [vmem:[%s3 + $0x18] sm:$0x1]
      %vm441 = vcmask 818176
      %v443 = vsel %vm441, %v437, 0
      %v446 = vsel %vm441, %v438, 0
      %v449 = vsel %vm441, %v439, 0
      %v452 = vsel %vm441, %v440, 0
      %vm454 = vcmask 1043456
      %v456 = vsel %vm454, %v436, 0
      %458 = vmatprep.subr.mxu0 0.0
      %459 = vmatpush1.msra.mxu0 0.0
      %460 = vmatprep.subr.mxu0 0.0
      %461 = vmatpush1.msra.mxu0 0.0
      %462 = vmatprep.subr.mxu0 0.0
      %463 = vmatpush1.msra.mxu0 0.0
      %464 = vmatprep.subr.mxu0 0.0
      %465 = vmatpush1.msra.mxu0 %v456
      %466 = vmatprep.subr.mxu0 0.0
      %467 = vmatpush1.msra.mxu0 %v435
      %468 = vmatprep.subr.mxu0 0.0
      %469 = vmatpush1.msra.mxu0 %v434
      %470 = vmatprep.subr.mxu0 0.0
      %471 = vmatpush1.msra.mxu0 %v433
      %472 = vmatprep.subr.mxu0 0.0
      %473 = vmatpush1.msra.mxu0 %v432
      %474 = vmatprep.subr.mxu0 0.0
      %475 = vmatpush1.msra.mxu0 %v431
      %476 = vmatprep.subr.mxu0 0.0
      %477 = vmatpush1.msra.mxu0 %v430
      %478 = vmatprep.subr.mxu0 0.0
      %479 = vmatpush1.msra.mxu0 %v429
      %480 = vmatprep.subr.mxu0 0.0
      %481 = vmatpush1.msra.mxu0 %v428
      %482 = vmatprep.subr.mxu0 0.0
      %483 = vmatpush1.msra.mxu0 %v427
      %484 = vmatprep.subr.mxu0 0.0
      %485 = vmatpush1.msra.mxu0 %v426
      %486 = vmatprep.subr.mxu0 0.0
      %487 = vmatpush1.msra.mxu0 %v425
      %488 = vmatprep.subr.mxu0 0.0
      %489 = vmatpush1.msra.mxu0 %v424
      %490 = vmatprep.subr.mxu0 0.0
      %491 = vmatpush2.msra.mxu0 0.0
      %492 = vmatprep.subr.mxu0 0.0
      %493 = vmatpush2.msra.mxu0 0.0
      %494 = vmatprep.subr.mxu0 0.0
      %495 = vmatpush2.msra.mxu0 0.0
      %496 = vmatprep.subr.mxu0 0.0
      %497 = vmatpush2.msra.mxu0 0.0
      %498 = vmatprep.subr.mxu0 0.0
      %499 = vmatpush2.msra.mxu0 0.0
      %500 = vmatprep.subr.mxu0 0.0
      %501 = vmatpush2.msra.mxu0 0.0
      %502 = vmatprep.subr.mxu0 0.0
      %503 = vmatpush2.msra.mxu0 0.0
      %504 = vmatprep.subr.mxu0 0.0
      %505 = vmatpush2.msra.mxu0 0.0
      %506 = vmatprep.subr.mxu0 0.0
      %507 = vmatpush2.msra.mxu0 0.0
      %508 = vmatprep.subr.mxu0 0.0
      %509 = vmatpush2.msra.mxu0 0.0
      %510 = vmatprep.subr.mxu0 0.0
      %511 = vmatpush2.msra.mxu0 0.0
      %512 = vmatprep.subr.mxu0 0.0
      %513 = vmatpush2.msra.mxu0 0.0
      %514 = vmatprep.subr.mxu0 0.0
      %515 = vmatpush2.msra.mxu0 0.0
      %516 = vmatprep.subr.mxu0 0.0
      %517 = vmatpush2.msra.mxu0 0.0
      %518 = vmatprep.subr.mxu0 0.0
      %519 = vmatpush2.msra.mxu0 0.0
      %520 = vmatprep.subr.mxu0 0.0
      %521 = vmatpush2.msra.mxu0 0.0
      %522 = vmatprep.mubr.f32.mxu0 0.0
      %523 = vmatmul.mubr.f32.gmra.mxu0 %v443
      %v524 = vpop.f32.mrf.mxu0
      %v525 = vadd.f32 0.0, %v524
      %v526 = vpop.f32.mrf.mxu0
      %527 = vmatprep.mubr.f32.mxu0 0.0
      %528 = vmatmul.mubr.f32.gmra.mxu0 %v446
      %v529 = vpop.f32.mrf.mxu0
      %v530 = vadd.f32 0.0, %v529
      %v531 = vpop.f32.mrf.mxu0
      %532 = vmatprep.mubr.f32.mxu0 0.0
      %533 = vmatmul.mubr.f32.gmra.mxu0 %v449
      %v534 = vpop.f32.mrf.mxu0
      %v535 = vadd.f32 0.0, %v534
      %v536 = vpop.f32.mrf.mxu0
      %537 = vmatprep.mubr.f32.mxu0 0.0
      %538 = vmatmul.mubr.f32.gmra.mxu0 %v452
      %v539 = vpop.f32.mrf.mxu0
      %v540 = vadd.f32 0.0, %v539
      %v541 = vpop.f32.mrf.mxu0
      %542 = vdwg.mxu0
      %543 = vst [vmem:[%s197] sm:$0xff] %v525
      %544 = vst [vmem:[%s197 + $0x8] sm:$0xff] %v530
      %545 = vst [vmem:[%s197 + $0x10] sm:$0xff] %v535
      %546 = vst [vmem:[%s197 + $0x18] sm:$0x1] %v540
      %p547 = scmp.lt.s32.totalorder %s15, 1
      %s548 = scalar_select %p547, %s15, 1
      %s549 = smul.addr %s548, 4
      %s550 = smul.addr %s549, 8
      %s551 = scalar_lea.vmem %s4, %s550
      // Predicated region
      $region37: #{lenet5_forward.4} parent=35 // pred_check
        %p552 = pneg %p122
      $region38: #{lenet5_forward.4} parent=35 // pred_check_branch
        %554 = sbr.rel (%p552) target = $region40
      $region39: #{lenet5_forward.4} parent=35 // pred_region
        _
      $region40: #{lenet5_forward.4} parent=35 // pred_fallthru
        _
    $region36: #{lenet5_forward.4} parent=5 // pred_fallthru
      _
    %p555 = scmp.le.s32.totalorder 2, %s10
    // Predicated region
    $region41: #{lenet5_forward.4} parent=5 // pred_check
      %p556 = pneg %p555
    $region42: #{lenet5_forward.4} parent=5 // pred_check_branch
      %558 = sbr.rel (%p556) target = $region44
    $region43: #{lenet5_forward.4} parent=5 // pred_region
      %s559 = ssub.s32 %s10, 2
      // Predicated region
      $region45: #{lenet5_forward.4} parent=43 // pred_check
        %p560 = pneg %p128
      $region46: #{lenet5_forward.4} parent=43 // pred_check_branch
        %562 = sbr.rel (%p560) target = $region48
      $region47: #{lenet5_forward.4} parent=43 // pred_region
        %p563 = scmp.lt.s32.totalorder %s16, 1
        %s564 = scalar_select %p563, %s16, 1
        %s565 = smul.addr %s564, 4
        %s566 = smul.addr %s565, 8
        %s567 = scalar_lea.vmem %s4, %s566
      $region48: #{lenet5_forward.4} parent=43 // pred_fallthru
        _
    $region44: #{lenet5_forward.4} parent=5 // pred_fallthru
      _
  $region6: #{lenet5_forward.4} parent=0 // loop_footer
    %s14 = sadd.s32 1, %s10
  $region7: #{lenet5_forward.4} parent=0 // loop_footer_branch
    %9 = sbr.rel target = $region3
  $region8: #{lenet5_forward.4} parent=0 // loop_exit
    _

// kernel: lenet5_forward.5
$region0: #{lenet5_forward.5}
  #allocation0 [shape = 'u32[]', space=smem, size = 0x4, offset = 0x4, fixed_abs, tag = 'smem constant byte address 0x4 - core index']
  #allocation1 [shape = 'u32[144,128]{1,0:T(1,128)}', space=vmem, size = 0x12000, scoped, tag = 'internal scratch']
  %s0 = inlined_call_operand.vmem [shape: f32[2,400], index: 0, kind: input, shape index: {}]
  %s1 = inlined_call_operand.vmem [shape: f32[400,128], index: 1, kind: input, shape index: {}]
  %s2 = inlined_call_operand.vmem [shape: f32[1,128], index: 2, kind: input, shape index: {}]
  %s3 = inlined_call_operand.vmem [shape: f32[128,128], index: 3, kind: input, shape index: {}]
  %s4 = inlined_call_operand.vmem [shape: f32[1,128], index: 4, kind: input, shape index: {}]
  %s5 = inlined_call_operand.vmem [shape: f32[128,128], index: 5, kind: input, shape index: {}]
  %s6 = inlined_call_operand.vmem [shape: f32[1,128], index: 6, kind: input, shape index: {}]
  %s7 = inlined_call_operand.hbm [shape: f32[2,128], index: 7, kind: output, shape index: {}]
  %s8 = sld [smem:[#allocation0]]
  $region38: #{lenet5_forward.5} parent=0
    _
  %s10 = ssub.s32 1, %s8
  %s11 = scalar_select 0, %s10, %s8
  $region1: #{lenet5_forward.5} parent=0
    #allocation2 [shape = 'u8[1024]{0}', space=vmem, size = 0x400, scoped, tag = 'output window, operand 0, single buffered']
    #allocation3 [shape = 's32[1]{0}', space=sflag, size = 0x4, scoped, tag = 'scoped memory for lenet5_forward.5']
    %12 = vsyncpa [#allocation3], 0
    // Predicated region
    $region2: #{lenet5_forward.5} parent=1 // pred_check
      _
    $region3: #{lenet5_forward.5} parent=1 // pred_check_branch
      %14 = sbr.rel (0) target = $region5
    $region4: #{lenet5_forward.5} parent=1 // pred_region
      _
    $region5: #{lenet5_forward.5} parent=1 // pred_fallthru
      _
    // Predicated region
    $region6: #{lenet5_forward.5} parent=1 // pred_check
      _
    $region7: #{lenet5_forward.5} parent=1 // pred_check_branch
      %16 = sbr.rel (0) target = $region9
    $region8: #{lenet5_forward.5} parent=1 // pred_region
      _
    $region9: #{lenet5_forward.5} parent=1 // pred_fallthru
      _
    // Predicated region
    $region10: #{lenet5_forward.5} parent=1 // pred_check
      _
    $region11: #{lenet5_forward.5} parent=1 // pred_check_branch
      %18 = sbr.rel (0) target = $region13
    $region12: #{lenet5_forward.5} parent=1 // pred_region
      _
    $region13: #{lenet5_forward.5} parent=1 // pred_fallthru
      _
    // Predicated region
    $region14: #{lenet5_forward.5} parent=1 // pred_check
      _
    $region15: #{lenet5_forward.5} parent=1 // pred_check_branch
      %20 = sbr.rel (0) target = $region17
    $region16: #{lenet5_forward.5} parent=1 // pred_region
      _
    $region17: #{lenet5_forward.5} parent=1 // pred_fallthru
      _
    // Predicated region
    $region18: #{lenet5_forward.5} parent=1 // pred_check
      _
    $region19: #{lenet5_forward.5} parent=1 // pred_check_branch
      %22 = sbr.rel (0) target = $region21
    $region20: #{lenet5_forward.5} parent=1 // pred_region
      _
    $region21: #{lenet5_forward.5} parent=1 // pred_fallthru
      _
    // Predicated region
    $region22: #{lenet5_forward.5} parent=1 // pred_check
      _
    $region23: #{lenet5_forward.5} parent=1 // pred_check_branch
      %24 = sbr.rel (0) target = $region25
    $region24: #{lenet5_forward.5} parent=1 // pred_region
      _
    $region25: #{lenet5_forward.5} parent=1 // pred_fallthru
      _
    // Predicated region
    $region26: #{lenet5_forward.5} parent=1 // pred_check
      _
    $region27: #{lenet5_forward.5} parent=1 // pred_check_branch
      %26 = sbr.rel (0) target = $region29
    $region28: #{lenet5_forward.5} parent=1 // pred_region
      _
    $region29: #{lenet5_forward.5} parent=1 // pred_fallthru
      _
    %v27 = vld [vmem:[%s0] sm:$0xff]
    %v28 = vld [vmem:[%s1] sm:$0xff]
    %v29 = vld [vmem:[%s1 + $0x8] sm:$0xff]
    %v30 = vld [vmem:[%s1 + $0x10] sm:$0xff]
    %v31 = vld [vmem:[%s1 + $0x18] sm:$0xff]
    %v32 = vld [vmem:[%s1 + $0x20] sm:$0xff]
    %v33 = vld [vmem:[%s1 + $0x28] sm:$0xff]
    %v34 = vld [vmem:[%s1 + $0x30] sm:$0xff]
    %v35 = vld [vmem:[%s1 + $0x38] sm:$0xff]
    %v36 = vld [vmem:[%s1 + $0x40] sm:$0xff]
    %v37 = vld [vmem:[%s1 + $0x48] sm:$0xff]
    %v38 = vld [vmem:[%s1 + $0x50] sm:$0xff]
    %v39 = vld [vmem:[%s1 + $0x58] sm:$0xff]
    %v40 = vld [vmem:[%s1 + $0x60] sm:$0xff]
    %v41 = vld [vmem:[%s1 + $0x68] sm:$0xff]
    %v42 = vld [vmem:[%s1 + $0x70] sm:$0xff]
    %v43 = vld [vmem:[%s1 + $0x78] sm:$0xff]
    %v44 = vld [vmem:[%s1 + $0x80] sm:$0xff]
    %v45 = vld [vmem:[%s1 + $0x88] sm:$0xff]
    %v46 = vld [vmem:[%s1 + $0x90] sm:$0xff]
    %v47 = vld [vmem:[%s1 + $0x98] sm:$0xff]
    %v48 = vld [vmem:[%s1 + $0xa0] sm:$0xff]
    %v49 = vld [vmem:[%s1 + $0xa8] sm:$0xff]
    %v50 = vld [vmem:[%s1 + $0xb0] sm:$0xff]
    %v51 = vld [vmem:[%s1 + $0xb8] sm:$0xff]
    %v52 = vld [vmem:[%s1 + $0xc0] sm:$0xff]
    %v53 = vld [vmem:[%s1 + $0xc8] sm:$0xff]
    %v54 = vld [vmem:[%s1 + $0xd0] sm:$0xff]
    %v55 = vld [vmem:[%s1 + $0xd8] sm:$0xff]
    %v56 = vld [vmem:[%s1 + $0xe0] sm:$0xff]
    %v57 = vld [vmem:[%s1 + $0xe8] sm:$0xff]
    %v58 = vld [vmem:[%s1 + $0xf0] sm:$0xff]
    %v59 = vld [vmem:[%s1 + $0xf8] sm:$0xff]
    %v60 = vld [vmem:[%s1 + $0x100] sm:$0xff]
    %v61 = vld [vmem:[%s1 + $0x108] sm:$0xff]
    %v62 = vld [vmem:[%s1 + $0x110] sm:$0xff]
    %v63 = vld [vmem:[%s1 + $0x118] sm:$0xff]
    %v64 = vld [vmem:[%s1 + $0x120] sm:$0xff]
    %v65 = vld [vmem:[%s1 + $0x128] sm:$0xff]
    %v66 = vld [vmem:[%s1 + $0x130] sm:$0xff]
    %v67 = vld [vmem:[%s1 + $0x138] sm:$0xff]
    %v68 = vld [vmem:[%s1 + $0x140] sm:$0xff]
    %v69 = vld [vmem:[%s1 + $0x148] sm:$0xff]
    %v70 = vld [vmem:[%s1 + $0x150] sm:$0xff]
    %v71 = vld [vmem:[%s1 + $0x158] sm:$0xff]
    %v72 = vld [vmem:[%s1 + $0x160] sm:$0xff]
    %v73 = vld [vmem:[%s1 + $0x168] sm:$0xff]
    %v74 = vld [vmem:[%s1 + $0x170] sm:$0xff]
    %v75 = vld [vmem:[%s1 + $0x178] sm:$0xff]
    %v76 = vld [vmem:[%s1 + $0x180] sm:$0xff]
    %v77 = vld [vmem:[%s1 + $0x188] sm:$0xff]
    %v78 = vld [vmem:[%s2] sm:$0x1]
    %v80 = vlaneseq
    %v81 = vshrl.u32 %v80, 7
    %v82 = vsub.s32 0, %v81
    %v83 = vrot.slane %v78, %v82
    %v86 = vcombine.high %v27, %v27
    %v88 = vunpack.c.l.s4 1983009808
    %v89 = vunpack.c.0.s8 %v88
    %v90 = vlaneseq
    %v91 = vshrl.u32 %v90, 7
    %v92 = vsub.s32 %v89, %v91
    %v93 = vrot.slane %v27, %v92
    %v95 = vunpack.c.l.s4 1983009808
    %v96 = vunpack.c.0.s8 %v95
    %v97 = vlaneseq
    %v98 = vshrl.u32 %v97, 7
    %v99 = vsub.s32 %v96, %v98
    %v100 = vrot.slane %v86, %v99
    %v101 = vcombine.high %v93, %v93
    %v102 = vcombine.high %v100, %v100
    %vm106 = vcmask 130048
    %v107 = vsel %vm106, %v102, 0
    %109 = vmatprep.subr.mxu0 0.0
    %110 = vmatpush1.msra.mxu0 %v43
    %111 = vmatprep.subr.mxu0 0.0
    %112 = vmatpush1.msra.mxu0 %v42
    %113 = vmatprep.subr.mxu0 0.0
    %114 = vmatpush1.msra.mxu0 %v41
    %115 = vmatprep.subr.mxu0 0.0
    %116 = vmatpush1.msra.mxu0 %v40
    %117 = vmatprep.subr.mxu0 0.0
    %118 = vmatpush1.msra.mxu0 %v39
    %119 = vmatprep.subr.mxu0 0.0
    %120 = vmatpush1.msra.mxu0 %v38
    %121 = vmatprep.subr.mxu0 0.0
    %122 = vmatpush1.msra.mxu0 %v37
    %123 = vmatprep.subr.mxu0 0.0
    %124 = vmatpush1.msra.mxu0 %v36
    %125 = vmatprep.subr.mxu0 0.0
    %126 = vmatpush1.msra.mxu0 %v35
    %127 = vmatprep.subr.mxu0 0.0
    %128 = vmatpush1.msra.mxu0 %v34
    %129 = vmatprep.subr.mxu0 0.0
    %130 = vmatpush1.msra.mxu0 %v33
    %131 = vmatprep.subr.mxu0 0.0
    %132 = vmatpush1.msra.mxu0 %v32
    %133 = vmatprep.subr.mxu0 0.0
    %134 = vmatpush1.msra.mxu0 %v31
    %135 = vmatprep.subr.mxu0 0.0
    %136 = vmatpush1.msra.mxu0 %v30
    %137 = vmatprep.subr.mxu0 0.0
    %138 = vmatpush1.msra.mxu0 %v29
    %139 = vmatprep.subr.mxu0 0.0
    %140 = vmatpush1.msra.mxu0 %v28
    %141 = vmatprep.subr.mxu0 0.0
    %142 = vmatpush2.msra.mxu0 %v59
    %143 = vmatprep.subr.mxu0 0.0
    %144 = vmatpush2.msra.mxu0 %v58
    %145 = vmatprep.subr.mxu0 0.0
    %146 = vmatpush2.msra.mxu0 %v57
    %147 = vmatprep.subr.mxu0 0.0
    %148 = vmatpush2.msra.mxu0 %v56
    %149 = vmatprep.subr.mxu0 0.0
    %150 = vmatpush2.msra.mxu0 %v55
    %151 = vmatprep.subr.mxu0 0.0
    %152 = vmatpush2.msra.mxu0 %v54
    %153 = vmatprep.subr.mxu0 0.0
    %154 = vmatpush2.msra.mxu0 %v53
    %155 = vmatprep.subr.mxu0 0.0
    %156 = vmatpush2.msra.mxu0 %v52
    %157 = vmatprep.subr.mxu0 0.0
    %158 = vmatpush2.msra.mxu0 %v51
    %159 = vmatprep.subr.mxu0 0.0
    %160 = vmatpush2.msra.mxu0 %v50
    %161 = vmatprep.subr.mxu0 0.0
    %162 = vmatpush2.msra.mxu0 %v49
    %163 = vmatprep.subr.mxu0 0.0
    %164 = vmatpush2.msra.mxu0 %v48
    %165 = vmatprep.subr.mxu0 0.0
    %166 = vmatpush2.msra.mxu0 %v47
    %167 = vmatprep.subr.mxu0 0.0
    %168 = vmatpush2.msra.mxu0 %v46
    %169 = vmatprep.subr.mxu0 0.0
    %170 = vmatpush2.msra.mxu0 %v45
    %171 = vmatprep.subr.mxu0 0.0
    %172 = vmatpush2.msra.mxu0 %v44
    %173 = vmatprep.mubr.f32.mxu0 %v101
    %174 = vmatmul.mubr.f32.gmra.mxu0 %v93
    %v175 = vpop.f32.mrf.mxu0
    %v176 = vadd.f32 %v83, %v175
    %v177 = vpop.f32.mrf.mxu0
    %178 = vdwg.mxu0
    %179 = vmatprep.subr.mxu0 0.0
    %180 = vmatpush1.msra.mxu0 %v75
    %181 = vmatprep.subr.mxu0 0.0
    %182 = vmatpush1.msra.mxu0 %v74
    %183 = vmatprep.subr.mxu0 0.0
    %184 = vmatpush1.msra.mxu0 %v73
    %185 = vmatprep.subr.mxu0 0.0
    %186 = vmatpush1.msra.mxu0 %v72
    %187 = vmatprep.subr.mxu0 0.0
    %188 = vmatpush1.msra.mxu0 %v71
    %189 = vmatprep.subr.mxu0 0.0
    %190 = vmatpush1.msra.mxu0 %v70
    %191 = vmatprep.subr.mxu0 0.0
    %192 = vmatpush1.msra.mxu0 %v69
    %193 = vmatprep.subr.mxu0 0.0
    %194 = vmatpush1.msra.mxu0 %v68
    %195 = vmatprep.subr.mxu0 0.0
    %196 = vmatpush1.msra.mxu0 %v67
    %197 = vmatprep.subr.mxu0 0.0
    %198 = vmatpush1.msra.mxu0 %v66
    %199 = vmatprep.subr.mxu0 0.0
    %200 = vmatpush1.msra.mxu0 %v65
    %201 = vmatprep.subr.mxu0 0.0
    %202 = vmatpush1.msra.mxu0 %v64
    %203 = vmatprep.subr.mxu0 0.0
    %204 = vmatpush1.msra.mxu0 %v63
    %205 = vmatprep.subr.mxu0 0.0
    %206 = vmatpush1.msra.mxu0 %v62
    %207 = vmatprep.subr.mxu0 0.0
    %208 = vmatpush1.msra.mxu0 %v61
    %209 = vmatprep.subr.mxu0 0.0
    %210 = vmatpush1.msra.mxu0 %v60
    %211 = vmatprep.subr.mxu0 0.0
    %212 = vmatpush2.msra.mxu0 0.0
    %213 = vmatprep.subr.mxu0 0.0
    %214 = vmatpush2.msra.mxu0 0.0
    %215 = vmatprep.subr.mxu0 0.0
    %216 = vmatpush2.msra.mxu0 0.0
    %217 = vmatprep.subr.mxu0 0.0
    %218 = vmatpush2.msra.mxu0 0.0
    %219 = vmatprep.subr.mxu0 0.0
    %220 = vmatpush2.msra.mxu0 0.0
    %221 = vmatprep.subr.mxu0 0.0
    %222 = vmatpush2.msra.mxu0 0.0
    %223 = vmatprep.subr.mxu0 0.0
    %224 = vmatpush2.msra.mxu0 0.0
    %225 = vmatprep.subr.mxu0 0.0
    %226 = vmatpush2.msra.mxu0 0.0
    %227 = vmatprep.subr.mxu0 0.0
    %228 = vmatpush2.msra.mxu0 0.0
    %229 = vmatprep.subr.mxu0 0.0
    %230 = vmatpush2.msra.mxu0 0.0
    %231 = vmatprep.subr.mxu0 0.0
    %232 = vmatpush2.msra.mxu0 0.0
    %233 = vmatprep.subr.mxu0 0.0
    %234 = vmatpush2.msra.mxu0 0.0
    %235 = vmatprep.subr.mxu0 0.0
    %236 = vmatpush2.msra.mxu0 0.0
    %237 = vmatprep.subr.mxu0 0.0
    %238 = vmatpush2.msra.mxu0 0.0
    %239 = vmatprep.subr.mxu0 0.0
    %240 = vmatpush2.msra.mxu0 %v77
    %241 = vmatprep.subr.mxu0 0.0
    %242 = vmatpush2.msra.mxu0 %v76
    %243 = vmatprep.mubr.f32.mxu0 %v107
    %244 = vmatmul.mubr.f32.gmra.mxu0 %v100
    %v245 = vpop.f32.mrf.mxu0
    %v246 = vadd.f32 %v176, %v245
    %v247 = vpop.f32.mrf.mxu0
    %248 = vdwg.mxu0
    %v249 = vmax.f32 %v246, 0.0
    %v250 = vld [vmem:[%s3] sm:$0xff]
    %v251 = vld [vmem:[%s3 + $0x8] sm:$0xff]
    %v252 = vld [vmem:[%s3 + $0x10] sm:$0xff]
    %v253 = vld [vmem:[%s3 + $0x18] sm:$0xff]
    %v254 = vld [vmem:[%s3 + $0x20] sm:$0xff]
    %v255 = vld [vmem:[%s3 + $0x28] sm:$0xff]
    %v256 = vld [vmem:[%s3 + $0x30] sm:$0xff]
    %v257 = vld [vmem:[%s3 + $0x38] sm:$0xff]
    %v258 = vld [vmem:[%s3 + $0x40] sm:$0xff]
    %v259 = vld [vmem:[%s3 + $0x48] sm:$0xff]
    %v260 = vld [vmem:[%s3 + $0x50] sm:$0xff]
    %v261 = vld [vmem:[%s3 + $0x58] sm:$0xff]
    %v262 = vld [vmem:[%s3 + $0x60] sm:$0xff]
    %v263 = vld [vmem:[%s3 + $0x68] sm:$0xff]
    %v264 = vld [vmem:[%s3 + $0x70] sm:$0xff]
    %v265 = vld [vmem:[%s3 + $0x78] sm:$0xff]
    %v266 = vld [vmem:[%s4] sm:$0x1]
    %v268 = vlaneseq
    %v269 = vshrl.u32 %v268, 7
    %v270 = vsub.s32 0, %v269
    %v271 = vrot.slane %v266, %v270
    %273 = vmatprep.subr.mxu0 0.0
    %274 = vmatpush1.msra.mxu0 %v265
    %275 = vmatprep.subr.mxu0 0.0
    %276 = vmatpush1.msra.mxu0 %v264
    %277 = vmatprep.subr.mxu0 0.0
    %278 = vmatpush1.msra.mxu0 %v263
    %279 = vmatprep.subr.mxu0 0.0
    %280 = vmatpush1.msra.mxu0 %v262
    %281 = vmatprep.subr.mxu0 0.0
    %282 = vmatpush1.msra.mxu0 %v261
    %283 = vmatprep.subr.mxu0 0.0
    %284 = vmatpush1.msra.mxu0 %v260
    %285 = vmatprep.subr.mxu0 0.0
    %286 = vmatpush1.msra.mxu0 %v259
    %287 = vmatprep.subr.mxu0 0.0
    %288 = vmatpush1.msra.mxu0 %v258
    %289 = vmatprep.subr.mxu0 0.0
    %290 = vmatpush1.msra.mxu0 %v257
    %291 = vmatprep.subr.mxu0 0.0
    %292 = vmatpush1.msra.mxu0 %v256
    %293 = vmatprep.subr.mxu0 0.0
    %294 = vmatpush1.msra.mxu0 %v255
    %295 = vmatprep.subr.mxu0 0.0
    %296 = vmatpush1.msra.mxu0 %v254
    %297 = vmatprep.subr.mxu0 0.0
    %298 = vmatpush1.msra.mxu0 %v253
    %299 = vmatprep.subr.mxu0 0.0
    %300 = vmatpush1.msra.mxu0 %v252
    %301 = vmatprep.subr.mxu0 0.0
    %302 = vmatpush1.msra.mxu0 %v251
    %303 = vmatprep.subr.mxu0 0.0
    %304 = vmatpush1.msra.mxu0 %v250
    %305 = vmatprep.subr.mxu0 0.0
    %306 = vmatpush2.msra.mxu0 0.0
    %307 = vmatprep.subr.mxu0 0.0
    %308 = vmatpush2.msra.mxu0 0.0
    %309 = vmatprep.subr.mxu0 0.0
    %310 = vmatpush2.msra.mxu0 0.0
    %311 = vmatprep.subr.mxu0 0.0
    %312 = vmatpush2.msra.mxu0 0.0
    %313 = vmatprep.subr.mxu0 0.0
    %314 = vmatpush2.msra.mxu0 0.0
    %315 = vmatprep.subr.mxu0 0.0
    %316 = vmatpush2.msra.mxu0 0.0
    %317 = vmatprep.subr.mxu0 0.0
    %318 = vmatpush2.msra.mxu0 0.0
    %319 = vmatprep.subr.mxu0 0.0
    %320 = vmatpush2.msra.mxu0 0.0
    %321 = vmatprep.subr.mxu0 0.0
    %322 = vmatpush2.msra.mxu0 0.0
    %323 = vmatprep.subr.mxu0 0.0
    %324 = vmatpush2.msra.mxu0 0.0
    %325 = vmatprep.subr.mxu0 0.0
    %326 = vmatpush2.msra.mxu0 0.0
    %327 = vmatprep.subr.mxu0 0.0
    %328 = vmatpush2.msra.mxu0 0.0
    %329 = vmatprep.subr.mxu0 0.0
    %330 = vmatpush2.msra.mxu0 0.0
    %331 = vmatprep.subr.mxu0 0.0
    %332 = vmatpush2.msra.mxu0 0.0
    %333 = vmatprep.subr.mxu0 0.0
    %334 = vmatpush2.msra.mxu0 0.0
    %335 = vmatprep.subr.mxu0 0.0
    %336 = vmatpush2.msra.mxu0 0.0
    %337 = vmatprep.mubr.f32.mxu0 0.0
    %338 = vmatmul.mubr.f32.gmra.mxu0 %v249
    %v339 = vpop.f32.mrf.mxu0
    %v340 = vadd.f32 %v271, %v339
    %v341 = vpop.f32.mrf.mxu0
    %342 = vdwg.mxu0
    %v343 = vmax.f32 %v340, 0.0
    %v344 = vld [vmem:[%s5] sm:$0xff]
    %v345 = vld [vmem:[%s5 + $0x8] sm:$0xff]
    %v346 = vld [vmem:[%s5 + $0x10] sm:$0xff]
    %v347 = vld [vmem:[%s5 + $0x18] sm:$0xff]
    %v348 = vld [vmem:[%s5 + $0x20] sm:$0xff]
    %v349 = vld [vmem:[%s5 + $0x28] sm:$0xff]
    %v350 = vld [vmem:[%s5 + $0x30] sm:$0xff]
    %v351 = vld [vmem:[%s5 + $0x38] sm:$0xff]
    %v352 = vld [vmem:[%s5 + $0x40] sm:$0xff]
    %v353 = vld [vmem:[%s5 + $0x48] sm:$0xff]
    %v354 = vld [vmem:[%s5 + $0x50] sm:$0xff]
    %v355 = vld [vmem:[%s5 + $0x58] sm:$0xff]
    %v356 = vld [vmem:[%s5 + $0x60] sm:$0xff]
    %v357 = vld [vmem:[%s5 + $0x68] sm:$0xff]
    %v358 = vld [vmem:[%s5 + $0x70] sm:$0xff]
    %v359 = vld [vmem:[%s5 + $0x78] sm:$0xff]
    %v360 = vld [vmem:[%s6] sm:$0x1]
    %v362 = vlaneseq
    %v363 = vshrl.u32 %v362, 7
    %v364 = vsub.s32 0, %v363
    %v365 = vrot.slane %v360, %v364
    %367 = vmatprep.subr.mxu0 0.0
    %368 = vmatpush1.msra.mxu0 %v359
    %369 = vmatprep.subr.mxu0 0.0
    %370 = vmatpush1.msra.mxu0 %v358
    %371 = vmatprep.subr.mxu0 0.0
    %372 = vmatpush1.msra.mxu0 %v357
    %373 = vmatprep.subr.mxu0 0.0
    %374 = vmatpush1.msra.mxu0 %v356
    %375 = vmatprep.subr.mxu0 0.0
    %376 = vmatpush1.msra.mxu0 %v355
    %377 = vmatprep.subr.mxu0 0.0
    %378 = vmatpush1.msra.mxu0 %v354
    %379 = vmatprep.subr.mxu0 0.0
    %380 = vmatpush1.msra.mxu0 %v353
    %381 = vmatprep.subr.mxu0 0.0
    %382 = vmatpush1.msra.mxu0 %v352
    %383 = vmatprep.subr.mxu0 0.0
    %384 = vmatpush1.msra.mxu0 %v351
    %385 = vmatprep.subr.mxu0 0.0
    %386 = vmatpush1.msra.mxu0 %v350
    %387 = vmatprep.subr.mxu0 0.0
    %388 = vmatpush1.msra.mxu0 %v349
    %389 = vmatprep.subr.mxu0 0.0
    %390 = vmatpush1.msra.mxu0 %v348
    %391 = vmatprep.subr.mxu0 0.0
    %392 = vmatpush1.msra.mxu0 %v347
    %393 = vmatprep.subr.mxu0 0.0
    %394 = vmatpush1.msra.mxu0 %v346
    %395 = vmatprep.subr.mxu0 0.0
    %396 = vmatpush1.msra.mxu0 %v345
    %397 = vmatprep.subr.mxu0 0.0
    %398 = vmatpush1.msra.mxu0 %v344
    %399 = vmatprep.subr.mxu0 0.0
    %400 = vmatpush2.msra.mxu0 0.0
    %401 = vmatprep.subr.mxu0 0.0
    %402 = vmatpush2.msra.mxu0 0.0
    %403 = vmatprep.subr.mxu0 0.0
    %404 = vmatpush2.msra.mxu0 0.0
    %405 = vmatprep.subr.mxu0 0.0
    %406 = vmatpush2.msra.mxu0 0.0
    %407 = vmatprep.subr.mxu0 0.0
    %408 = vmatpush2.msra.mxu0 0.0
    %409 = vmatprep.subr.mxu0 0.0
    %410 = vmatpush2.msra.mxu0 0.0
    %411 = vmatprep.subr.mxu0 0.0
    %412 = vmatpush2.msra.mxu0 0.0
    %413 = vmatprep.subr.mxu0 0.0
    %414 = vmatpush2.msra.mxu0 0.0
    %415 = vmatprep.subr.mxu0 0.0
    %416 = vmatpush2.msra.mxu0 0.0
    %417 = vmatprep.subr.mxu0 0.0
    %418 = vmatpush2.msra.mxu0 0.0
    %419 = vmatprep.subr.mxu0 0.0
    %420 = vmatpush2.msra.mxu0 0.0
    %421 = vmatprep.subr.mxu0 0.0
    %422 = vmatpush2.msra.mxu0 0.0
    %423 = vmatprep.subr.mxu0 0.0
    %424 = vmatpush2.msra.mxu0 0.0
    %425 = vmatprep.subr.mxu0 0.0
    %426 = vmatpush2.msra.mxu0 0.0
    %427 = vmatprep.subr.mxu0 0.0
    %428 = vmatpush2.msra.mxu0 0.0
    %429 = vmatprep.subr.mxu0 0.0
    %430 = vmatpush2.msra.mxu0 0.0
    %431 = vmatprep.mubr.f32.mxu0 0.0
    %432 = vmatmul.mubr.f32.gmra.mxu0 %v343
    %v433 = vpop.f32.mrf.mxu0
    %v434 = vadd.f32 %v365, %v433
    %v435 = vpop.f32.mrf.mxu0
    %436 = vdwg.mxu0
    %437 = vst [vmem:[#allocation2] sm:$0x3] %v434
    // Predicated region
    $region30: #{lenet5_forward.5} parent=1 // pred_check
      _
    $region31: #{lenet5_forward.5} parent=1 // pred_check_branch
      %439 = sbr.rel (0) target = $region33
    $region32: #{lenet5_forward.5} parent=1 // pred_region
      %s441 = ssub.s32 32, 32
      %442 = vsyncadd [#allocation3], %s441
      %s444 = sshll.u32 [#allocation2], 4
      %s445 = int_to_ptr.vmem [resolvable:$true] %s444
      %447 = dma.vmem_to_hbm [thread:$0]  %s445, 32, %s7, [#allocation3]
    $region33: #{lenet5_forward.5} parent=1 // pred_fallthru
      _
    // Predicated region
    $region34: #{lenet5_forward.5} parent=1 // pred_check
      _
    $region35: #{lenet5_forward.5} parent=1 // pred_check_branch
      %449 = sbr.rel (0) target = $region37
    $region36: #{lenet5_forward.5} parent=1 // pred_region
      %450 = dma.done [#allocation3], 32
    $region37: #{lenet5_forward.5} parent=1 // pred_fallthru
      _
    %451 = vsyncpa [#allocation3], 1

</llo_original>
